<compile_context>
chip_gen: v7x
topology: tpu7x:2x2x1
jax: 0.10.0
libtpu: 0.0.40
codegen_flags: <defaults>
</compile_context>

<pallas_src>
import functools

import jax
import jax.numpy as jnp
from jax.experimental import pallas as pl
from jax.experimental.pallas import tpu as pltpu


def _gat_fused_kernel(mask_ref, x_ref, wk_ref, wq_ref, bias_ref, out_ref, *,
                      num_heads, f_out, tq):
    """One node-row tile per grid step; all heads fused.

    mask_ref: (TQ, N)           additive connectivity mask rows (0 / -1e9)
    x_ref:    (N, F_in)         all node features (keys; queries sliced from it)
    wk_ref:   (F_in, HF + H)    fused [per-head projection | target-scoring] weights
    wq_ref:   (F_in, HF + H)    fused [skip projection | source-scoring] weights
    bias_ref: (1, HF)
    out_ref:  (TQ, HF)          lane-dense output rows for this tile
    """
    hf = num_heads * f_out
    prec = jax.lax.Precision.HIGHEST   # exact f32 matmuls (match the f32 PyTorch module)

    x = x_ref[...]                                                    # (N, F_in)

    # --- key side: per-head projections + target scores in ONE MXU pass ---
    kb = jnp.dot(x, wk_ref[...], preferred_element_type=jnp.float32,
                 precision=prec)                                      # (N, HF + H)
    proj = kb[:, :hf]                                                 # (N, H*F_out)
    s_tgt = kb[:, hf:hf + num_heads].T                                # (H, N) — one small XLU transpose

    # --- query side: skip projection + source scores for this row tile, one pass ---
    if tq == x_ref.shape[0]:
        xq = x                                                        # default: single tile == all rows
    else:
        row0 = pl.multiple_of(pl.program_id(0) * tq, tq)
        xq = x_ref[pl.ds(row0, tq), :]                                # (TQ, F_in), sliced from resident x
    qb = jnp.dot(xq, wq_ref[...], preferred_element_type=jnp.float32,
                 precision=prec)                                      # (TQ, HF + H)
    skip_q = qb[:, :hf]                                               # (TQ, H*F_out)
    s_src = qb[:, hf:hf + num_heads]                                  # (TQ, H)

    mask = mask_ref[...]                                              # (TQ, N)
    bias = bias_ref[...]                                              # (1, HF)

    for h in range(num_heads):                                        # H is tiny -> static unroll
        lo = h * f_out
        # all_scores = LeakyReLU(s_src + s_tgt^T), slope 0.2, then masked softmax
        scores = s_src[:, h:h + 1] + s_tgt[h:h + 1, :]                # (TQ, N)
        scores = jnp.where(scores > 0, scores, 0.2 * scores)
        scores = scores + mask
        m = jnp.max(scores, axis=-1, keepdims=True)
        e = jnp.exp(scores - m)
        attn = e / jnp.sum(e, axis=-1, keepdims=True)                 # exact softmax (rows sum to 1)
        # aggregate this head's neighbourhood features
        head = jnp.dot(attn, proj[:, lo:lo + f_out],
                       preferred_element_type=jnp.float32, precision=prec)   # (TQ, F_out)
        # skip + bias + ELU(alpha=1), written straight into this head's lane slice
        v = head + skip_q[:, lo:lo + f_out] + bias[:, lo:lo + f_out]
        v = jnp.where(v > 0, v, jnp.exp(jnp.minimum(v, 0.0)) - 1.0)
        out_ref[:, lo:lo + f_out] = v.astype(out_ref.dtype)


def gat_layer_imp2(x, connectivity_mask, lin_w, scoring_src, scoring_tgt, skip_w,
                   bias, *, tq=None, use_bf16=False):
    """Pallas GATLayerImp2 forward (concat=True, skip, bias, eval-mode dropout).

    Returns (out_features (N, H*F_out), connectivity_mask) like the PyTorch module.
    """
    N, F_in = x.shape
    _, H, F_out = scoring_src.shape
    HF = H * F_out
    assert connectivity_mask.shape == (N, N)

    # Single grid step by default: v5e/v6e have one TensorCore and every extra row
    # tile re-runs the key-side matmuls.  Pass tq explicitly (e.g. N//2) only when
    # splitting rows across v7x's two TensorCores is worth the duplicated key work.
    if tq is None:
        tq = N
    assert N % tq == 0, "node count must be divisible by the row-tile size"
    grid = (N // tq,)

    hp = jax.lax.Precision.HIGHEST
    # ---- host-side weight fusion (pure glue, done once per call) ----
    # torch Linear: proj = x @ W^T with W: (H*F_out, F_in)
    w_keys = lin_w.T                                                   # (F_in, HF)
    w_heads = w_keys.reshape(F_in, H, F_out)
    # fold the scoring vectors into the projection: score = x @ (W_h @ a_h)
    w_src = jnp.einsum('fho,ho->fh', w_heads, scoring_src[0], precision=hp)   # (F_in, H)
    w_tgt = jnp.einsum('fho,ho->fh', w_heads, scoring_tgt[0], precision=hp)   # (F_in, H)
    # key side carries the target scores as extra columns -> one in-kernel MXU pass
    w_key_ext = jnp.concatenate([w_keys, w_tgt], axis=1)               # (F_in, HF + H)
    if F_out == F_in:
        # matching dims -> PyTorch adds the raw input per head (identity skip)
        w_skip = jnp.tile(jnp.eye(F_in, dtype=jnp.float32), (1, H))    # (F_in, HF)
    else:
        w_skip = skip_w.T                                              # (F_in, HF)
    # query side carries skip projection + source scores -> one in-kernel MXU pass
    w_query = jnp.concatenate([w_skip, w_src], axis=1)                 # (F_in, HF + H)
    bias2d = bias.reshape(1, HF)

    if use_bf16:
        # v6e/v7x MXUs are bf16-native; f32 accumulation is kept inside the kernel.
        x_in = x.astype(jnp.bfloat16)
        w_key_ext = w_key_ext.astype(jnp.bfloat16)
        w_query = w_query.astype(jnp.bfloat16)
    else:
        x_in = x

    out = pl.pallas_call(
        functools.partial(_gat_fused_kernel, num_heads=H, f_out=F_out, tq=tq),
        out_shape=jax.ShapeDtypeStruct((N, HF), jnp.float32),
        grid_spec=pltpu.PrefetchScalarGridSpec(
            num_scalar_prefetch=0,
            grid=grid,
            in_specs=[
                pl.BlockSpec((tq, N), lambda i: (i, 0)),           # additive mask rows, this tile
                pl.BlockSpec((N, F_in), lambda i: (0, 0)),         # all node features
                pl.BlockSpec((F_in, HF + H), lambda i: (0, 0)),    # fused [proj | tgt-score] weights
                pl.BlockSpec((F_in, HF + H), lambda i: (0, 0)),    # fused [skip | src-score] weights
                pl.BlockSpec((1, HF), lambda i: (0, 0)),           # bias
            ],
            out_specs=pl.BlockSpec((tq, HF), lambda i: (i, 0)),    # lane-dense output rows
        ),
        compiler_params=pltpu.CompilerParams(
            dimension_semantics=("parallel",)),
    )(connectivity_mask, x_in, w_key_ext, w_query, bias2d)

    return out, connectivity_mask


def _gat_reference(x, connectivity_mask, lin_w, scoring_src, scoring_tgt, skip_w, bias):
    """Pure-JAX reference mirroring the PyTorch IMP2 forward (eval-mode dropout)."""
    hp = jax.lax.Precision.HIGHEST
    _, H, F_out = scoring_src.shape
    proj = jnp.dot(x, lin_w.T, precision=hp).reshape(-1, H, F_out)    # (N, H, F_out)
    s_src = jnp.sum(proj * scoring_src, axis=-1, keepdims=True)       # (N, H, 1)
    s_tgt = jnp.sum(proj * scoring_tgt, axis=-1, keepdims=True)       # (N, H, 1)
    s_src = jnp.transpose(s_src, (1, 0, 2))                           # (H, N, 1)
    s_tgt = jnp.transpose(s_tgt, (1, 2, 0))                           # (H, 1, N)
    scores = s_src + s_tgt
    scores = jnp.where(scores > 0, scores, 0.2 * scores)              # LeakyReLU(0.2)
    attn = jax.nn.softmax(scores + connectivity_mask[None], axis=-1)  # (H, N, N)
    out = jnp.einsum('hqn,hnf->hqf', attn, jnp.transpose(proj, (1, 0, 2)),
                     precision=hp)
    out = jnp.transpose(out, (1, 0, 2))                               # (N, H, F_out)
    if F_out == x.shape[-1]:
        out = out + x[:, None, :]
    else:
        out = out + jnp.dot(x, skip_w.T, precision=hp).reshape(-1, H, F_out)
    out = out.reshape(-1, H * F_out) + bias
    out = jnp.where(out > 0, out, jnp.exp(jnp.minimum(out, 0.0)) - 1.0)  # ELU(alpha=1)
    return out, connectivity_mask


def _xavier_uniform(key, shape, fan_in, fan_out):
    bound = (6.0 / (fan_in + fan_out)) ** 0.5
    return jax.random.uniform(key, shape, jnp.float32, -bound, bound)


if __name__ == "__main__":
    # Small, module-consistent shapes: N nodes, F_in input feats, F_out per-head feats, H heads.
    N, F_in, F_out, H = 16, 32, 16, 4

    key = jax.random.PRNGKey(0)
    k_x, k_adj, k_w, k_src, k_tgt, k_skip = jax.random.split(key, 6)

    x = jax.random.normal(k_x, (N, F_in), jnp.float32)
    adj = (jax.random.uniform(k_adj, (N, N)) < 0.3) | jnp.eye(N, dtype=bool)
    connectivity_mask = jnp.where(adj, 0.0, -1e9).astype(jnp.float32)

    # Deterministic parameter init (shapes from GATLayer.__init__, IMP2 branch).
    lin_w = _xavier_uniform(k_w, (H * F_out, F_in), F_in, H * F_out)          # linear_proj.weight
    scoring_src = _xavier_uniform(k_src, (1, H, F_out), H * F_out, F_out)     # scoring_fn_source
    scoring_tgt = _xavier_uniform(k_tgt, (1, H, F_out), H * F_out, F_out)     # scoring_fn_target
    skip_w = _xavier_uniform(k_skip, (H * F_out, F_in), F_in, H * F_out)      # skip_proj.weight
    bias = jnp.zeros((H * F_out,), jnp.float32)                               # zeros_ init

    out, mask_out = gat_layer_imp2(x, connectivity_mask, lin_w,
                                   scoring_src, scoring_tgt, skip_w, bias)
    out = jax.block_until_ready(out)

    ref, _ = _gat_reference(x, connectivity_mask, lin_w,
                            scoring_src, scoring_tgt, skip_w, bias)
    assert out.shape == (N, H * F_out)
    max_err = jnp.max(jnp.abs(out - ref))
    assert jnp.allclose(out, ref, atol=1e-3, rtol=1e-3), \
        f"mismatch vs pure-JAX reference (max abs err {max_err})"

    print("KERNEL_OK")
</pallas_src>

<mosaic_0001>
module attributes {stable_mosaic.version = 11 : i64} {
  func.func @_gat_fused_kernel(%arg0: i32, %arg1: memref<16x16xf32, #tpu.memory_space<vmem>>, %arg2: memref<16x32xf32, #tpu.memory_space<vmem>>, %arg3: memref<32x68xf32, #tpu.memory_space<vmem>>, %arg4: memref<32x68xf32, #tpu.memory_space<vmem>>, %arg5: memref<1x64xf32, #tpu.memory_space<vmem>>, %arg6: memref<16x64xf32, #tpu.memory_space<vmem>>) attributes {dimension_semantics = [#tpu.dimension_semantics<parallel>], iteration_bounds = array<i64: 1>, scalar_prefetch = 0 : i64, scratch_operands = 0 : i64, tpu.core_type = #tpu.core_type<tc>, window_params = [{transform_indices = @transform_0, window_bounds = array<i64: 16, 16>}, {pipeline_mode = #tpu.pipeline_mode<synchronous>, transform_indices = @transform_1, window_bounds = array<i64: 16, 32>}, {pipeline_mode = #tpu.pipeline_mode<synchronous>, transform_indices = @transform_2, window_bounds = array<i64: 32, 68>}, {pipeline_mode = #tpu.pipeline_mode<synchronous>, transform_indices = @transform_3, window_bounds = array<i64: 32, 68>}, {pipeline_mode = #tpu.pipeline_mode<synchronous>, transform_indices = @transform_4, window_bounds = array<i64: 1, 64>}, {transform_indices = @transform_5, window_bounds = array<i64: 16, 64>}]} {
    %c0 = arith.constant 0 : index
    %c0_0 = arith.constant 0 : index
    %0 = vector.load %arg2[%c0, %c0_0] : memref<16x32xf32, #tpu.memory_space<vmem>>, vector<16x32xf32>
    %c0_1 = arith.constant 0 : index
    %c0_2 = arith.constant 0 : index
    %1 = vector.load %arg3[%c0_1, %c0_2] : memref<32x68xf32, #tpu.memory_space<vmem>>, vector<32x68xf32>
    %cst = arith.constant dense<0.000000e+00> : vector<16x68xf32>
    %2 = tpu.matmul %0, %1, %cst {dimension_numbers = #tpu.dot_dimension_numbers<[1], [0], [0], [1], [0, 0, 1, 1], [], []>, precision = #tpu.contract_precision<fp32>} : vector<16x32xf32>, vector<32x68xf32>, vector<16x68xf32> -> vector<16x68xf32>
    %3 = vector.extract_strided_slice %2 {offsets = [0, 0], sizes = [16, 64], strides = [1, 1]} : vector<16x68xf32> to vector<16x64xf32>
    %4 = vector.extract_strided_slice %2 {offsets = [0, 64], sizes = [16, 4], strides = [1, 1]} : vector<16x68xf32> to vector<16x4xf32>
    %5 = tpu.transpose %4, [1, 0] : vector<16x4xf32> -> vector<4x16xf32>
    %c0_3 = arith.constant 0 : index
    %c0_4 = arith.constant 0 : index
    %6 = vector.load %arg4[%c0_3, %c0_4] : memref<32x68xf32, #tpu.memory_space<vmem>>, vector<32x68xf32>
    %cst_5 = arith.constant dense<0.000000e+00> : vector<16x68xf32>
    %7 = tpu.matmul %0, %6, %cst_5 {dimension_numbers = #tpu.dot_dimension_numbers<[1], [0], [0], [1], [0, 0, 1, 1], [], []>, precision = #tpu.contract_precision<fp32>} : vector<16x32xf32>, vector<32x68xf32>, vector<16x68xf32> -> vector<16x68xf32>
    %8 = vector.extract_strided_slice %7 {offsets = [0, 0], sizes = [16, 64], strides = [1, 1]} : vector<16x68xf32> to vector<16x64xf32>
    %9 = vector.extract_strided_slice %7 {offsets = [0, 64], sizes = [16, 4], strides = [1, 1]} : vector<16x68xf32> to vector<16x4xf32>
    %c0_6 = arith.constant 0 : index
    %c0_7 = arith.constant 0 : index
    %10 = vector.load %arg1[%c0_6, %c0_7] : memref<16x16xf32, #tpu.memory_space<vmem>>, vector<16x16xf32>
    %c0_8 = arith.constant 0 : index
    %c0_9 = arith.constant 0 : index
    %11 = vector.load %arg5[%c0_8, %c0_9] : memref<1x64xf32, #tpu.memory_space<vmem>>, vector<1x64xf32>
    %12 = vector.extract_strided_slice %9 {offsets = [0, 0], sizes = [16, 1], strides = [1, 1]} : vector<16x4xf32> to vector<16x1xf32>
    %13 = vector.extract_strided_slice %5 {offsets = [0, 0], sizes = [1, 16], strides = [1, 1]} : vector<4x16xf32> to vector<1x16xf32>
    %14 = vector.broadcast %12 : vector<16x1xf32> to vector<16x16xf32>
    %15 = vector.broadcast %13 : vector<1x16xf32> to vector<16x16xf32>
    %16 = arith.addf %14, %15 : vector<16x16xf32>
    %cst_10 = arith.constant 0.000000e+00 : f32
    %17 = vector.broadcast %cst_10 : f32 to vector<16x16xf32>
    %18 = arith.cmpf ogt, %16, %17 : vector<16x16xf32>
    %cst_11 = arith.constant 2.000000e-01 : f32
    %19 = vector.broadcast %cst_11 : f32 to vector<16x16xf32>
    %20 = arith.mulf %19, %16 : vector<16x16xf32>
    %21 = arith.select %18, %16, %20 : vector<16x16xi1>, vector<16x16xf32>
    %22 = arith.addf %21, %10 : vector<16x16xf32>
    %cst_12 = arith.constant dense<0xFF800000> : vector<16xf32>
    %23 = vector.multi_reduction <maximumf>, %22, %cst_12 [1] : vector<16x16xf32> to vector<16xf32>
    %24 = vector.shape_cast %23 : vector<16xf32> to vector<16x1xf32>
    %25 = vector.broadcast %24 : vector<16x1xf32> to vector<16x16xf32>
    %26 = arith.subf %22, %25 : vector<16x16xf32>
    %27 = math.exp %26 : vector<16x16xf32>
    %cst_13 = arith.constant dense<0.000000e+00> : vector<16xf32>
    %28 = vector.multi_reduction <add>, %27, %cst_13 [1] : vector<16x16xf32> to vector<16xf32>
    %29 = vector.shape_cast %28 : vector<16xf32> to vector<16x1xf32>
    %30 = vector.broadcast %29 : vector<16x1xf32> to vector<16x16xf32>
    %31 = arith.divf %27, %30 : vector<16x16xf32>
    %32 = vector.extract_strided_slice %3 {offsets = [0, 0], sizes = [16, 16], strides = [1, 1]} : vector<16x64xf32> to vector<16x16xf32>
    %cst_14 = arith.constant dense<0.000000e+00> : vector<16x16xf32>
    %33 = tpu.matmul %31, %32, %cst_14 {dimension_numbers = #tpu.dot_dimension_numbers<[1], [0], [0], [1], [0, 0, 1, 1], [], []>, precision = #tpu.contract_precision<fp32>} : vector<16x16xf32>, vector<16x16xf32>, vector<16x16xf32> -> vector<16x16xf32>
    %34 = vector.extract_strided_slice %8 {offsets = [0, 0], sizes = [16, 16], strides = [1, 1]} : vector<16x64xf32> to vector<16x16xf32>
    %35 = arith.addf %33, %34 : vector<16x16xf32>
    %36 = vector.extract_strided_slice %11 {offsets = [0, 0], sizes = [1, 16], strides = [1, 1]} : vector<1x64xf32> to vector<1x16xf32>
    %37 = vector.broadcast %36 : vector<1x16xf32> to vector<16x16xf32>
    %38 = arith.addf %35, %37 : vector<16x16xf32>
    %cst_15 = arith.constant 0.000000e+00 : f32
    %39 = vector.broadcast %cst_15 : f32 to vector<16x16xf32>
    %40 = arith.cmpf ogt, %38, %39 : vector<16x16xf32>
    %cst_16 = arith.constant 0.000000e+00 : f32
    %41 = vector.broadcast %cst_16 : f32 to vector<16x16xf32>
    %42 = arith.minimumf %38, %41 : vector<16x16xf32>
    %43 = math.exp %42 : vector<16x16xf32>
    %cst_17 = arith.constant 1.000000e+00 : f32
    %44 = vector.broadcast %cst_17 : f32 to vector<16x16xf32>
    %45 = arith.subf %43, %44 : vector<16x16xf32>
    %46 = arith.select %40, %38, %45 : vector<16x16xi1>, vector<16x16xf32>
    %c0_18 = arith.constant 0 : index
    %c0_19 = arith.constant 0 : index
    %47 = vector.load %arg6[%c0_18, %c0_19] : memref<16x64xf32, #tpu.memory_space<vmem>>, vector<16x16xf32>
    tpu.vector_store %arg6[%c0_18, %c0_19], %46 {strides = array<i32>} : memref<16x64xf32, #tpu.memory_space<vmem>>, vector<16x16xf32>,
    %48 = vector.extract_strided_slice %9 {offsets = [0, 1], sizes = [16, 1], strides = [1, 1]} : vector<16x4xf32> to vector<16x1xf32>
    %49 = vector.extract_strided_slice %5 {offsets = [1, 0], sizes = [1, 16], strides = [1, 1]} : vector<4x16xf32> to vector<1x16xf32>
    %50 = vector.broadcast %48 : vector<16x1xf32> to vector<16x16xf32>
    %51 = vector.broadcast %49 : vector<1x16xf32> to vector<16x16xf32>
    %52 = arith.addf %50, %51 : vector<16x16xf32>
    %cst_20 = arith.constant 0.000000e+00 : f32
    %53 = vector.broadcast %cst_20 : f32 to vector<16x16xf32>
    %54 = arith.cmpf ogt, %52, %53 : vector<16x16xf32>
    %cst_21 = arith.constant 2.000000e-01 : f32
    %55 = vector.broadcast %cst_21 : f32 to vector<16x16xf32>
    %56 = arith.mulf %55, %52 : vector<16x16xf32>
    %57 = arith.select %54, %52, %56 : vector<16x16xi1>, vector<16x16xf32>
    %58 = arith.addf %57, %10 : vector<16x16xf32>
    %cst_22 = arith.constant dense<0xFF800000> : vector<16xf32>
    %59 = vector.multi_reduction <maximumf>, %58, %cst_22 [1] : vector<16x16xf32> to vector<16xf32>
    %60 = vector.shape_cast %59 : vector<16xf32> to vector<16x1xf32>
    %61 = vector.broadcast %60 : vector<16x1xf32> to vector<16x16xf32>
    %62 = arith.subf %58, %61 : vector<16x16xf32>
    %63 = math.exp %62 : vector<16x16xf32>
    %cst_23 = arith.constant dense<0.000000e+00> : vector<16xf32>
    %64 = vector.multi_reduction <add>, %63, %cst_23 [1] : vector<16x16xf32> to vector<16xf32>
    %65 = vector.shape_cast %64 : vector<16xf32> to vector<16x1xf32>
    %66 = vector.broadcast %65 : vector<16x1xf32> to vector<16x16xf32>
    %67 = arith.divf %63, %66 : vector<16x16xf32>
    %68 = vector.extract_strided_slice %3 {offsets = [0, 16], sizes = [16, 16], strides = [1, 1]} : vector<16x64xf32> to vector<16x16xf32>
    %cst_24 = arith.constant dense<0.000000e+00> : vector<16x16xf32>
    %69 = tpu.matmul %67, %68, %cst_24 {dimension_numbers = #tpu.dot_dimension_numbers<[1], [0], [0], [1], [0, 0, 1, 1], [], []>, precision = #tpu.contract_precision<fp32>} : vector<16x16xf32>, vector<16x16xf32>, vector<16x16xf32> -> vector<16x16xf32>
    %70 = vector.extract_strided_slice %8 {offsets = [0, 16], sizes = [16, 16], strides = [1, 1]} : vector<16x64xf32> to vector<16x16xf32>
    %71 = arith.addf %69, %70 : vector<16x16xf32>
    %72 = vector.extract_strided_slice %11 {offsets = [0, 16], sizes = [1, 16], strides = [1, 1]} : vector<1x64xf32> to vector<1x16xf32>
    %73 = vector.broadcast %72 : vector<1x16xf32> to vector<16x16xf32>
    %74 = arith.addf %71, %73 : vector<16x16xf32>
    %cst_25 = arith.constant 0.000000e+00 : f32
    %75 = vector.broadcast %cst_25 : f32 to vector<16x16xf32>
    %76 = arith.cmpf ogt, %74, %75 : vector<16x16xf32>
    %cst_26 = arith.constant 0.000000e+00 : f32
    %77 = vector.broadcast %cst_26 : f32 to vector<16x16xf32>
    %78 = arith.minimumf %74, %77 : vector<16x16xf32>
    %79 = math.exp %78 : vector<16x16xf32>
    %cst_27 = arith.constant 1.000000e+00 : f32
    %80 = vector.broadcast %cst_27 : f32 to vector<16x16xf32>
    %81 = arith.subf %79, %80 : vector<16x16xf32>
    %82 = arith.select %76, %74, %81 : vector<16x16xi1>, vector<16x16xf32>
    %c0_28 = arith.constant 0 : index
    %c16 = arith.constant 16 : index
    %83 = vector.load %arg6[%c0_28, %c16] : memref<16x64xf32, #tpu.memory_space<vmem>>, vector<16x16xf32>
    tpu.vector_store %arg6[%c0_28, %c16], %82 {strides = array<i32>} : memref<16x64xf32, #tpu.memory_space<vmem>>, vector<16x16xf32>,
    %84 = vector.extract_strided_slice %9 {offsets = [0, 2], sizes = [16, 1], strides = [1, 1]} : vector<16x4xf32> to vector<16x1xf32>
    %85 = vector.extract_strided_slice %5 {offsets = [2, 0], sizes = [1, 16], strides = [1, 1]} : vector<4x16xf32> to vector<1x16xf32>
    %86 = vector.broadcast %84 : vector<16x1xf32> to vector<16x16xf32>
    %87 = vector.broadcast %85 : vector<1x16xf32> to vector<16x16xf32>
    %88 = arith.addf %86, %87 : vector<16x16xf32>
    %cst_29 = arith.constant 0.000000e+00 : f32
    %89 = vector.broadcast %cst_29 : f32 to vector<16x16xf32>
    %90 = arith.cmpf ogt, %88, %89 : vector<16x16xf32>
    %cst_30 = arith.constant 2.000000e-01 : f32
    %91 = vector.broadcast %cst_30 : f32 to vector<16x16xf32>
    %92 = arith.mulf %91, %88 : vector<16x16xf32>
    %93 = arith.select %90, %88, %92 : vector<16x16xi1>, vector<16x16xf32>
    %94 = arith.addf %93, %10 : vector<16x16xf32>
    %cst_31 = arith.constant dense<0xFF800000> : vector<16xf32>
    %95 = vector.multi_reduction <maximumf>, %94, %cst_31 [1] : vector<16x16xf32> to vector<16xf32>
    %96 = vector.shape_cast %95 : vector<16xf32> to vector<16x1xf32>
    %97 = vector.broadcast %96 : vector<16x1xf32> to vector<16x16xf32>
    %98 = arith.subf %94, %97 : vector<16x16xf32>
    %99 = math.exp %98 : vector<16x16xf32>
    %cst_32 = arith.constant dense<0.000000e+00> : vector<16xf32>
    %100 = vector.multi_reduction <add>, %99, %cst_32 [1] : vector<16x16xf32> to vector<16xf32>
    %101 = vector.shape_cast %100 : vector<16xf32> to vector<16x1xf32>
    %102 = vector.broadcast %101 : vector<16x1xf32> to vector<16x16xf32>
    %103 = arith.divf %99, %102 : vector<16x16xf32>
    %104 = vector.extract_strided_slice %3 {offsets = [0, 32], sizes = [16, 16], strides = [1, 1]} : vector<16x64xf32> to vector<16x16xf32>
    %cst_33 = arith.constant dense<0.000000e+00> : vector<16x16xf32>
    %105 = tpu.matmul %103, %104, %cst_33 {dimension_numbers = #tpu.dot_dimension_numbers<[1], [0], [0], [1], [0, 0, 1, 1], [], []>, precision = #tpu.contract_precision<fp32>} : vector<16x16xf32>, vector<16x16xf32>, vector<16x16xf32> -> vector<16x16xf32>
    %106 = vector.extract_strided_slice %8 {offsets = [0, 32], sizes = [16, 16], strides = [1, 1]} : vector<16x64xf32> to vector<16x16xf32>
    %107 = arith.addf %105, %106 : vector<16x16xf32>
    %108 = vector.extract_strided_slice %11 {offsets = [0, 32], sizes = [1, 16], strides = [1, 1]} : vector<1x64xf32> to vector<1x16xf32>
    %109 = vector.broadcast %108 : vector<1x16xf32> to vector<16x16xf32>
    %110 = arith.addf %107, %109 : vector<16x16xf32>
    %cst_34 = arith.constant 0.000000e+00 : f32
    %111 = vector.broadcast %cst_34 : f32 to vector<16x16xf32>
    %112 = arith.cmpf ogt, %110, %111 : vector<16x16xf32>
    %cst_35 = arith.constant 0.000000e+00 : f32
    %113 = vector.broadcast %cst_35 : f32 to vector<16x16xf32>
    %114 = arith.minimumf %110, %113 : vector<16x16xf32>
    %115 = math.exp %114 : vector<16x16xf32>
    %cst_36 = arith.constant 1.000000e+00 : f32
    %116 = vector.broadcast %cst_36 : f32 to vector<16x16xf32>
    %117 = arith.subf %115, %116 : vector<16x16xf32>
    %118 = arith.select %112, %110, %117 : vector<16x16xi1>, vector<16x16xf32>
    %c0_37 = arith.constant 0 : index
    %c32 = arith.constant 32 : index
    %119 = vector.load %arg6[%c0_37, %c32] : memref<16x64xf32, #tpu.memory_space<vmem>>, vector<16x16xf32>
    tpu.vector_store %arg6[%c0_37, %c32], %118 {strides = array<i32>} : memref<16x64xf32, #tpu.memory_space<vmem>>, vector<16x16xf32>,
    %120 = vector.extract_strided_slice %9 {offsets = [0, 3], sizes = [16, 1], strides = [1, 1]} : vector<16x4xf32> to vector<16x1xf32>
    %121 = vector.extract_strided_slice %5 {offsets = [3, 0], sizes = [1, 16], strides = [1, 1]} : vector<4x16xf32> to vector<1x16xf32>
    %122 = vector.broadcast %120 : vector<16x1xf32> to vector<16x16xf32>
    %123 = vector.broadcast %121 : vector<1x16xf32> to vector<16x16xf32>
    %124 = arith.addf %122, %123 : vector<16x16xf32>
    %cst_38 = arith.constant 0.000000e+00 : f32
    %125 = vector.broadcast %cst_38 : f32 to vector<16x16xf32>
    %126 = arith.cmpf ogt, %124, %125 : vector<16x16xf32>
    %cst_39 = arith.constant 2.000000e-01 : f32
    %127 = vector.broadcast %cst_39 : f32 to vector<16x16xf32>
    %128 = arith.mulf %127, %124 : vector<16x16xf32>
    %129 = arith.select %126, %124, %128 : vector<16x16xi1>, vector<16x16xf32>
    %130 = arith.addf %129, %10 : vector<16x16xf32>
    %cst_40 = arith.constant dense<0xFF800000> : vector<16xf32>
    %131 = vector.multi_reduction <maximumf>, %130, %cst_40 [1] : vector<16x16xf32> to vector<16xf32>
    %132 = vector.shape_cast %131 : vector<16xf32> to vector<16x1xf32>
    %133 = vector.broadcast %132 : vector<16x1xf32> to vector<16x16xf32>
    %134 = arith.subf %130, %133 : vector<16x16xf32>
    %135 = math.exp %134 : vector<16x16xf32>
    %cst_41 = arith.constant dense<0.000000e+00> : vector<16xf32>
    %136 = vector.multi_reduction <add>, %135, %cst_41 [1] : vector<16x16xf32> to vector<16xf32>
    %137 = vector.shape_cast %136 : vector<16xf32> to vector<16x1xf32>
    %138 = vector.broadcast %137 : vector<16x1xf32> to vector<16x16xf32>
    %139 = arith.divf %135, %138 : vector<16x16xf32>
    %140 = vector.extract_strided_slice %3 {offsets = [0, 48], sizes = [16, 16], strides = [1, 1]} : vector<16x64xf32> to vector<16x16xf32>
    %cst_42 = arith.constant dense<0.000000e+00> : vector<16x16xf32>
    %141 = tpu.matmul %139, %140, %cst_42 {dimension_numbers = #tpu.dot_dimension_numbers<[1], [0], [0], [1], [0, 0, 1, 1], [], []>, precision = #tpu.contract_precision<fp32>} : vector<16x16xf32>, vector<16x16xf32>, vector<16x16xf32> -> vector<16x16xf32>
    %142 = vector.extract_strided_slice %8 {offsets = [0, 48], sizes = [16, 16], strides = [1, 1]} : vector<16x64xf32> to vector<16x16xf32>
    %143 = arith.addf %141, %142 : vector<16x16xf32>
    %144 = vector.extract_strided_slice %11 {offsets = [0, 48], sizes = [1, 16], strides = [1, 1]} : vector<1x64xf32> to vector<1x16xf32>
    %145 = vector.broadcast %144 : vector<1x16xf32> to vector<16x16xf32>
    %146 = arith.addf %143, %145 : vector<16x16xf32>
    %cst_43 = arith.constant 0.000000e+00 : f32
    %147 = vector.broadcast %cst_43 : f32 to vector<16x16xf32>
    %148 = arith.cmpf ogt, %146, %147 : vector<16x16xf32>
    %cst_44 = arith.constant 0.000000e+00 : f32
    %149 = vector.broadcast %cst_44 : f32 to vector<16x16xf32>
    %150 = arith.minimumf %146, %149 : vector<16x16xf32>
    %151 = math.exp %150 : vector<16x16xf32>
    %cst_45 = arith.constant 1.000000e+00 : f32
    %152 = vector.broadcast %cst_45 : f32 to vector<16x16xf32>
    %153 = arith.subf %151, %152 : vector<16x16xf32>
    %154 = arith.select %148, %146, %153 : vector<16x16xi1>, vector<16x16xf32>
    %c0_46 = arith.constant 0 : index
    %c48 = arith.constant 48 : index
    %155 = vector.load %arg6[%c0_46, %c48] : memref<16x64xf32, #tpu.memory_space<vmem>>, vector<16x16xf32>
    tpu.vector_store %arg6[%c0_46, %c48], %154 {strides = array<i32>} : memref<16x64xf32, #tpu.memory_space<vmem>>, vector<16x16xf32>,
    return
  }
  func.func @transform_0(%arg0: i32) -> (i32, i32) {
    %c0_i32 = arith.constant 0 : i32
    %c0_i32_0 = arith.constant 0 : i32
    return %arg0, %c0_i32 : i32, i32
  }
  func.func @transform_1(%arg0: i32) -> (i32, i32) {
    %c0_i32 = arith.constant 0 : i32
    %c0_i32_0 = arith.constant 0 : i32
    %c0_i32_1 = arith.constant 0 : i32
    return %c0_i32, %c0_i32_0 : i32, i32
  }
  func.func @transform_2(%arg0: i32) -> (i32, i32) {
    %c0_i32 = arith.constant 0 : i32
    %c0_i32_0 = arith.constant 0 : i32
    %c0_i32_1 = arith.constant 0 : i32
    return %c0_i32, %c0_i32_0 : i32, i32
  }
  func.func @transform_3(%arg0: i32) -> (i32, i32) {
    %c0_i32 = arith.constant 0 : i32
    %c0_i32_0 = arith.constant 0 : i32
    %c0_i32_1 = arith.constant 0 : i32
    return %c0_i32, %c0_i32_0 : i32, i32
  }
  func.func @transform_4(%arg0: i32) -> (i32, i32) {
    %c0_i32 = arith.constant 0 : i32
    %c0_i32_0 = arith.constant 0 : i32
    %c0_i32_1 = arith.constant 0 : i32
    return %c0_i32, %c0_i32_0 : i32, i32
  }
  func.func @transform_5(%arg0: i32) -> (i32, i32) {
    %c0_i32 = arith.constant 0 : i32
    %c0_i32_0 = arith.constant 0 : i32
    return %arg0, %c0_i32 : i32, i32
  }
}

</mosaic_0001>

<llo_original>
// kernel: tpu_custom_call.1
$region0: #{tpu_custom_call.1}
  #allocation0 [shape = 'u32[]', space=smem, size = 0x4, offset = 0x4, fixed_abs, tag = 'smem constant byte address 0x4 - core index']
  #allocation1 [shape = 'u32[144,128]{1,0:T(1,128)}', space=vmem, size = 0x12000, scoped, tag = 'internal scratch']
  %s0 = inlined_call_operand.hbm [shape: f32[16,16], index: 0, kind: input, shape index: {}]
  %s1 = inlined_call_operand.hbm [shape: f32[16,32], index: 1, kind: input, shape index: {}]
  %s2 = inlined_call_operand.hbm [shape: f32[32,68], index: 2, kind: input, shape index: {}]
  %s3 = inlined_call_operand.hbm [shape: f32[32,68], index: 3, kind: input, shape index: {}]
  %s4 = inlined_call_operand.vmem [shape: f32[1,64], index: 4, kind: input, shape index: {}]
  %s5 = inlined_call_operand.hbm [shape: f32[16,64], index: 5, kind: output, shape index: {}]
  %s6 = sld [smem:[#allocation0]]
  $region46: #{tpu_custom_call.1} parent=0
    _
  %s8 = ssub.s32 1, %s6
  %s9 = scalar_select 0, %s8, %s6
  $region1: #{tpu_custom_call.1} parent=0
    #allocation2 [shape = 'u8[8192]{0}', space=vmem, size = 0x2000, scoped, tag = 'input window, operand 0, single buffered']
    #allocation3 [shape = 's32[1]{0}', space=sflag, size = 0x4, scoped, tag = 'scoped memory for tpu_custom_call.1']
    #allocation4 [shape = 's32[1]{0}', space=sflag, size = 0x4, scoped, tag = 'scoped memory for tpu_custom_call.1']
    #allocation5 [shape = 'u8[8192]{0}', space=vmem, size = 0x2000, scoped, tag = 'input window, operand 1, single buffered']
    #allocation6 [shape = 's32[1]{0}', space=sflag, size = 0x4, scoped, tag = 'scoped memory for tpu_custom_call.1']
    #allocation7 [shape = 'u8[16384]{0}', space=vmem, size = 0x4000, scoped, tag = 'input window, operand 2, single buffered']
    #allocation8 [shape = 'u8[16384]{0}', space=vmem, size = 0x4000, scoped, tag = 'input window, operand 3, single buffered']
    #allocation9 [shape = 's32[1]{0}', space=sflag, size = 0x4, scoped, tag = 'scoped memory for tpu_custom_call.1']
    #allocation10 [shape = 'u8[8192]{0}', space=vmem, size = 0x2000, scoped, tag = 'output window, operand 0, single buffered']
    %10 = vsyncpa [#allocation3], 0
    %11 = vsyncpa [#allocation6], 0
    %12 = vsyncpa [#allocation9], 0
    %13 = vsyncpa [#allocation4], 0
    // Predicated region
    $region2: #{tpu_custom_call.1} parent=1 // pred_check
      _
    $region3: #{tpu_custom_call.1} parent=1 // pred_check_branch
      %15 = sbr.rel (0) target = $region5
    $region4: #{tpu_custom_call.1} parent=1 // pred_region
      %s17 = ssub.s32 256, 256
      %18 = vsyncadd [#allocation3], %s17
      %s19 = sshll.u32 [#allocation2], 4
      %s20 = int_to_ptr.vmem [resolvable:$true] %s19
      %25 = dma.hbm_to_vmem [thread:$0]  %s0, 256, %s20, [#allocation3], 128, 128, 8
    $region5: #{tpu_custom_call.1} parent=1 // pred_fallthru
      _
    // Predicated region
    $region6: #{tpu_custom_call.1} parent=1 // pred_check
      _
    $region7: #{tpu_custom_call.1} parent=1 // pred_check_branch
      %27 = sbr.rel (0) target = $region9
    $region8: #{tpu_custom_call.1} parent=1 // pred_region
      %s29 = ssub.s32 256, 256
      %30 = vsyncadd [#allocation6], %s29
      %s31 = sshll.u32 [#allocation5], 4
      %s32 = int_to_ptr.vmem [resolvable:$true] %s31
      %37 = dma.hbm_to_vmem [thread:$0]  %s1, 256, %s32, [#allocation6], 128, 128, 8
    $region9: #{tpu_custom_call.1} parent=1 // pred_fallthru
      _
    // Predicated region
    $region10: #{tpu_custom_call.1} parent=1 // pred_check
      _
    $region11: #{tpu_custom_call.1} parent=1 // pred_check_branch
      %39 = sbr.rel (0) target = $region13
    $region12: #{tpu_custom_call.1} parent=1 // pred_region
      %s41 = ssub.s32 512, 512
      %42 = vsyncadd [#allocation6], %s41
      %s43 = sshll.u32 [#allocation7], 4
      %s44 = int_to_ptr.vmem [resolvable:$true] %s43
      %49 = dma.hbm_to_vmem [thread:$0]  %s2, 512, %s44, [#allocation6], 128, 128, 8
    $region13: #{tpu_custom_call.1} parent=1 // pred_fallthru
      _
    // Predicated region
    $region14: #{tpu_custom_call.1} parent=1 // pred_check
      _
    $region15: #{tpu_custom_call.1} parent=1 // pred_check_branch
      %51 = sbr.rel (0) target = $region17
    $region16: #{tpu_custom_call.1} parent=1 // pred_region
      %s53 = ssub.s32 512, 512
      %54 = vsyncadd [#allocation9], %s53
      %s55 = sshll.u32 [#allocation8], 4
      %s56 = int_to_ptr.vmem [resolvable:$true] %s55
      %61 = dma.hbm_to_vmem [thread:$0]  %s3, 512, %s56, [#allocation9], 128, 128, 8
    $region17: #{tpu_custom_call.1} parent=1 // pred_fallthru
      _
    // Predicated region
    $region18: #{tpu_custom_call.1} parent=1 // pred_check
      _
    $region19: #{tpu_custom_call.1} parent=1 // pred_check_branch
      %63 = sbr.rel (0) target = $region21
    $region20: #{tpu_custom_call.1} parent=1 // pred_region
      _
    $region21: #{tpu_custom_call.1} parent=1 // pred_fallthru
      _
    // Predicated region
    $region22: #{tpu_custom_call.1} parent=1 // pred_check
      _
    $region23: #{tpu_custom_call.1} parent=1 // pred_check_branch
      %65 = sbr.rel (0) target = $region25
    $region24: #{tpu_custom_call.1} parent=1 // pred_region
      %66 = dma.done [#allocation3], 256
    $region25: #{tpu_custom_call.1} parent=1 // pred_fallthru
      _
    // Predicated region
    $region26: #{tpu_custom_call.1} parent=1 // pred_check
      _
    $region27: #{tpu_custom_call.1} parent=1 // pred_check_branch
      %68 = sbr.rel (0) target = $region29
    $region28: #{tpu_custom_call.1} parent=1 // pred_region
      %69 = dma.done [#allocation6], 256
    $region29: #{tpu_custom_call.1} parent=1 // pred_fallthru
      _
    // Predicated region
    $region30: #{tpu_custom_call.1} parent=1 // pred_check
      _
    $region31: #{tpu_custom_call.1} parent=1 // pred_check_branch
      %71 = sbr.rel (0) target = $region33
    $region32: #{tpu_custom_call.1} parent=1 // pred_region
      %72 = dma.done [#allocation6], 512
    $region33: #{tpu_custom_call.1} parent=1 // pred_fallthru
      _
    // Predicated region
    $region34: #{tpu_custom_call.1} parent=1 // pred_check
      _
    $region35: #{tpu_custom_call.1} parent=1 // pred_check_branch
      %74 = sbr.rel (0) target = $region37
    $region36: #{tpu_custom_call.1} parent=1 // pred_region
      %75 = dma.done [#allocation9], 512
    $region37: #{tpu_custom_call.1} parent=1 // pred_fallthru
      _
    %v76 = vld [vmem:[#allocation5] sm:$0xff]
    %v77 = vld [vmem:[#allocation5 + $0x8] sm:$0xff]
    %v78 = vld [vmem:[#allocation7] sm:$0xff]
    %v79 = vld [vmem:[#allocation7 + $0x8] sm:$0xff]
    %v80 = vld [vmem:[#allocation7 + $0x10] sm:$0xff]
    %v81 = vld [vmem:[#allocation7 + $0x18] sm:$0xff]
    %vm82 = vcmask 261120
    %v84 = vsel %vm82, %v76, 0
    %v87 = vsel %vm82, %v77, 0
    %89 = vmatprep.subr.mxu0 0.0
    %v90 = vand.u32 %v78, 4294901760
    %91 = vmatpush1.msra.mxu0 %v90
    %92 = vmatprep.subr.mxu0 0.0
    %v93 = vand.u32 %v79, 4294901760
    %94 = vmatpush1.msra.mxu0 %v93
    %95 = vmatprep.subr.mxu0 0.0
    %v96 = vand.u32 %v80, 4294901760
    %97 = vmatpush1.msra.mxu0 %v96
    %98 = vmatprep.subr.mxu0 0.0
    %v99 = vand.u32 %v81, 4294901760
    %100 = vmatpush1.msra.mxu0 %v99
    %101 = vmatprep.subr.mxu0 0.0
    %102 = vmatpush1.msra.mxu0 0.0
    %103 = vmatprep.subr.mxu0 0.0
    %104 = vmatpush1.msra.mxu0 0.0
    %105 = vmatprep.subr.mxu0 0.0
    %106 = vmatpush1.msra.mxu0 0.0
    %107 = vmatprep.subr.mxu0 0.0
    %108 = vmatpush1.msra.mxu0 0.0
    %109 = vmatprep.subr.mxu0 0.0
    %110 = vmatpush1.msra.mxu0 0.0
    %111 = vmatprep.subr.mxu0 0.0
    %112 = vmatpush1.msra.mxu0 0.0
    %113 = vmatprep.subr.mxu0 0.0
    %114 = vmatpush1.msra.mxu0 0.0
    %115 = vmatprep.subr.mxu0 0.0
    %116 = vmatpush1.msra.mxu0 0.0
    %117 = vmatprep.subr.mxu0 0.0
    %118 = vmatpush1.msra.mxu0 0.0
    %119 = vmatprep.subr.mxu0 0.0
    %120 = vmatpush1.msra.mxu0 0.0
    %121 = vmatprep.subr.mxu0 0.0
    %122 = vmatpush1.msra.mxu0 0.0
    %123 = vmatprep.subr.mxu0 0.0
    %124 = vmatpush1.msra.mxu0 0.0
    %125 = vmatprep.subr.mxu0 0.0
    %126 = vmatpush1.msra.mxu0 0.0
    %127 = vmatprep.subr.mxu0 0.0
    %128 = vmatpush1.msra.mxu0 0.0
    %129 = vmatprep.subr.mxu0 0.0
    %130 = vmatpush1.msra.mxu0 0.0
    %131 = vmatprep.subr.mxu0 0.0
    %132 = vmatpush1.msra.mxu0 0.0
    %133 = vmatprep.subr.mxu0 0.0
    %134 = vmatpush1.msra.mxu0 0.0
    %135 = vmatprep.subr.mxu0 0.0
    %136 = vmatpush1.msra.mxu0 0.0
    %137 = vmatprep.subr.mxu0 0.0
    %138 = vmatpush1.msra.mxu0 0.0
    %139 = vmatprep.subr.mxu0 0.0
    %140 = vmatpush1.msra.mxu0 0.0
    %141 = vmatprep.subr.mxu0 0.0
    %142 = vmatpush1.msra.mxu0 0.0
    %143 = vmatprep.subr.mxu0 0.0
    %144 = vmatpush1.msra.mxu0 0.0
    %145 = vmatprep.subr.mxu0 0.0
    %146 = vmatpush1.msra.mxu0 0.0
    %147 = vmatprep.subr.mxu0 0.0
    %148 = vmatpush1.msra.mxu0 0.0
    %149 = vmatprep.subr.mxu0 0.0
    %150 = vmatpush1.msra.mxu0 0.0
    %151 = vmatprep.subr.mxu0 0.0
    %152 = vmatpush1.msra.mxu0 0.0
    %153 = vmatprep.subr.mxu0 0.0
    %154 = vmatpush1.msra.mxu0 0.0
    %155 = vmatprep.subr.mxu0 0.0
    %156 = vmatpush1.msra.mxu0 0.0
    %157 = vmatprep.mubr.f32.mxu0 0.0
    %v158 = vand.u32 %v84, 4294901760
    %v159 = vsub.f32 %v84, %v158
    %v160 = vand.u32 %v159, 4294901760
    %v161 = vsub.f32 %v159, %v160
    %v162 = vand.u32 %v161, 4294901760
    %163 = vmatmul.mubr.f32.gmra.mrb[0].mxu0 %v162
    %v164 = vpop.f32.mrb[0].mxu0
    %v165 = vadd.f32 0.0, %v164
    %v166 = vpop.f32.mrb[0].mxu0
    %167 = vmatprep.mubr.f32.mxu0 0.0
    %v168 = vand.u32 %v87, 4294901760
    %v169 = vsub.f32 %v87, %v168
    %v170 = vand.u32 %v169, 4294901760
    %v171 = vsub.f32 %v169, %v170
    %v172 = vand.u32 %v171, 4294901760
    %173 = vmatmul.mubr.f32.gmra.mrb[0].mxu0 %v172
    %v174 = vpop.f32.mrb[0].mxu0
    %v175 = vadd.f32 0.0, %v174
    %v176 = vpop.f32.mrb[0].mxu0
    %177 = vdwg.mxu0
    %178 = vmatprep.subr.mxu0 0.0
    %v179 = vand.u32 %v78, 4294901760
    %v180 = vsub.f32 %v78, %v179
    %v181 = vand.u32 %v180, 4294901760
    %v182 = vsub.f32 %v180, %v181
    %v183 = vand.u32 %v182, 4294901760
    %184 = vmatpush1.msra.mxu0 %v183
    %185 = vmatprep.subr.mxu0 0.0
    %v186 = vand.u32 %v79, 4294901760
    %v187 = vsub.f32 %v79, %v186
    %v188 = vand.u32 %v187, 4294901760
    %v189 = vsub.f32 %v187, %v188
    %v190 = vand.u32 %v189, 4294901760
    %191 = vmatpush1.msra.mxu0 %v190
    %192 = vmatprep.subr.mxu0 0.0
    %v193 = vand.u32 %v80, 4294901760
    %v194 = vsub.f32 %v80, %v193
    %v195 = vand.u32 %v194, 4294901760
    %v196 = vsub.f32 %v194, %v195
    %v197 = vand.u32 %v196, 4294901760
    %198 = vmatpush1.msra.mxu0 %v197
    %199 = vmatprep.subr.mxu0 0.0
    %v200 = vand.u32 %v81, 4294901760
    %v201 = vsub.f32 %v81, %v200
    %v202 = vand.u32 %v201, 4294901760
    %v203 = vsub.f32 %v201, %v202
    %v204 = vand.u32 %v203, 4294901760
    %205 = vmatpush1.msra.mxu0 %v204
    %206 = vmatprep.subr.mxu0 0.0
    %207 = vmatpush1.msra.mxu0 0.0
    %208 = vmatprep.subr.mxu0 0.0
    %209 = vmatpush1.msra.mxu0 0.0
    %210 = vmatprep.subr.mxu0 0.0
    %211 = vmatpush1.msra.mxu0 0.0
    %212 = vmatprep.subr.mxu0 0.0
    %213 = vmatpush1.msra.mxu0 0.0
    %214 = vmatprep.subr.mxu0 0.0
    %215 = vmatpush1.msra.mxu0 0.0
    %216 = vmatprep.subr.mxu0 0.0
    %217 = vmatpush1.msra.mxu0 0.0
    %218 = vmatprep.subr.mxu0 0.0
    %219 = vmatpush1.msra.mxu0 0.0
    %220 = vmatprep.subr.mxu0 0.0
    %221 = vmatpush1.msra.mxu0 0.0
    %222 = vmatprep.subr.mxu0 0.0
    %223 = vmatpush1.msra.mxu0 0.0
    %224 = vmatprep.subr.mxu0 0.0
    %225 = vmatpush1.msra.mxu0 0.0
    %226 = vmatprep.subr.mxu0 0.0
    %227 = vmatpush1.msra.mxu0 0.0
    %228 = vmatprep.subr.mxu0 0.0
    %229 = vmatpush1.msra.mxu0 0.0
    %230 = vmatprep.subr.mxu0 0.0
    %231 = vmatpush1.msra.mxu0 0.0
    %232 = vmatprep.subr.mxu0 0.0
    %233 = vmatpush1.msra.mxu0 0.0
    %234 = vmatprep.subr.mxu0 0.0
    %235 = vmatpush1.msra.mxu0 0.0
    %236 = vmatprep.subr.mxu0 0.0
    %237 = vmatpush1.msra.mxu0 0.0
    %238 = vmatprep.subr.mxu0 0.0
    %239 = vmatpush1.msra.mxu0 0.0
    %240 = vmatprep.subr.mxu0 0.0
    %241 = vmatpush1.msra.mxu0 0.0
    %242 = vmatprep.subr.mxu0 0.0
    %243 = vmatpush1.msra.mxu0 0.0
    %244 = vmatprep.subr.mxu0 0.0
    %245 = vmatpush1.msra.mxu0 0.0
    %246 = vmatprep.subr.mxu0 0.0
    %247 = vmatpush1.msra.mxu0 0.0
    %248 = vmatprep.subr.mxu0 0.0
    %249 = vmatpush1.msra.mxu0 0.0
    %250 = vmatprep.subr.mxu0 0.0
    %251 = vmatpush1.msra.mxu0 0.0
    %252 = vmatprep.subr.mxu0 0.0
    %253 = vmatpush1.msra.mxu0 0.0
    %254 = vmatprep.subr.mxu0 0.0
    %255 = vmatpush1.msra.mxu0 0.0
    %256 = vmatprep.subr.mxu0 0.0
    %257 = vmatpush1.msra.mxu0 0.0
    %258 = vmatprep.subr.mxu0 0.0
    %259 = vmatpush1.msra.mxu0 0.0
    %260 = vmatprep.subr.mxu0 0.0
    %261 = vmatpush1.msra.mxu0 0.0
    %262 = vmatprep.mubr.f32.mxu0 0.0
    %v263 = vand.u32 %v84, 4294901760
    %264 = vmatmul.mubr.f32.gmra.mrb[0].mxu0 %v263
    %v265 = vpop.f32.mrb[0].mxu0
    %v266 = vadd.f32 %v165, %v265
    %v267 = vpop.f32.mrb[0].mxu0
    %268 = vmatprep.mubr.f32.mxu0 0.0
    %v269 = vand.u32 %v87, 4294901760
    %270 = vmatmul.mubr.f32.gmra.mrb[0].mxu0 %v269
    %v271 = vpop.f32.mrb[0].mxu0
    %v272 = vadd.f32 %v175, %v271
    %v273 = vpop.f32.mrb[0].mxu0
    %274 = vdwg.mxu0
    %275 = vmatprep.subr.mxu0 0.0
    %v276 = vand.u32 %v78, 4294901760
    %v277 = vsub.f32 %v78, %v276
    %278 = vmatpush1.msra.mxu0 %v277
    %279 = vmatprep.subr.mxu0 0.0
    %v280 = vand.u32 %v79, 4294901760
    %v281 = vsub.f32 %v79, %v280
    %282 = vmatpush1.msra.mxu0 %v281
    %283 = vmatprep.subr.mxu0 0.0
    %v284 = vand.u32 %v80, 4294901760
    %v285 = vsub.f32 %v80, %v284
    %286 = vmatpush1.msra.mxu0 %v285
    %287 = vmatprep.subr.mxu0 0.0
    %v288 = vand.u32 %v81, 4294901760
    %v289 = vsub.f32 %v81, %v288
    %290 = vmatpush1.msra.mxu0 %v289
    %291 = vmatprep.subr.mxu0 0.0
    %292 = vmatpush1.msra.mxu0 0.0
    %293 = vmatprep.subr.mxu0 0.0
    %294 = vmatpush1.msra.mxu0 0.0
    %295 = vmatprep.subr.mxu0 0.0
    %296 = vmatpush1.msra.mxu0 0.0
    %297 = vmatprep.subr.mxu0 0.0
    %298 = vmatpush1.msra.mxu0 0.0
    %299 = vmatprep.subr.mxu0 0.0
    %300 = vmatpush1.msra.mxu0 0.0
    %301 = vmatprep.subr.mxu0 0.0
    %302 = vmatpush1.msra.mxu0 0.0
    %303 = vmatprep.subr.mxu0 0.0
    %304 = vmatpush1.msra.mxu0 0.0
    %305 = vmatprep.subr.mxu0 0.0
    %306 = vmatpush1.msra.mxu0 0.0
    %307 = vmatprep.subr.mxu0 0.0
    %308 = vmatpush1.msra.mxu0 0.0
    %309 = vmatprep.subr.mxu0 0.0
    %310 = vmatpush1.msra.mxu0 0.0
    %311 = vmatprep.subr.mxu0 0.0
    %312 = vmatpush1.msra.mxu0 0.0
    %313 = vmatprep.subr.mxu0 0.0
    %314 = vmatpush1.msra.mxu0 0.0
    %315 = vmatprep.subr.mxu0 0.0
    %316 = vmatpush1.msra.mxu0 0.0
    %317 = vmatprep.subr.mxu0 0.0
    %318 = vmatpush1.msra.mxu0 0.0
    %319 = vmatprep.subr.mxu0 0.0
    %320 = vmatpush1.msra.mxu0 0.0
    %321 = vmatprep.subr.mxu0 0.0
    %322 = vmatpush1.msra.mxu0 0.0
    %323 = vmatprep.subr.mxu0 0.0
    %324 = vmatpush1.msra.mxu0 0.0
    %325 = vmatprep.subr.mxu0 0.0
    %326 = vmatpush1.msra.mxu0 0.0
    %327 = vmatprep.subr.mxu0 0.0
    %328 = vmatpush1.msra.mxu0 0.0
    %329 = vmatprep.subr.mxu0 0.0
    %330 = vmatpush1.msra.mxu0 0.0
    %331 = vmatprep.subr.mxu0 0.0
    %332 = vmatpush1.msra.mxu0 0.0
    %333 = vmatprep.subr.mxu0 0.0
    %334 = vmatpush1.msra.mxu0 0.0
    %335 = vmatprep.subr.mxu0 0.0
    %336 = vmatpush1.msra.mxu0 0.0
    %337 = vmatprep.subr.mxu0 0.0
    %338 = vmatpush1.msra.mxu0 0.0
    %339 = vmatprep.subr.mxu0 0.0
    %340 = vmatpush1.msra.mxu0 0.0
    %341 = vmatprep.subr.mxu0 0.0
    %342 = vmatpush1.msra.mxu0 0.0
    %343 = vmatprep.subr.mxu0 0.0
    %344 = vmatpush1.msra.mxu0 0.0
    %345 = vmatprep.subr.mxu0 0.0
    %346 = vmatpush1.msra.mxu0 0.0
    %347 = vmatprep.mubr.f32.mxu0 0.0
    %v348 = vand.u32 %v84, 4294901760
    %v349 = vsub.f32 %v84, %v348
    %350 = vmatmul.mubr.f32.gmra.mrb[0].mxu0 %v349
    %v351 = vpop.f32.mrb[0].mxu0
    %v352 = vadd.f32 %v266, %v351
    %v353 = vpop.f32.mrb[0].mxu0
    %354 = vmatprep.mubr.f32.mxu0 0.0
    %v355 = vand.u32 %v87, 4294901760
    %v356 = vsub.f32 %v87, %v355
    %357 = vmatmul.mubr.f32.gmra.mrb[0].mxu0 %v356
    %v358 = vpop.f32.mrb[0].mxu0
    %v359 = vadd.f32 %v272, %v358
    %v360 = vpop.f32.mrb[0].mxu0
    %361 = vdwg.mxu0
    %362 = vmatprep.subr.mxu0 0.0
    %v363 = vand.u32 %v78, 4294901760
    %364 = vmatpush1.msra.mxu0 %v363
    %365 = vmatprep.subr.mxu0 0.0
    %v366 = vand.u32 %v79, 4294901760
    %367 = vmatpush1.msra.mxu0 %v366
    %368 = vmatprep.subr.mxu0 0.0
    %v369 = vand.u32 %v80, 4294901760
    %370 = vmatpush1.msra.mxu0 %v369
    %371 = vmatprep.subr.mxu0 0.0
    %v372 = vand.u32 %v81, 4294901760
    %373 = vmatpush1.msra.mxu0 %v372
    %374 = vmatprep.subr.mxu0 0.0
    %375 = vmatpush1.msra.mxu0 0.0
    %376 = vmatprep.subr.mxu0 0.0
    %377 = vmatpush1.msra.mxu0 0.0
    %378 = vmatprep.subr.mxu0 0.0
    %379 = vmatpush1.msra.mxu0 0.0
    %380 = vmatprep.subr.mxu0 0.0
    %381 = vmatpush1.msra.mxu0 0.0
    %382 = vmatprep.subr.mxu0 0.0
    %383 = vmatpush1.msra.mxu0 0.0
    %384 = vmatprep.subr.mxu0 0.0
    %385 = vmatpush1.msra.mxu0 0.0
    %386 = vmatprep.subr.mxu0 0.0
    %387 = vmatpush1.msra.mxu0 0.0
    %388 = vmatprep.subr.mxu0 0.0
    %389 = vmatpush1.msra.mxu0 0.0
    %390 = vmatprep.subr.mxu0 0.0
    %391 = vmatpush1.msra.mxu0 0.0
    %392 = vmatprep.subr.mxu0 0.0
    %393 = vmatpush1.msra.mxu0 0.0
    %394 = vmatprep.subr.mxu0 0.0
    %395 = vmatpush1.msra.mxu0 0.0
    %396 = vmatprep.subr.mxu0 0.0
    %397 = vmatpush1.msra.mxu0 0.0
    %398 = vmatprep.subr.mxu0 0.0
    %399 = vmatpush1.msra.mxu0 0.0
    %400 = vmatprep.subr.mxu0 0.0
    %401 = vmatpush1.msra.mxu0 0.0
    %402 = vmatprep.subr.mxu0 0.0
    %403 = vmatpush1.msra.mxu0 0.0
    %404 = vmatprep.subr.mxu0 0.0
    %405 = vmatpush1.msra.mxu0 0.0
    %406 = vmatprep.subr.mxu0 0.0
    %407 = vmatpush1.msra.mxu0 0.0
    %408 = vmatprep.subr.mxu0 0.0
    %409 = vmatpush1.msra.mxu0 0.0
    %410 = vmatprep.subr.mxu0 0.0
    %411 = vmatpush1.msra.mxu0 0.0
    %412 = vmatprep.subr.mxu0 0.0
    %413 = vmatpush1.msra.mxu0 0.0
    %414 = vmatprep.subr.mxu0 0.0
    %415 = vmatpush1.msra.mxu0 0.0
    %416 = vmatprep.subr.mxu0 0.0
    %417 = vmatpush1.msra.mxu0 0.0
    %418 = vmatprep.subr.mxu0 0.0
    %419 = vmatpush1.msra.mxu0 0.0
    %420 = vmatprep.subr.mxu0 0.0
    %421 = vmatpush1.msra.mxu0 0.0
    %422 = vmatprep.subr.mxu0 0.0
    %423 = vmatpush1.msra.mxu0 0.0
    %424 = vmatprep.subr.mxu0 0.0
    %425 = vmatpush1.msra.mxu0 0.0
    %426 = vmatprep.subr.mxu0 0.0
    %427 = vmatpush1.msra.mxu0 0.0
    %428 = vmatprep.subr.mxu0 0.0
    %429 = vmatpush1.msra.mxu0 0.0
    %430 = vmatprep.mubr.f32.mxu0 0.0
    %v431 = vand.u32 %v84, 4294901760
    %v432 = vsub.f32 %v84, %v431
    %v433 = vand.u32 %v432, 4294901760
    %434 = vmatmul.mubr.f32.gmra.mrb[0].mxu0 %v433
    %v435 = vpop.f32.mrb[0].mxu0
    %v436 = vadd.f32 %v352, %v435
    %v437 = vpop.f32.mrb[0].mxu0
    %438 = vmatprep.mubr.f32.mxu0 0.0
    %v439 = vand.u32 %v87, 4294901760
    %v440 = vsub.f32 %v87, %v439
    %v441 = vand.u32 %v440, 4294901760
    %442 = vmatmul.mubr.f32.gmra.mrb[0].mxu0 %v441
    %v443 = vpop.f32.mrb[0].mxu0
    %v444 = vadd.f32 %v359, %v443
    %v445 = vpop.f32.mrb[0].mxu0
    %446 = vdwg.mxu0
    %447 = vmatprep.subr.mxu0 0.0
    %v448 = vand.u32 %v78, 4294901760
    %v449 = vsub.f32 %v78, %v448
    %v450 = vand.u32 %v449, 4294901760
    %451 = vmatpush1.msra.mxu0 %v450
    %452 = vmatprep.subr.mxu0 0.0
    %v453 = vand.u32 %v79, 4294901760
    %v454 = vsub.f32 %v79, %v453
    %v455 = vand.u32 %v454, 4294901760
    %456 = vmatpush1.msra.mxu0 %v455
    %457 = vmatprep.subr.mxu0 0.0
    %v458 = vand.u32 %v80, 4294901760
    %v459 = vsub.f32 %v80, %v458
    %v460 = vand.u32 %v459, 4294901760
    %461 = vmatpush1.msra.mxu0 %v460
    %462 = vmatprep.subr.mxu0 0.0
    %v463 = vand.u32 %v81, 4294901760
    %v464 = vsub.f32 %v81, %v463
    %v465 = vand.u32 %v464, 4294901760
    %466 = vmatpush1.msra.mxu0 %v465
    %467 = vmatprep.subr.mxu0 0.0
    %468 = vmatpush1.msra.mxu0 0.0
    %469 = vmatprep.subr.mxu0 0.0
    %470 = vmatpush1.msra.mxu0 0.0
    %471 = vmatprep.subr.mxu0 0.0
    %472 = vmatpush1.msra.mxu0 0.0
    %473 = vmatprep.subr.mxu0 0.0
    %474 = vmatpush1.msra.mxu0 0.0
    %475 = vmatprep.subr.mxu0 0.0
    %476 = vmatpush1.msra.mxu0 0.0
    %477 = vmatprep.subr.mxu0 0.0
    %478 = vmatpush1.msra.mxu0 0.0
    %479 = vmatprep.subr.mxu0 0.0
    %480 = vmatpush1.msra.mxu0 0.0
    %481 = vmatprep.subr.mxu0 0.0
    %482 = vmatpush1.msra.mxu0 0.0
    %483 = vmatprep.subr.mxu0 0.0
    %484 = vmatpush1.msra.mxu0 0.0
    %485 = vmatprep.subr.mxu0 0.0
    %486 = vmatpush1.msra.mxu0 0.0
    %487 = vmatprep.subr.mxu0 0.0
    %488 = vmatpush1.msra.mxu0 0.0
    %489 = vmatprep.subr.mxu0 0.0
    %490 = vmatpush1.msra.mxu0 0.0
    %491 = vmatprep.subr.mxu0 0.0
    %492 = vmatpush1.msra.mxu0 0.0
    %493 = vmatprep.subr.mxu0 0.0
    %494 = vmatpush1.msra.mxu0 0.0
    %495 = vmatprep.subr.mxu0 0.0
    %496 = vmatpush1.msra.mxu0 0.0
    %497 = vmatprep.subr.mxu0 0.0
    %498 = vmatpush1.msra.mxu0 0.0
    %499 = vmatprep.subr.mxu0 0.0
    %500 = vmatpush1.msra.mxu0 0.0
    %501 = vmatprep.subr.mxu0 0.0
    %502 = vmatpush1.msra.mxu0 0.0
    %503 = vmatprep.subr.mxu0 0.0
    %504 = vmatpush1.msra.mxu0 0.0
    %505 = vmatprep.subr.mxu0 0.0
    %506 = vmatpush1.msra.mxu0 0.0
    %507 = vmatprep.subr.mxu0 0.0
    %508 = vmatpush1.msra.mxu0 0.0
    %509 = vmatprep.subr.mxu0 0.0
    %510 = vmatpush1.msra.mxu0 0.0
    %511 = vmatprep.subr.mxu0 0.0
    %512 = vmatpush1.msra.mxu0 0.0
    %513 = vmatprep.subr.mxu0 0.0
    %514 = vmatpush1.msra.mxu0 0.0
    %515 = vmatprep.subr.mxu0 0.0
    %516 = vmatpush1.msra.mxu0 0.0
    %517 = vmatprep.subr.mxu0 0.0
    %518 = vmatpush1.msra.mxu0 0.0
    %519 = vmatprep.subr.mxu0 0.0
    %520 = vmatpush1.msra.mxu0 0.0
    %521 = vmatprep.subr.mxu0 0.0
    %522 = vmatpush1.msra.mxu0 0.0
    %523 = vmatprep.mubr.f32.mxu0 0.0
    %v524 = vand.u32 %v84, 4294901760
    %525 = vmatmul.mubr.f32.gmra.mrb[0].mxu0 %v524
    %v526 = vpop.f32.mrb[0].mxu0
    %v527 = vadd.f32 %v436, %v526
    %v528 = vpop.f32.mrb[0].mxu0
    %529 = vmatprep.mubr.f32.mxu0 0.0
    %v530 = vand.u32 %v87, 4294901760
    %531 = vmatmul.mubr.f32.gmra.mrb[0].mxu0 %v530
    %v532 = vpop.f32.mrb[0].mxu0
    %v533 = vadd.f32 %v444, %v532
    %v534 = vpop.f32.mrb[0].mxu0
    %535 = vdwg.mxu0
    %536 = vmatprep.subr.mxu0 0.0
    %v537 = vand.u32 %v78, 4294901760
    %538 = vmatpush1.msra.mxu0 %v537
    %539 = vmatprep.subr.mxu0 0.0
    %v540 = vand.u32 %v79, 4294901760
    %541 = vmatpush1.msra.mxu0 %v540
    %542 = vmatprep.subr.mxu0 0.0
    %v543 = vand.u32 %v80, 4294901760
    %544 = vmatpush1.msra.mxu0 %v543
    %545 = vmatprep.subr.mxu0 0.0
    %v546 = vand.u32 %v81, 4294901760
    %547 = vmatpush1.msra.mxu0 %v546
    %548 = vmatprep.subr.mxu0 0.0
    %549 = vmatpush1.msra.mxu0 0.0
    %550 = vmatprep.subr.mxu0 0.0
    %551 = vmatpush1.msra.mxu0 0.0
    %552 = vmatprep.subr.mxu0 0.0
    %553 = vmatpush1.msra.mxu0 0.0
    %554 = vmatprep.subr.mxu0 0.0
    %555 = vmatpush1.msra.mxu0 0.0
    %556 = vmatprep.subr.mxu0 0.0
    %557 = vmatpush1.msra.mxu0 0.0
    %558 = vmatprep.subr.mxu0 0.0
    %559 = vmatpush1.msra.mxu0 0.0
    %560 = vmatprep.subr.mxu0 0.0
    %561 = vmatpush1.msra.mxu0 0.0
    %562 = vmatprep.subr.mxu0 0.0
    %563 = vmatpush1.msra.mxu0 0.0
    %564 = vmatprep.subr.mxu0 0.0
    %565 = vmatpush1.msra.mxu0 0.0
    %566 = vmatprep.subr.mxu0 0.0
    %567 = vmatpush1.msra.mxu0 0.0
    %568 = vmatprep.subr.mxu0 0.0
    %569 = vmatpush1.msra.mxu0 0.0
    %570 = vmatprep.subr.mxu0 0.0
    %571 = vmatpush1.msra.mxu0 0.0
    %572 = vmatprep.subr.mxu0 0.0
    %573 = vmatpush1.msra.mxu0 0.0
    %574 = vmatprep.subr.mxu0 0.0
    %575 = vmatpush1.msra.mxu0 0.0
    %576 = vmatprep.subr.mxu0 0.0
    %577 = vmatpush1.msra.mxu0 0.0
    %578 = vmatprep.subr.mxu0 0.0
    %579 = vmatpush1.msra.mxu0 0.0
    %580 = vmatprep.subr.mxu0 0.0
    %581 = vmatpush1.msra.mxu0 0.0
    %582 = vmatprep.subr.mxu0 0.0
    %583 = vmatpush1.msra.mxu0 0.0
    %584 = vmatprep.subr.mxu0 0.0
    %585 = vmatpush1.msra.mxu0 0.0
    %586 = vmatprep.subr.mxu0 0.0
    %587 = vmatpush1.msra.mxu0 0.0
    %588 = vmatprep.subr.mxu0 0.0
    %589 = vmatpush1.msra.mxu0 0.0
    %590 = vmatprep.subr.mxu0 0.0
    %591 = vmatpush1.msra.mxu0 0.0
    %592 = vmatprep.subr.mxu0 0.0
    %593 = vmatpush1.msra.mxu0 0.0
    %594 = vmatprep.subr.mxu0 0.0
    %595 = vmatpush1.msra.mxu0 0.0
    %596 = vmatprep.subr.mxu0 0.0
    %597 = vmatpush1.msra.mxu0 0.0
    %598 = vmatprep.subr.mxu0 0.0
    %599 = vmatpush1.msra.mxu0 0.0
    %600 = vmatprep.subr.mxu0 0.0
    %601 = vmatpush1.msra.mxu0 0.0
    %602 = vmatprep.subr.mxu0 0.0
    %603 = vmatpush1.msra.mxu0 0.0
    %604 = vmatprep.mubr.f32.mxu0 0.0
    %v605 = vand.u32 %v84, 4294901760
    %606 = vmatmul.mubr.f32.gmra.mrb[0].mxu0 %v605
    %v607 = vpop.f32.mrb[0].mxu0
    %v608 = vadd.f32 %v527, %v607
    %v609 = vpop.f32.mrb[0].mxu0
    %610 = vmatprep.mubr.f32.mxu0 0.0
    %v611 = vand.u32 %v87, 4294901760
    %612 = vmatmul.mubr.f32.gmra.mrb[0].mxu0 %v611
    %v613 = vpop.f32.mrb[0].mxu0
    %v614 = vadd.f32 %v533, %v613
    %v615 = vpop.f32.mrb[0].mxu0
    %616 = vdwg.mxu0
    %619 = vrot.lane.b32.xlu0 %v608, 64
    %v620 = vpop.permute.xlu0 %619
    %621 = vrot.lane.b32.xlu0 %v614, 64
    %v622 = vpop.permute.xlu0 %621
    %625 = vxpose.xlu0.b32.start [1/16] %v620, 128
    %626 = vxpose.xlu0.b32.cont [2/16] %v622, 128
    %627 = vxpose.xlu0.b32.cont [3/16] 0.0, 128
    %628 = vxpose.xlu0.b32.cont [4/16] 0.0, 128
    %629 = vxpose.xlu0.b32.cont [5/16] 0.0, 128
    %630 = vxpose.xlu0.b32.cont [6/16] 0.0, 128
    %631 = vxpose.xlu0.b32.cont [7/16] 0.0, 128
    %632 = vxpose.xlu0.b32.cont [8/16] 0.0, 128
    %633 = vxpose.xlu0.b32.cont [9/16] 0.0, 128
    %634 = vxpose.xlu0.b32.cont [10/16] 0.0, 128
    %635 = vxpose.xlu0.b32.cont [11/16] 0.0, 128
    %636 = vxpose.xlu0.b32.cont [12/16] 0.0, 128
    %637 = vxpose.xlu0.b32.cont [13/16] 0.0, 128
    %638 = vxpose.xlu0.b32.cont [14/16] 0.0, 128
    %639 = vxpose.xlu0.b32.cont [15/16] 0.0, 128
    %640 = vxpose.xlu0.b32.end [16/16] 0.0, 128
    %v641 = vpop.trf.xlu0
    %v642 = vpop.trf.xlu0
    %v643 = vpop.trf.xlu0
    %v644 = vpop.trf.xlu0
    %v645 = vpop.trf.xlu0
    %v646 = vpop.trf.xlu0
    %v647 = vpop.trf.xlu0
    %v648 = vpop.trf.xlu0
    %v649 = vpop.trf.xlu0
    %v650 = vpop.trf.xlu0
    %v651 = vpop.trf.xlu0
    %v652 = vpop.trf.xlu0
    %v653 = vpop.trf.xlu0
    %v654 = vpop.trf.xlu0
    %v655 = vpop.trf.xlu0
    %v656 = vpop.trf.xlu0
    %v657 = vld [vmem:[#allocation8] sm:$0xff]
    %v658 = vld [vmem:[#allocation8 + $0x8] sm:$0xff]
    %v659 = vld [vmem:[#allocation8 + $0x10] sm:$0xff]
    %v660 = vld [vmem:[#allocation8 + $0x18] sm:$0xff]
    %661 = vmatprep.subr.mxu0 0.0
    %v662 = vand.u32 %v657, 4294901760
    %663 = vmatpush1.msra.mxu0 %v662
    %664 = vmatprep.subr.mxu0 0.0
    %v665 = vand.u32 %v658, 4294901760
    %666 = vmatpush1.msra.mxu0 %v665
    %667 = vmatprep.subr.mxu0 0.0
    %v668 = vand.u32 %v659, 4294901760
    %669 = vmatpush1.msra.mxu0 %v668
    %670 = vmatprep.subr.mxu0 0.0
    %v671 = vand.u32 %v660, 4294901760
    %672 = vmatpush1.msra.mxu0 %v671
    %673 = vmatprep.subr.mxu0 0.0
    %674 = vmatpush1.msra.mxu0 0.0
    %675 = vmatprep.subr.mxu0 0.0
    %676 = vmatpush1.msra.mxu0 0.0
    %677 = vmatprep.subr.mxu0 0.0
    %678 = vmatpush1.msra.mxu0 0.0
    %679 = vmatprep.subr.mxu0 0.0
    %680 = vmatpush1.msra.mxu0 0.0
    %681 = vmatprep.subr.mxu0 0.0
    %682 = vmatpush1.msra.mxu0 0.0
    %683 = vmatprep.subr.mxu0 0.0
    %684 = vmatpush1.msra.mxu0 0.0
    %685 = vmatprep.subr.mxu0 0.0
    %686 = vmatpush1.msra.mxu0 0.0
    %687 = vmatprep.subr.mxu0 0.0
    %688 = vmatpush1.msra.mxu0 0.0
    %689 = vmatprep.subr.mxu0 0.0
    %690 = vmatpush1.msra.mxu0 0.0
    %691 = vmatprep.subr.mxu0 0.0
    %692 = vmatpush1.msra.mxu0 0.0
    %693 = vmatprep.subr.mxu0 0.0
    %694 = vmatpush1.msra.mxu0 0.0
    %695 = vmatprep.subr.mxu0 0.0
    %696 = vmatpush1.msra.mxu0 0.0
    %697 = vmatprep.subr.mxu0 0.0
    %698 = vmatpush1.msra.mxu0 0.0
    %699 = vmatprep.subr.mxu0 0.0
    %700 = vmatpush1.msra.mxu0 0.0
    %701 = vmatprep.subr.mxu0 0.0
    %702 = vmatpush1.msra.mxu0 0.0
    %703 = vmatprep.subr.mxu0 0.0
    %704 = vmatpush1.msra.mxu0 0.0
    %705 = vmatprep.subr.mxu0 0.0
    %706 = vmatpush1.msra.mxu0 0.0
    %707 = vmatprep.subr.mxu0 0.0
    %708 = vmatpush1.msra.mxu0 0.0
    %709 = vmatprep.subr.mxu0 0.0
    %710 = vmatpush1.msra.mxu0 0.0
    %711 = vmatprep.subr.mxu0 0.0
    %712 = vmatpush1.msra.mxu0 0.0
    %713 = vmatprep.subr.mxu0 0.0
    %714 = vmatpush1.msra.mxu0 0.0
    %715 = vmatprep.subr.mxu0 0.0
    %716 = vmatpush1.msra.mxu0 0.0
    %717 = vmatprep.subr.mxu0 0.0
    %718 = vmatpush1.msra.mxu0 0.0
    %719 = vmatprep.subr.mxu0 0.0
    %720 = vmatpush1.msra.mxu0 0.0
    %721 = vmatprep.subr.mxu0 0.0
    %722 = vmatpush1.msra.mxu0 0.0
    %723 = vmatprep.subr.mxu0 0.0
    %724 = vmatpush1.msra.mxu0 0.0
    %725 = vmatprep.subr.mxu0 0.0
    %726 = vmatpush1.msra.mxu0 0.0
    %727 = vmatprep.subr.mxu0 0.0
    %728 = vmatpush1.msra.mxu0 0.0
    %729 = vmatprep.mubr.f32.mxu0 0.0
    %v730 = vand.u32 %v84, 4294901760
    %v731 = vsub.f32 %v84, %v730
    %v732 = vand.u32 %v731, 4294901760
    %v733 = vsub.f32 %v731, %v732
    %v734 = vand.u32 %v733, 4294901760
    %735 = vmatmul.mubr.f32.gmra.mrb[0].mxu0 %v734
    %v736 = vpop.f32.mrb[0].mxu0
    %v737 = vadd.f32 0.0, %v736
    %v738 = vpop.f32.mrb[0].mxu0
    %739 = vmatprep.mubr.f32.mxu0 0.0
    %v740 = vand.u32 %v87, 4294901760
    %v741 = vsub.f32 %v87, %v740
    %v742 = vand.u32 %v741, 4294901760
    %v743 = vsub.f32 %v741, %v742
    %v744 = vand.u32 %v743, 4294901760
    %745 = vmatmul.mubr.f32.gmra.mrb[0].mxu0 %v744
    %v746 = vpop.f32.mrb[0].mxu0
    %v747 = vadd.f32 0.0, %v746
    %v748 = vpop.f32.mrb[0].mxu0
    %749 = vdwg.mxu0
    %750 = vmatprep.subr.mxu0 0.0
    %v751 = vand.u32 %v657, 4294901760
    %v752 = vsub.f32 %v657, %v751
    %v753 = vand.u32 %v752, 4294901760
    %v754 = vsub.f32 %v752, %v753
    %v755 = vand.u32 %v754, 4294901760
    %756 = vmatpush1.msra.mxu0 %v755
    %757 = vmatprep.subr.mxu0 0.0
    %v758 = vand.u32 %v658, 4294901760
    %v759 = vsub.f32 %v658, %v758
    %v760 = vand.u32 %v759, 4294901760
    %v761 = vsub.f32 %v759, %v760
    %v762 = vand.u32 %v761, 4294901760
    %763 = vmatpush1.msra.mxu0 %v762
    %764 = vmatprep.subr.mxu0 0.0
    %v765 = vand.u32 %v659, 4294901760
    %v766 = vsub.f32 %v659, %v765
    %v767 = vand.u32 %v766, 4294901760
    %v768 = vsub.f32 %v766, %v767
    %v769 = vand.u32 %v768, 4294901760
    %770 = vmatpush1.msra.mxu0 %v769
    %771 = vmatprep.subr.mxu0 0.0
    %v772 = vand.u32 %v660, 4294901760
    %v773 = vsub.f32 %v660, %v772
    %v774 = vand.u32 %v773, 4294901760
    %v775 = vsub.f32 %v773, %v774
    %v776 = vand.u32 %v775, 4294901760
    %777 = vmatpush1.msra.mxu0 %v776
    %778 = vmatprep.subr.mxu0 0.0
    %779 = vmatpush1.msra.mxu0 0.0
    %780 = vmatprep.subr.mxu0 0.0
    %781 = vmatpush1.msra.mxu0 0.0
    %782 = vmatprep.subr.mxu0 0.0
    %783 = vmatpush1.msra.mxu0 0.0
    %784 = vmatprep.subr.mxu0 0.0
    %785 = vmatpush1.msra.mxu0 0.0
    %786 = vmatprep.subr.mxu0 0.0
    %787 = vmatpush1.msra.mxu0 0.0
    %788 = vmatprep.subr.mxu0 0.0
    %789 = vmatpush1.msra.mxu0 0.0
    %790 = vmatprep.subr.mxu0 0.0
    %791 = vmatpush1.msra.mxu0 0.0
    %792 = vmatprep.subr.mxu0 0.0
    %793 = vmatpush1.msra.mxu0 0.0
    %794 = vmatprep.subr.mxu0 0.0
    %795 = vmatpush1.msra.mxu0 0.0
    %796 = vmatprep.subr.mxu0 0.0
    %797 = vmatpush1.msra.mxu0 0.0
    %798 = vmatprep.subr.mxu0 0.0
    %799 = vmatpush1.msra.mxu0 0.0
    %800 = vmatprep.subr.mxu0 0.0
    %801 = vmatpush1.msra.mxu0 0.0
    %802 = vmatprep.subr.mxu0 0.0
    %803 = vmatpush1.msra.mxu0 0.0
    %804 = vmatprep.subr.mxu0 0.0
    %805 = vmatpush1.msra.mxu0 0.0
    %806 = vmatprep.subr.mxu0 0.0
    %807 = vmatpush1.msra.mxu0 0.0
    %808 = vmatprep.subr.mxu0 0.0
    %809 = vmatpush1.msra.mxu0 0.0
    %810 = vmatprep.subr.mxu0 0.0
    %811 = vmatpush1.msra.mxu0 0.0
    %812 = vmatprep.subr.mxu0 0.0
    %813 = vmatpush1.msra.mxu0 0.0
    %814 = vmatprep.subr.mxu0 0.0
    %815 = vmatpush1.msra.mxu0 0.0
    %816 = vmatprep.subr.mxu0 0.0
    %817 = vmatpush1.msra.mxu0 0.0
    %818 = vmatprep.subr.mxu0 0.0
    %819 = vmatpush1.msra.mxu0 0.0
    %820 = vmatprep.subr.mxu0 0.0
    %821 = vmatpush1.msra.mxu0 0.0
    %822 = vmatprep.subr.mxu0 0.0
    %823 = vmatpush1.msra.mxu0 0.0
    %824 = vmatprep.subr.mxu0 0.0
    %825 = vmatpush1.msra.mxu0 0.0
    %826 = vmatprep.subr.mxu0 0.0
    %827 = vmatpush1.msra.mxu0 0.0
    %828 = vmatprep.subr.mxu0 0.0
    %829 = vmatpush1.msra.mxu0 0.0
    %830 = vmatprep.subr.mxu0 0.0
    %831 = vmatpush1.msra.mxu0 0.0
    %832 = vmatprep.subr.mxu0 0.0
    %833 = vmatpush1.msra.mxu0 0.0
    %834 = vmatprep.mubr.f32.mxu0 0.0
    %v835 = vand.u32 %v84, 4294901760
    %836 = vmatmul.mubr.f32.gmra.mrb[0].mxu0 %v835
    %v837 = vpop.f32.mrb[0].mxu0
    %v838 = vadd.f32 %v737, %v837
    %v839 = vpop.f32.mrb[0].mxu0
    %840 = vmatprep.mubr.f32.mxu0 0.0
    %v841 = vand.u32 %v87, 4294901760
    %842 = vmatmul.mubr.f32.gmra.mrb[0].mxu0 %v841
    %v843 = vpop.f32.mrb[0].mxu0
    %v844 = vadd.f32 %v747, %v843
    %v845 = vpop.f32.mrb[0].mxu0
    %846 = vdwg.mxu0
    %847 = vmatprep.subr.mxu0 0.0
    %v848 = vand.u32 %v657, 4294901760
    %v849 = vsub.f32 %v657, %v848
    %850 = vmatpush1.msra.mxu0 %v849
    %851 = vmatprep.subr.mxu0 0.0
    %v852 = vand.u32 %v658, 4294901760
    %v853 = vsub.f32 %v658, %v852
    %854 = vmatpush1.msra.mxu0 %v853
    %855 = vmatprep.subr.mxu0 0.0
    %v856 = vand.u32 %v659, 4294901760
    %v857 = vsub.f32 %v659, %v856
    %858 = vmatpush1.msra.mxu0 %v857
    %859 = vmatprep.subr.mxu0 0.0
    %v860 = vand.u32 %v660, 4294901760
    %v861 = vsub.f32 %v660, %v860
    %862 = vmatpush1.msra.mxu0 %v861
    %863 = vmatprep.subr.mxu0 0.0
    %864 = vmatpush1.msra.mxu0 0.0
    %865 = vmatprep.subr.mxu0 0.0
    %866 = vmatpush1.msra.mxu0 0.0
    %867 = vmatprep.subr.mxu0 0.0
    %868 = vmatpush1.msra.mxu0 0.0
    %869 = vmatprep.subr.mxu0 0.0
    %870 = vmatpush1.msra.mxu0 0.0
    %871 = vmatprep.subr.mxu0 0.0
    %872 = vmatpush1.msra.mxu0 0.0
    %873 = vmatprep.subr.mxu0 0.0
    %874 = vmatpush1.msra.mxu0 0.0
    %875 = vmatprep.subr.mxu0 0.0
    %876 = vmatpush1.msra.mxu0 0.0
    %877 = vmatprep.subr.mxu0 0.0
    %878 = vmatpush1.msra.mxu0 0.0
    %879 = vmatprep.subr.mxu0 0.0
    %880 = vmatpush1.msra.mxu0 0.0
    %881 = vmatprep.subr.mxu0 0.0
    %882 = vmatpush1.msra.mxu0 0.0
    %883 = vmatprep.subr.mxu0 0.0
    %884 = vmatpush1.msra.mxu0 0.0
    %885 = vmatprep.subr.mxu0 0.0
    %886 = vmatpush1.msra.mxu0 0.0
    %887 = vmatprep.subr.mxu0 0.0
    %888 = vmatpush1.msra.mxu0 0.0
    %889 = vmatprep.subr.mxu0 0.0
    %890 = vmatpush1.msra.mxu0 0.0
    %891 = vmatprep.subr.mxu0 0.0
    %892 = vmatpush1.msra.mxu0 0.0
    %893 = vmatprep.subr.mxu0 0.0
    %894 = vmatpush1.msra.mxu0 0.0
    %895 = vmatprep.subr.mxu0 0.0
    %896 = vmatpush1.msra.mxu0 0.0
    %897 = vmatprep.subr.mxu0 0.0
    %898 = vmatpush1.msra.mxu0 0.0
    %899 = vmatprep.subr.mxu0 0.0
    %900 = vmatpush1.msra.mxu0 0.0
    %901 = vmatprep.subr.mxu0 0.0
    %902 = vmatpush1.msra.mxu0 0.0
    %903 = vmatprep.subr.mxu0 0.0
    %904 = vmatpush1.msra.mxu0 0.0
    %905 = vmatprep.subr.mxu0 0.0
    %906 = vmatpush1.msra.mxu0 0.0
    %907 = vmatprep.subr.mxu0 0.0
    %908 = vmatpush1.msra.mxu0 0.0
    %909 = vmatprep.subr.mxu0 0.0
    %910 = vmatpush1.msra.mxu0 0.0
    %911 = vmatprep.subr.mxu0 0.0
    %912 = vmatpush1.msra.mxu0 0.0
    %913 = vmatprep.subr.mxu0 0.0
    %914 = vmatpush1.msra.mxu0 0.0
    %915 = vmatprep.subr.mxu0 0.0
    %916 = vmatpush1.msra.mxu0 0.0
    %917 = vmatprep.subr.mxu0 0.0
    %918 = vmatpush1.msra.mxu0 0.0
    %919 = vmatprep.mubr.f32.mxu0 0.0
    %v920 = vand.u32 %v84, 4294901760
    %v921 = vsub.f32 %v84, %v920
    %922 = vmatmul.mubr.f32.gmra.mrb[0].mxu0 %v921
    %v923 = vpop.f32.mrb[0].mxu0
    %v924 = vadd.f32 %v838, %v923
    %v925 = vpop.f32.mrb[0].mxu0
    %926 = vmatprep.mubr.f32.mxu0 0.0
    %v927 = vand.u32 %v87, 4294901760
    %v928 = vsub.f32 %v87, %v927
    %929 = vmatmul.mubr.f32.gmra.mrb[0].mxu0 %v928
    %v930 = vpop.f32.mrb[0].mxu0
    %v931 = vadd.f32 %v844, %v930
    %v932 = vpop.f32.mrb[0].mxu0
    %933 = vdwg.mxu0
    %934 = vmatprep.subr.mxu0 0.0
    %v935 = vand.u32 %v657, 4294901760
    %936 = vmatpush1.msra.mxu0 %v935
    %937 = vmatprep.subr.mxu0 0.0
    %v938 = vand.u32 %v658, 4294901760
    %939 = vmatpush1.msra.mxu0 %v938
    %940 = vmatprep.subr.mxu0 0.0
    %v941 = vand.u32 %v659, 4294901760
    %942 = vmatpush1.msra.mxu0 %v941
    %943 = vmatprep.subr.mxu0 0.0
    %v944 = vand.u32 %v660, 4294901760
    %945 = vmatpush1.msra.mxu0 %v944
    %946 = vmatprep.subr.mxu0 0.0
    %947 = vmatpush1.msra.mxu0 0.0
    %948 = vmatprep.subr.mxu0 0.0
    %949 = vmatpush1.msra.mxu0 0.0
    %950 = vmatprep.subr.mxu0 0.0
    %951 = vmatpush1.msra.mxu0 0.0
    %952 = vmatprep.subr.mxu0 0.0
    %953 = vmatpush1.msra.mxu0 0.0
    %954 = vmatprep.subr.mxu0 0.0
    %955 = vmatpush1.msra.mxu0 0.0
    %956 = vmatprep.subr.mxu0 0.0
    %957 = vmatpush1.msra.mxu0 0.0
    %958 = vmatprep.subr.mxu0 0.0
    %959 = vmatpush1.msra.mxu0 0.0
    %960 = vmatprep.subr.mxu0 0.0
    %961 = vmatpush1.msra.mxu0 0.0
    %962 = vmatprep.subr.mxu0 0.0
    %963 = vmatpush1.msra.mxu0 0.0
    %964 = vmatprep.subr.mxu0 0.0
    %965 = vmatpush1.msra.mxu0 0.0
    %966 = vmatprep.subr.mxu0 0.0
    %967 = vmatpush1.msra.mxu0 0.0
    %968 = vmatprep.subr.mxu0 0.0
    %969 = vmatpush1.msra.mxu0 0.0
    %970 = vmatprep.subr.mxu0 0.0
    %971 = vmatpush1.msra.mxu0 0.0
    %972 = vmatprep.subr.mxu0 0.0
    %973 = vmatpush1.msra.mxu0 0.0
    %974 = vmatprep.subr.mxu0 0.0
    %975 = vmatpush1.msra.mxu0 0.0
    %976 = vmatprep.subr.mxu0 0.0
    %977 = vmatpush1.msra.mxu0 0.0
    %978 = vmatprep.subr.mxu0 0.0
    %979 = vmatpush1.msra.mxu0 0.0
    %980 = vmatprep.subr.mxu0 0.0
    %981 = vmatpush1.msra.mxu0 0.0
    %982 = vmatprep.subr.mxu0 0.0
    %983 = vmatpush1.msra.mxu0 0.0
    %984 = vmatprep.subr.mxu0 0.0
    %985 = vmatpush1.msra.mxu0 0.0
    %986 = vmatprep.subr.mxu0 0.0
    %987 = vmatpush1.msra.mxu0 0.0
    %988 = vmatprep.subr.mxu0 0.0
    %989 = vmatpush1.msra.mxu0 0.0
    %990 = vmatprep.subr.mxu0 0.0
    %991 = vmatpush1.msra.mxu0 0.0
    %992 = vmatprep.subr.mxu0 0.0
    %993 = vmatpush1.msra.mxu0 0.0
    %994 = vmatprep.subr.mxu0 0.0
    %995 = vmatpush1.msra.mxu0 0.0
    %996 = vmatprep.subr.mxu0 0.0
    %997 = vmatpush1.msra.mxu0 0.0
    %998 = vmatprep.subr.mxu0 0.0
    %999 = vmatpush1.msra.mxu0 0.0
    %1000 = vmatprep.subr.mxu0 0.0
    %1001 = vmatpush1.msra.mxu0 0.0
    %1002 = vmatprep.mubr.f32.mxu0 0.0
    %v1003 = vand.u32 %v84, 4294901760
    %v1004 = vsub.f32 %v84, %v1003
    %v1005 = vand.u32 %v1004, 4294901760
    %1006 = vmatmul.mubr.f32.gmra.mrb[0].mxu0 %v1005
    %v1007 = vpop.f32.mrb[0].mxu0
    %v1008 = vadd.f32 %v924, %v1007
    %v1009 = vpop.f32.mrb[0].mxu0
    %1010 = vmatprep.mubr.f32.mxu0 0.0
    %v1011 = vand.u32 %v87, 4294901760
    %v1012 = vsub.f32 %v87, %v1011
    %v1013 = vand.u32 %v1012, 4294901760
    %1014 = vmatmul.mubr.f32.gmra.mrb[0].mxu0 %v1013
    %v1015 = vpop.f32.mrb[0].mxu0
    %v1016 = vadd.f32 %v931, %v1015
    %v1017 = vpop.f32.mrb[0].mxu0
    %1018 = vdwg.mxu0
    %1019 = vmatprep.subr.mxu0 0.0
    %v1020 = vand.u32 %v657, 4294901760
    %v1021 = vsub.f32 %v657, %v1020
    %v1022 = vand.u32 %v1021, 4294901760
    %1023 = vmatpush1.msra.mxu0 %v1022
    %1024 = vmatprep.subr.mxu0 0.0
    %v1025 = vand.u32 %v658, 4294901760
    %v1026 = vsub.f32 %v658, %v1025
    %v1027 = vand.u32 %v1026, 4294901760
    %1028 = vmatpush1.msra.mxu0 %v1027
    %1029 = vmatprep.subr.mxu0 0.0
    %v1030 = vand.u32 %v659, 4294901760
    %v1031 = vsub.f32 %v659, %v1030
    %v1032 = vand.u32 %v1031, 4294901760
    %1033 = vmatpush1.msra.mxu0 %v1032
    %1034 = vmatprep.subr.mxu0 0.0
    %v1035 = vand.u32 %v660, 4294901760
    %v1036 = vsub.f32 %v660, %v1035
    %v1037 = vand.u32 %v1036, 4294901760
    %1038 = vmatpush1.msra.mxu0 %v1037
    %1039 = vmatprep.subr.mxu0 0.0
    %1040 = vmatpush1.msra.mxu0 0.0
    %1041 = vmatprep.subr.mxu0 0.0
    %1042 = vmatpush1.msra.mxu0 0.0
    %1043 = vmatprep.subr.mxu0 0.0
    %1044 = vmatpush1.msra.mxu0 0.0
    %1045 = vmatprep.subr.mxu0 0.0
    %1046 = vmatpush1.msra.mxu0 0.0
    %1047 = vmatprep.subr.mxu0 0.0
    %1048 = vmatpush1.msra.mxu0 0.0
    %1049 = vmatprep.subr.mxu0 0.0
    %1050 = vmatpush1.msra.mxu0 0.0
    %1051 = vmatprep.subr.mxu0 0.0
    %1052 = vmatpush1.msra.mxu0 0.0
    %1053 = vmatprep.subr.mxu0 0.0
    %1054 = vmatpush1.msra.mxu0 0.0
    %1055 = vmatprep.subr.mxu0 0.0
    %1056 = vmatpush1.msra.mxu0 0.0
    %1057 = vmatprep.subr.mxu0 0.0
    %1058 = vmatpush1.msra.mxu0 0.0
    %1059 = vmatprep.subr.mxu0 0.0
    %1060 = vmatpush1.msra.mxu0 0.0
    %1061 = vmatprep.subr.mxu0 0.0
    %1062 = vmatpush1.msra.mxu0 0.0
    %1063 = vmatprep.subr.mxu0 0.0
    %1064 = vmatpush1.msra.mxu0 0.0
    %1065 = vmatprep.subr.mxu0 0.0
    %1066 = vmatpush1.msra.mxu0 0.0
    %1067 = vmatprep.subr.mxu0 0.0
    %1068 = vmatpush1.msra.mxu0 0.0
    %1069 = vmatprep.subr.mxu0 0.0
    %1070 = vmatpush1.msra.mxu0 0.0
    %1071 = vmatprep.subr.mxu0 0.0
    %1072 = vmatpush1.msra.mxu0 0.0
    %1073 = vmatprep.subr.mxu0 0.0
    %1074 = vmatpush1.msra.mxu0 0.0
    %1075 = vmatprep.subr.mxu0 0.0
    %1076 = vmatpush1.msra.mxu0 0.0
    %1077 = vmatprep.subr.mxu0 0.0
    %1078 = vmatpush1.msra.mxu0 0.0
    %1079 = vmatprep.subr.mxu0 0.0
    %1080 = vmatpush1.msra.mxu0 0.0
    %1081 = vmatprep.subr.mxu0 0.0
    %1082 = vmatpush1.msra.mxu0 0.0
    %1083 = vmatprep.subr.mxu0 0.0
    %1084 = vmatpush1.msra.mxu0 0.0
    %1085 = vmatprep.subr.mxu0 0.0
    %1086 = vmatpush1.msra.mxu0 0.0
    %1087 = vmatprep.subr.mxu0 0.0
    %1088 = vmatpush1.msra.mxu0 0.0
    %1089 = vmatprep.subr.mxu0 0.0
    %1090 = vmatpush1.msra.mxu0 0.0
    %1091 = vmatprep.subr.mxu0 0.0
    %1092 = vmatpush1.msra.mxu0 0.0
    %1093 = vmatprep.subr.mxu0 0.0
    %1094 = vmatpush1.msra.mxu0 0.0
    %1095 = vmatprep.mubr.f32.mxu0 0.0
    %v1096 = vand.u32 %v84, 4294901760
    %1097 = vmatmul.mubr.f32.gmra.mrb[0].mxu0 %v1096
    %v1098 = vpop.f32.mrb[0].mxu0
    %v1099 = vadd.f32 %v1008, %v1098
    %v1100 = vpop.f32.mrb[0].mxu0
    %1101 = vmatprep.mubr.f32.mxu0 0.0
    %v1102 = vand.u32 %v87, 4294901760
    %1103 = vmatmul.mubr.f32.gmra.mrb[0].mxu0 %v1102
    %v1104 = vpop.f32.mrb[0].mxu0
    %v1105 = vadd.f32 %v1016, %v1104
    %v1106 = vpop.f32.mrb[0].mxu0
    %1107 = vdwg.mxu0
    %1108 = vmatprep.subr.mxu0 0.0
    %v1109 = vand.u32 %v657, 4294901760
    %1110 = vmatpush1.msra.mxu0 %v1109
    %1111 = vmatprep.subr.mxu0 0.0
    %v1112 = vand.u32 %v658, 4294901760
    %1113 = vmatpush1.msra.mxu0 %v1112
    %1114 = vmatprep.subr.mxu0 0.0
    %v1115 = vand.u32 %v659, 4294901760
    %1116 = vmatpush1.msra.mxu0 %v1115
    %1117 = vmatprep.subr.mxu0 0.0
    %v1118 = vand.u32 %v660, 4294901760
    %1119 = vmatpush1.msra.mxu0 %v1118
    %1120 = vmatprep.subr.mxu0 0.0
    %1121 = vmatpush1.msra.mxu0 0.0
    %1122 = vmatprep.subr.mxu0 0.0
    %1123 = vmatpush1.msra.mxu0 0.0
    %1124 = vmatprep.subr.mxu0 0.0
    %1125 = vmatpush1.msra.mxu0 0.0
    %1126 = vmatprep.subr.mxu0 0.0
    %1127 = vmatpush1.msra.mxu0 0.0
    %1128 = vmatprep.subr.mxu0 0.0
    %1129 = vmatpush1.msra.mxu0 0.0
    %1130 = vmatprep.subr.mxu0 0.0
    %1131 = vmatpush1.msra.mxu0 0.0
    %1132 = vmatprep.subr.mxu0 0.0
    %1133 = vmatpush1.msra.mxu0 0.0
    %1134 = vmatprep.subr.mxu0 0.0
    %1135 = vmatpush1.msra.mxu0 0.0
    %1136 = vmatprep.subr.mxu0 0.0
    %1137 = vmatpush1.msra.mxu0 0.0
    %1138 = vmatprep.subr.mxu0 0.0
    %1139 = vmatpush1.msra.mxu0 0.0
    %1140 = vmatprep.subr.mxu0 0.0
    %1141 = vmatpush1.msra.mxu0 0.0
    %1142 = vmatprep.subr.mxu0 0.0
    %1143 = vmatpush1.msra.mxu0 0.0
    %1144 = vmatprep.subr.mxu0 0.0
    %1145 = vmatpush1.msra.mxu0 0.0
    %1146 = vmatprep.subr.mxu0 0.0
    %1147 = vmatpush1.msra.mxu0 0.0
    %1148 = vmatprep.subr.mxu0 0.0
    %1149 = vmatpush1.msra.mxu0 0.0
    %1150 = vmatprep.subr.mxu0 0.0
    %1151 = vmatpush1.msra.mxu0 0.0
    %1152 = vmatprep.subr.mxu0 0.0
    %1153 = vmatpush1.msra.mxu0 0.0
    %1154 = vmatprep.subr.mxu0 0.0
    %1155 = vmatpush1.msra.mxu0 0.0
    %1156 = vmatprep.subr.mxu0 0.0
    %1157 = vmatpush1.msra.mxu0 0.0
    %1158 = vmatprep.subr.mxu0 0.0
    %1159 = vmatpush1.msra.mxu0 0.0
    %1160 = vmatprep.subr.mxu0 0.0
    %1161 = vmatpush1.msra.mxu0 0.0
    %1162 = vmatprep.subr.mxu0 0.0
    %1163 = vmatpush1.msra.mxu0 0.0
    %1164 = vmatprep.subr.mxu0 0.0
    %1165 = vmatpush1.msra.mxu0 0.0
    %1166 = vmatprep.subr.mxu0 0.0
    %1167 = vmatpush1.msra.mxu0 0.0
    %1168 = vmatprep.subr.mxu0 0.0
    %1169 = vmatpush1.msra.mxu0 0.0
    %1170 = vmatprep.subr.mxu0 0.0
    %1171 = vmatpush1.msra.mxu0 0.0
    %1172 = vmatprep.subr.mxu0 0.0
    %1173 = vmatpush1.msra.mxu0 0.0
    %1174 = vmatprep.subr.mxu0 0.0
    %1175 = vmatpush1.msra.mxu0 0.0
    %1176 = vmatprep.mubr.f32.mxu0 0.0
    %v1177 = vand.u32 %v84, 4294901760
    %1178 = vmatmul.mubr.f32.gmra.mrb[0].mxu0 %v1177
    %v1179 = vpop.f32.mrb[0].mxu0
    %v1180 = vadd.f32 %v1099, %v1179
    %v1181 = vpop.f32.mrb[0].mxu0
    %1182 = vmatprep.mubr.f32.mxu0 0.0
    %v1183 = vand.u32 %v87, 4294901760
    %1184 = vmatmul.mubr.f32.gmra.mrb[0].mxu0 %v1183
    %v1185 = vpop.f32.mrb[0].mxu0
    %v1186 = vadd.f32 %v1105, %v1185
    %v1187 = vpop.f32.mrb[0].mxu0
    %1188 = vdwg.mxu0
    %v1189 = vld [vmem:[#allocation2] sm:$0xff]
    %v1190 = vld [vmem:[#allocation2 + $0x8] sm:$0xff]
    %v1191 = vld [vmem:[%s4] sm:$0x1]
    %1193 = vset.pattern.permute.xlu0 64
    %1194 = vperm.xlu0 %1193, %v1180
    %v1195 = vpop.permute.xlu0 %1194
    %1198 = vset.pattern.permute.xlu0 64
    %1199 = vperm.xlu0 %1198, %v1186
    %v1200 = vpop.permute.xlu0 %1199
    %v1202 = vlaneseq
    %v1203 = vshrl.u32 %v1202, 7
    %v1204 = vsub.s32 0, %v1203
    %v1205 = vrot.slane %v641, %v1204
    %v1206 = vadd.f32 %v1195, %v1205
    %v1207 = vadd.f32 %v1200, %v1205
    %vm1208 = vcmp.gt.f32.partialorder %v1206, 0.0
    %vm1209 = vcmp.gt.f32.partialorder %v1207, 0.0
    %v1210 = vmul.f32 %v1206, 0.2
    %v1211 = vmul.f32 %v1207, 0.2
    %v1212 = vsel %vm1208, %v1206, %v1210
    %v1213 = vsel %vm1209, %v1207, %v1211
    %v1214 = vadd.f32 %v1212, %v1189
    %v1215 = vadd.f32 %v1213, %v1190
    %vm1216 = vcmask 130048
    %v1217 = vsel %vm1216, %v1214, -inf
    %1218 = vmax.xlane.f32.xlu0 %v1217
    %v1219 = vpop.xlane.xlu0 %1218
    %v1220 = vsel %vm1216, %v1215, -inf
    %1221 = vmax.xlane.f32.xlu0 %v1220
    %v1222 = vpop.xlane.xlu0 %1221
    %v1223 = vsub.f32 %v1214, %v1219
    %v1224 = vsub.f32 %v1215, %v1222
    %v1225 = vmul.f32 %v1223, 1.442695
    %v1226 = vpow.pop %v1225
    %v1227 = vmul.f32 %v1224, 1.442695
    %v1228 = vpow.pop %v1227
    %v1229 = vsel %vm1216, %v1226, 0.0
    %1230 = vadd.xlane.f32.xlu0 %v1229
    %v1231 = vpop.xlane.xlu0 %1230
    %v1232 = vsel %vm1216, %v1228, 0.0
    %1233 = vadd.xlane.f32.xlu0 %v1232
    %v1234 = vpop.xlane.xlu0 %1233
    %v1235 = vrcp.pop %v1231
    %v1236 = vmul.f32 %v1226, %v1235
    %v1237 = vrcp.pop %v1234
    %v1238 = vmul.f32 %v1228, %v1237
    %v1240 = vsel %vm1216, %v1236, 0
    %v1243 = vsel %vm1216, %v1238, 0
    %1245 = vmatprep.subr.mxu0 0.0
    %v1246 = vand.u32 %v608, 4294901760
    %1247 = vmatpush1.msra.mxu0 %v1246
    %1248 = vmatprep.subr.mxu0 0.0
    %v1249 = vand.u32 %v614, 4294901760
    %1250 = vmatpush1.msra.mxu0 %v1249
    %1251 = vmatprep.subr.mxu0 0.0
    %1252 = vmatpush1.msra.mxu0 0.0
    %1253 = vmatprep.subr.mxu0 0.0
    %1254 = vmatpush1.msra.mxu0 0.0
    %1255 = vmatprep.subr.mxu0 0.0
    %1256 = vmatpush1.msra.mxu0 0.0
    %1257 = vmatprep.subr.mxu0 0.0
    %1258 = vmatpush1.msra.mxu0 0.0
    %1259 = vmatprep.subr.mxu0 0.0
    %1260 = vmatpush1.msra.mxu0 0.0
    %1261 = vmatprep.subr.mxu0 0.0
    %1262 = vmatpush1.msra.mxu0 0.0
    %1263 = vmatprep.subr.mxu0 0.0
    %1264 = vmatpush1.msra.mxu0 0.0
    %1265 = vmatprep.subr.mxu0 0.0
    %1266 = vmatpush1.msra.mxu0 0.0
    %1267 = vmatprep.subr.mxu0 0.0
    %1268 = vmatpush1.msra.mxu0 0.0
    %1269 = vmatprep.subr.mxu0 0.0
    %1270 = vmatpush1.msra.mxu0 0.0
    %1271 = vmatprep.subr.mxu0 0.0
    %1272 = vmatpush1.msra.mxu0 0.0
    %1273 = vmatprep.subr.mxu0 0.0
    %1274 = vmatpush1.msra.mxu0 0.0
    %1275 = vmatprep.subr.mxu0 0.0
    %1276 = vmatpush1.msra.mxu0 0.0
    %1277 = vmatprep.subr.mxu0 0.0
    %1278 = vmatpush1.msra.mxu0 0.0
    %1279 = vmatprep.subr.mxu0 0.0
    %1280 = vmatpush1.msra.mxu0 0.0
    %1281 = vmatprep.subr.mxu0 0.0
    %1282 = vmatpush1.msra.mxu0 0.0
    %1283 = vmatprep.subr.mxu0 0.0
    %1284 = vmatpush1.msra.mxu0 0.0
    %1285 = vmatprep.subr.mxu0 0.0
    %1286 = vmatpush1.msra.mxu0 0.0
    %1287 = vmatprep.subr.mxu0 0.0
    %1288 = vmatpush1.msra.mxu0 0.0
    %1289 = vmatprep.subr.mxu0 0.0
    %1290 = vmatpush1.msra.mxu0 0.0
    %1291 = vmatprep.subr.mxu0 0.0
    %1292 = vmatpush1.msra.mxu0 0.0
    %1293 = vmatprep.subr.mxu0 0.0
    %1294 = vmatpush1.msra.mxu0 0.0
    %1295 = vmatprep.subr.mxu0 0.0
    %1296 = vmatpush1.msra.mxu0 0.0
    %1297 = vmatprep.subr.mxu0 0.0
    %1298 = vmatpush1.msra.mxu0 0.0
    %1299 = vmatprep.subr.mxu0 0.0
    %1300 = vmatpush1.msra.mxu0 0.0
    %1301 = vmatprep.subr.mxu0 0.0
    %1302 = vmatpush1.msra.mxu0 0.0
    %1303 = vmatprep.subr.mxu0 0.0
    %1304 = vmatpush1.msra.mxu0 0.0
    %1305 = vmatprep.subr.mxu0 0.0
    %1306 = vmatpush1.msra.mxu0 0.0
    %1307 = vmatprep.subr.mxu0 0.0
    %1308 = vmatpush1.msra.mxu0 0.0
    %1309 = vmatprep.subr.mxu0 0.0
    %1310 = vmatpush1.msra.mxu0 0.0
    %1311 = vmatprep.mubr.f32.mxu0 0.0
    %v1312 = vand.u32 %v1240, 4294901760
    %v1313 = vsub.f32 %v1240, %v1312
    %v1314 = vand.u32 %v1313, 4294901760
    %v1315 = vsub.f32 %v1313, %v1314
    %v1316 = vand.u32 %v1315, 4294901760
    %1317 = vmatmul.mubr.f32.gmra.mrb[0].mxu0 %v1316
    %v1318 = vpop.f32.mrb[0].mxu0
    %v1319 = vadd.f32 %v1180, %v1318
    %v1320 = vpop.f32.mrb[0].mxu0
    %1321 = vmatprep.mubr.f32.mxu0 0.0
    %v1322 = vand.u32 %v1243, 4294901760
    %v1323 = vsub.f32 %v1243, %v1322
    %v1324 = vand.u32 %v1323, 4294901760
    %v1325 = vsub.f32 %v1323, %v1324
    %v1326 = vand.u32 %v1325, 4294901760
    %1327 = vmatmul.mubr.f32.gmra.mrb[0].mxu0 %v1326
    %v1328 = vpop.f32.mrb[0].mxu0
    %v1329 = vadd.f32 %v1186, %v1328
    %v1330 = vpop.f32.mrb[0].mxu0
    %1331 = vdwg.mxu0
    %1332 = vmatprep.subr.mxu0 0.0
    %v1333 = vand.u32 %v608, 4294901760
    %v1334 = vsub.f32 %v608, %v1333
    %v1335 = vand.u32 %v1334, 4294901760
    %v1336 = vsub.f32 %v1334, %v1335
    %v1337 = vand.u32 %v1336, 4294901760
    %1338 = vmatpush1.msra.mxu0 %v1337
    %1339 = vmatprep.subr.mxu0 0.0
    %v1340 = vand.u32 %v614, 4294901760
    %v1341 = vsub.f32 %v614, %v1340
    %v1342 = vand.u32 %v1341, 4294901760
    %v1343 = vsub.f32 %v1341, %v1342
    %v1344 = vand.u32 %v1343, 4294901760
    %1345 = vmatpush1.msra.mxu0 %v1344
    %1346 = vmatprep.subr.mxu0 0.0
    %1347 = vmatpush1.msra.mxu0 0.0
    %1348 = vmatprep.subr.mxu0 0.0
    %1349 = vmatpush1.msra.mxu0 0.0
    %1350 = vmatprep.subr.mxu0 0.0
    %1351 = vmatpush1.msra.mxu0 0.0
    %1352 = vmatprep.subr.mxu0 0.0
    %1353 = vmatpush1.msra.mxu0 0.0
    %1354 = vmatprep.subr.mxu0 0.0
    %1355 = vmatpush1.msra.mxu0 0.0
    %1356 = vmatprep.subr.mxu0 0.0
    %1357 = vmatpush1.msra.mxu0 0.0
    %1358 = vmatprep.subr.mxu0 0.0
    %1359 = vmatpush1.msra.mxu0 0.0
    %1360 = vmatprep.subr.mxu0 0.0
    %1361 = vmatpush1.msra.mxu0 0.0
    %1362 = vmatprep.subr.mxu0 0.0
    %1363 = vmatpush1.msra.mxu0 0.0
    %1364 = vmatprep.subr.mxu0 0.0
    %1365 = vmatpush1.msra.mxu0 0.0
    %1366 = vmatprep.subr.mxu0 0.0
    %1367 = vmatpush1.msra.mxu0 0.0
    %1368 = vmatprep.subr.mxu0 0.0
    %1369 = vmatpush1.msra.mxu0 0.0
    %1370 = vmatprep.subr.mxu0 0.0
    %1371 = vmatpush1.msra.mxu0 0.0
    %1372 = vmatprep.subr.mxu0 0.0
    %1373 = vmatpush1.msra.mxu0 0.0
    %1374 = vmatprep.subr.mxu0 0.0
    %1375 = vmatpush1.msra.mxu0 0.0
    %1376 = vmatprep.subr.mxu0 0.0
    %1377 = vmatpush1.msra.mxu0 0.0
    %1378 = vmatprep.subr.mxu0 0.0
    %1379 = vmatpush1.msra.mxu0 0.0
    %1380 = vmatprep.subr.mxu0 0.0
    %1381 = vmatpush1.msra.mxu0 0.0
    %1382 = vmatprep.subr.mxu0 0.0
    %1383 = vmatpush1.msra.mxu0 0.0
    %1384 = vmatprep.subr.mxu0 0.0
    %1385 = vmatpush1.msra.mxu0 0.0
    %1386 = vmatprep.subr.mxu0 0.0
    %1387 = vmatpush1.msra.mxu0 0.0
    %1388 = vmatprep.subr.mxu0 0.0
    %1389 = vmatpush1.msra.mxu0 0.0
    %1390 = vmatprep.subr.mxu0 0.0
    %1391 = vmatpush1.msra.mxu0 0.0
    %1392 = vmatprep.subr.mxu0 0.0
    %1393 = vmatpush1.msra.mxu0 0.0
    %1394 = vmatprep.subr.mxu0 0.0
    %1395 = vmatpush1.msra.mxu0 0.0
    %1396 = vmatprep.subr.mxu0 0.0
    %1397 = vmatpush1.msra.mxu0 0.0
    %1398 = vmatprep.subr.mxu0 0.0
    %1399 = vmatpush1.msra.mxu0 0.0
    %1400 = vmatprep.subr.mxu0 0.0
    %1401 = vmatpush1.msra.mxu0 0.0
    %1402 = vmatprep.subr.mxu0 0.0
    %1403 = vmatpush1.msra.mxu0 0.0
    %1404 = vmatprep.subr.mxu0 0.0
    %1405 = vmatpush1.msra.mxu0 0.0
    %1406 = vmatprep.mubr.f32.mxu0 0.0
    %v1407 = vand.u32 %v1240, 4294901760
    %1408 = vmatmul.mubr.f32.gmra.mrb[0].mxu0 %v1407
    %v1409 = vpop.f32.mrb[0].mxu0
    %v1410 = vadd.f32 %v1319, %v1409
    %v1411 = vpop.f32.mrb[0].mxu0
    %1412 = vmatprep.mubr.f32.mxu0 0.0
    %v1413 = vand.u32 %v1243, 4294901760
    %1414 = vmatmul.mubr.f32.gmra.mrb[0].mxu0 %v1413
    %v1415 = vpop.f32.mrb[0].mxu0
    %v1416 = vadd.f32 %v1329, %v1415
    %v1417 = vpop.f32.mrb[0].mxu0
    %1418 = vdwg.mxu0
    %1419 = vmatprep.subr.mxu0 0.0
    %v1420 = vand.u32 %v608, 4294901760
    %v1421 = vsub.f32 %v608, %v1420
    %1422 = vmatpush1.msra.mxu0 %v1421
    %1423 = vmatprep.subr.mxu0 0.0
    %v1424 = vand.u32 %v614, 4294901760
    %v1425 = vsub.f32 %v614, %v1424
    %1426 = vmatpush1.msra.mxu0 %v1425
    %1427 = vmatprep.subr.mxu0 0.0
    %1428 = vmatpush1.msra.mxu0 0.0
    %1429 = vmatprep.subr.mxu0 0.0
    %1430 = vmatpush1.msra.mxu0 0.0
    %1431 = vmatprep.subr.mxu0 0.0
    %1432 = vmatpush1.msra.mxu0 0.0
    %1433 = vmatprep.subr.mxu0 0.0
    %1434 = vmatpush1.msra.mxu0 0.0
    %1435 = vmatprep.subr.mxu0 0.0
    %1436 = vmatpush1.msra.mxu0 0.0
    %1437 = vmatprep.subr.mxu0 0.0
    %1438 = vmatpush1.msra.mxu0 0.0
    %1439 = vmatprep.subr.mxu0 0.0
    %1440 = vmatpush1.msra.mxu0 0.0
    %1441 = vmatprep.subr.mxu0 0.0
    %1442 = vmatpush1.msra.mxu0 0.0
    %1443 = vmatprep.subr.mxu0 0.0
    %1444 = vmatpush1.msra.mxu0 0.0
    %1445 = vmatprep.subr.mxu0 0.0
    %1446 = vmatpush1.msra.mxu0 0.0
    %1447 = vmatprep.subr.mxu0 0.0
    %1448 = vmatpush1.msra.mxu0 0.0
    %1449 = vmatprep.subr.mxu0 0.0
    %1450 = vmatpush1.msra.mxu0 0.0
    %1451 = vmatprep.subr.mxu0 0.0
    %1452 = vmatpush1.msra.mxu0 0.0
    %1453 = vmatprep.subr.mxu0 0.0
    %1454 = vmatpush1.msra.mxu0 0.0
    %1455 = vmatprep.subr.mxu0 0.0
    %1456 = vmatpush1.msra.mxu0 0.0
    %1457 = vmatprep.subr.mxu0 0.0
    %1458 = vmatpush1.msra.mxu0 0.0
    %1459 = vmatprep.subr.mxu0 0.0
    %1460 = vmatpush1.msra.mxu0 0.0
    %1461 = vmatprep.subr.mxu0 0.0
    %1462 = vmatpush1.msra.mxu0 0.0
    %1463 = vmatprep.subr.mxu0 0.0
    %1464 = vmatpush1.msra.mxu0 0.0
    %1465 = vmatprep.subr.mxu0 0.0
    %1466 = vmatpush1.msra.mxu0 0.0
    %1467 = vmatprep.subr.mxu0 0.0
    %1468 = vmatpush1.msra.mxu0 0.0
    %1469 = vmatprep.subr.mxu0 0.0
    %1470 = vmatpush1.msra.mxu0 0.0
    %1471 = vmatprep.subr.mxu0 0.0
    %1472 = vmatpush1.msra.mxu0 0.0
    %1473 = vmatprep.subr.mxu0 0.0
    %1474 = vmatpush1.msra.mxu0 0.0
    %1475 = vmatprep.subr.mxu0 0.0
    %1476 = vmatpush1.msra.mxu0 0.0
    %1477 = vmatprep.subr.mxu0 0.0
    %1478 = vmatpush1.msra.mxu0 0.0
    %1479 = vmatprep.subr.mxu0 0.0
    %1480 = vmatpush1.msra.mxu0 0.0
    %1481 = vmatprep.subr.mxu0 0.0
    %1482 = vmatpush1.msra.mxu0 0.0
    %1483 = vmatprep.subr.mxu0 0.0
    %1484 = vmatpush1.msra.mxu0 0.0
    %1485 = vmatprep.subr.mxu0 0.0
    %1486 = vmatpush1.msra.mxu0 0.0
    %1487 = vmatprep.mubr.f32.mxu0 0.0
    %v1488 = vand.u32 %v1240, 4294901760
    %v1489 = vsub.f32 %v1240, %v1488
    %1490 = vmatmul.mubr.f32.gmra.mrb[0].mxu0 %v1489
    %v1491 = vpop.f32.mrb[0].mxu0
    %v1492 = vadd.f32 %v1410, %v1491
    %v1493 = vpop.f32.mrb[0].mxu0
    %1494 = vmatprep.mubr.f32.mxu0 0.0
    %v1495 = vand.u32 %v1243, 4294901760
    %v1496 = vsub.f32 %v1243, %v1495
    %1497 = vmatmul.mubr.f32.gmra.mrb[0].mxu0 %v1496
    %v1498 = vpop.f32.mrb[0].mxu0
    %v1499 = vadd.f32 %v1416, %v1498
    %v1500 = vpop.f32.mrb[0].mxu0
    %1501 = vdwg.mxu0
    %1502 = vmatprep.subr.mxu0 0.0
    %v1503 = vand.u32 %v608, 4294901760
    %1504 = vmatpush1.msra.mxu0 %v1503
    %1505 = vmatprep.subr.mxu0 0.0
    %v1506 = vand.u32 %v614, 4294901760
    %1507 = vmatpush1.msra.mxu0 %v1506
    %1508 = vmatprep.subr.mxu0 0.0
    %1509 = vmatpush1.msra.mxu0 0.0
    %1510 = vmatprep.subr.mxu0 0.0
    %1511 = vmatpush1.msra.mxu0 0.0
    %1512 = vmatprep.subr.mxu0 0.0
    %1513 = vmatpush1.msra.mxu0 0.0
    %1514 = vmatprep.subr.mxu0 0.0
    %1515 = vmatpush1.msra.mxu0 0.0
    %1516 = vmatprep.subr.mxu0 0.0
    %1517 = vmatpush1.msra.mxu0 0.0
    %1518 = vmatprep.subr.mxu0 0.0
    %1519 = vmatpush1.msra.mxu0 0.0
    %1520 = vmatprep.subr.mxu0 0.0
    %1521 = vmatpush1.msra.mxu0 0.0
    %1522 = vmatprep.subr.mxu0 0.0
    %1523 = vmatpush1.msra.mxu0 0.0
    %1524 = vmatprep.subr.mxu0 0.0
    %1525 = vmatpush1.msra.mxu0 0.0
    %1526 = vmatprep.subr.mxu0 0.0
    %1527 = vmatpush1.msra.mxu0 0.0
    %1528 = vmatprep.subr.mxu0 0.0
    %1529 = vmatpush1.msra.mxu0 0.0
    %1530 = vmatprep.subr.mxu0 0.0
    %1531 = vmatpush1.msra.mxu0 0.0
    %1532 = vmatprep.subr.mxu0 0.0
    %1533 = vmatpush1.msra.mxu0 0.0
    %1534 = vmatprep.subr.mxu0 0.0
    %1535 = vmatpush1.msra.mxu0 0.0
    %1536 = vmatprep.subr.mxu0 0.0
    %1537 = vmatpush1.msra.mxu0 0.0
    %1538 = vmatprep.subr.mxu0 0.0
    %1539 = vmatpush1.msra.mxu0 0.0
    %1540 = vmatprep.subr.mxu0 0.0
    %1541 = vmatpush1.msra.mxu0 0.0
    %1542 = vmatprep.subr.mxu0 0.0
    %1543 = vmatpush1.msra.mxu0 0.0
    %1544 = vmatprep.subr.mxu0 0.0
    %1545 = vmatpush1.msra.mxu0 0.0
    %1546 = vmatprep.subr.mxu0 0.0
    %1547 = vmatpush1.msra.mxu0 0.0
    %1548 = vmatprep.subr.mxu0 0.0
    %1549 = vmatpush1.msra.mxu0 0.0
    %1550 = vmatprep.subr.mxu0 0.0
    %1551 = vmatpush1.msra.mxu0 0.0
    %1552 = vmatprep.subr.mxu0 0.0
    %1553 = vmatpush1.msra.mxu0 0.0
    %1554 = vmatprep.subr.mxu0 0.0
    %1555 = vmatpush1.msra.mxu0 0.0
    %1556 = vmatprep.subr.mxu0 0.0
    %1557 = vmatpush1.msra.mxu0 0.0
    %1558 = vmatprep.subr.mxu0 0.0
    %1559 = vmatpush1.msra.mxu0 0.0
    %1560 = vmatprep.subr.mxu0 0.0
    %1561 = vmatpush1.msra.mxu0 0.0
    %1562 = vmatprep.subr.mxu0 0.0
    %1563 = vmatpush1.msra.mxu0 0.0
    %1564 = vmatprep.subr.mxu0 0.0
    %1565 = vmatpush1.msra.mxu0 0.0
    %1566 = vmatprep.subr.mxu0 0.0
    %1567 = vmatpush1.msra.mxu0 0.0
    %1568 = vmatprep.mubr.f32.mxu0 0.0
    %v1569 = vand.u32 %v1240, 4294901760
    %v1570 = vsub.f32 %v1240, %v1569
    %v1571 = vand.u32 %v1570, 4294901760
    %1572 = vmatmul.mubr.f32.gmra.mrb[0].mxu0 %v1571
    %v1573 = vpop.f32.mrb[0].mxu0
    %v1574 = vadd.f32 %v1492, %v1573
    %v1575 = vpop.f32.mrb[0].mxu0
    %1576 = vmatprep.mubr.f32.mxu0 0.0
    %v1577 = vand.u32 %v1243, 4294901760
    %v1578 = vsub.f32 %v1243, %v1577
    %v1579 = vand.u32 %v1578, 4294901760
    %1580 = vmatmul.mubr.f32.gmra.mrb[0].mxu0 %v1579
    %v1581 = vpop.f32.mrb[0].mxu0
    %v1582 = vadd.f32 %v1499, %v1581
    %v1583 = vpop.f32.mrb[0].mxu0
    %1584 = vdwg.mxu0
    %1585 = vmatprep.subr.mxu0 0.0
    %v1586 = vand.u32 %v608, 4294901760
    %v1587 = vsub.f32 %v608, %v1586
    %v1588 = vand.u32 %v1587, 4294901760
    %1589 = vmatpush1.msra.mxu0 %v1588
    %1590 = vmatprep.subr.mxu0 0.0
    %v1591 = vand.u32 %v614, 4294901760
    %v1592 = vsub.f32 %v614, %v1591
    %v1593 = vand.u32 %v1592, 4294901760
    %1594 = vmatpush1.msra.mxu0 %v1593
    %1595 = vmatprep.subr.mxu0 0.0
    %1596 = vmatpush1.msra.mxu0 0.0
    %1597 = vmatprep.subr.mxu0 0.0
    %1598 = vmatpush1.msra.mxu0 0.0
    %1599 = vmatprep.subr.mxu0 0.0
    %1600 = vmatpush1.msra.mxu0 0.0
    %1601 = vmatprep.subr.mxu0 0.0
    %1602 = vmatpush1.msra.mxu0 0.0
    %1603 = vmatprep.subr.mxu0 0.0
    %1604 = vmatpush1.msra.mxu0 0.0
    %1605 = vmatprep.subr.mxu0 0.0
    %1606 = vmatpush1.msra.mxu0 0.0
    %1607 = vmatprep.subr.mxu0 0.0
    %1608 = vmatpush1.msra.mxu0 0.0
    %1609 = vmatprep.subr.mxu0 0.0
    %1610 = vmatpush1.msra.mxu0 0.0
    %1611 = vmatprep.subr.mxu0 0.0
    %1612 = vmatpush1.msra.mxu0 0.0
    %1613 = vmatprep.subr.mxu0 0.0
    %1614 = vmatpush1.msra.mxu0 0.0
    %1615 = vmatprep.subr.mxu0 0.0
    %1616 = vmatpush1.msra.mxu0 0.0
    %1617 = vmatprep.subr.mxu0 0.0
    %1618 = vmatpush1.msra.mxu0 0.0
    %1619 = vmatprep.subr.mxu0 0.0
    %1620 = vmatpush1.msra.mxu0 0.0
    %1621 = vmatprep.subr.mxu0 0.0
    %1622 = vmatpush1.msra.mxu0 0.0
    %1623 = vmatprep.subr.mxu0 0.0
    %1624 = vmatpush1.msra.mxu0 0.0
    %1625 = vmatprep.subr.mxu0 0.0
    %1626 = vmatpush1.msra.mxu0 0.0
    %1627 = vmatprep.subr.mxu0 0.0
    %1628 = vmatpush1.msra.mxu0 0.0
    %1629 = vmatprep.subr.mxu0 0.0
    %1630 = vmatpush1.msra.mxu0 0.0
    %1631 = vmatprep.subr.mxu0 0.0
    %1632 = vmatpush1.msra.mxu0 0.0
    %1633 = vmatprep.subr.mxu0 0.0
    %1634 = vmatpush1.msra.mxu0 0.0
    %1635 = vmatprep.subr.mxu0 0.0
    %1636 = vmatpush1.msra.mxu0 0.0
    %1637 = vmatprep.subr.mxu0 0.0
    %1638 = vmatpush1.msra.mxu0 0.0
    %1639 = vmatprep.subr.mxu0 0.0
    %1640 = vmatpush1.msra.mxu0 0.0
    %1641 = vmatprep.subr.mxu0 0.0
    %1642 = vmatpush1.msra.mxu0 0.0
    %1643 = vmatprep.subr.mxu0 0.0
    %1644 = vmatpush1.msra.mxu0 0.0
    %1645 = vmatprep.subr.mxu0 0.0
    %1646 = vmatpush1.msra.mxu0 0.0
    %1647 = vmatprep.subr.mxu0 0.0
    %1648 = vmatpush1.msra.mxu0 0.0
    %1649 = vmatprep.subr.mxu0 0.0
    %1650 = vmatpush1.msra.mxu0 0.0
    %1651 = vmatprep.subr.mxu0 0.0
    %1652 = vmatpush1.msra.mxu0 0.0
    %1653 = vmatprep.subr.mxu0 0.0
    %1654 = vmatpush1.msra.mxu0 0.0
    %1655 = vmatprep.mubr.f32.mxu0 0.0
    %v1656 = vand.u32 %v1240, 4294901760
    %1657 = vmatmul.mubr.f32.gmra.mrb[0].mxu0 %v1656
    %v1658 = vpop.f32.mrb[0].mxu0
    %v1659 = vadd.f32 %v1574, %v1658
    %v1660 = vpop.f32.mrb[0].mxu0
    %1661 = vmatprep.mubr.f32.mxu0 0.0
    %v1662 = vand.u32 %v1243, 4294901760
    %1663 = vmatmul.mubr.f32.gmra.mrb[0].mxu0 %v1662
    %v1664 = vpop.f32.mrb[0].mxu0
    %v1665 = vadd.f32 %v1582, %v1664
    %v1666 = vpop.f32.mrb[0].mxu0
    %1667 = vdwg.mxu0
    %1668 = vmatprep.subr.mxu0 0.0
    %v1669 = vand.u32 %v608, 4294901760
    %1670 = vmatpush1.msra.mxu0 %v1669
    %1671 = vmatprep.subr.mxu0 0.0
    %v1672 = vand.u32 %v614, 4294901760
    %1673 = vmatpush1.msra.mxu0 %v1672
    %1674 = vmatprep.subr.mxu0 0.0
    %1675 = vmatpush1.msra.mxu0 0.0
    %1676 = vmatprep.subr.mxu0 0.0
    %1677 = vmatpush1.msra.mxu0 0.0
    %1678 = vmatprep.subr.mxu0 0.0
    %1679 = vmatpush1.msra.mxu0 0.0
    %1680 = vmatprep.subr.mxu0 0.0
    %1681 = vmatpush1.msra.mxu0 0.0
    %1682 = vmatprep.subr.mxu0 0.0
    %1683 = vmatpush1.msra.mxu0 0.0
    %1684 = vmatprep.subr.mxu0 0.0
    %1685 = vmatpush1.msra.mxu0 0.0
    %1686 = vmatprep.subr.mxu0 0.0
    %1687 = vmatpush1.msra.mxu0 0.0
    %1688 = vmatprep.subr.mxu0 0.0
    %1689 = vmatpush1.msra.mxu0 0.0
    %1690 = vmatprep.subr.mxu0 0.0
    %1691 = vmatpush1.msra.mxu0 0.0
    %1692 = vmatprep.subr.mxu0 0.0
    %1693 = vmatpush1.msra.mxu0 0.0
    %1694 = vmatprep.subr.mxu0 0.0
    %1695 = vmatpush1.msra.mxu0 0.0
    %1696 = vmatprep.subr.mxu0 0.0
    %1697 = vmatpush1.msra.mxu0 0.0
    %1698 = vmatprep.subr.mxu0 0.0
    %1699 = vmatpush1.msra.mxu0 0.0
    %1700 = vmatprep.subr.mxu0 0.0
    %1701 = vmatpush1.msra.mxu0 0.0
    %1702 = vmatprep.subr.mxu0 0.0
    %1703 = vmatpush1.msra.mxu0 0.0
    %1704 = vmatprep.subr.mxu0 0.0
    %1705 = vmatpush1.msra.mxu0 0.0
    %1706 = vmatprep.subr.mxu0 0.0
    %1707 = vmatpush1.msra.mxu0 0.0
    %1708 = vmatprep.subr.mxu0 0.0
    %1709 = vmatpush1.msra.mxu0 0.0
    %1710 = vmatprep.subr.mxu0 0.0
    %1711 = vmatpush1.msra.mxu0 0.0
    %1712 = vmatprep.subr.mxu0 0.0
    %1713 = vmatpush1.msra.mxu0 0.0
    %1714 = vmatprep.subr.mxu0 0.0
    %1715 = vmatpush1.msra.mxu0 0.0
    %1716 = vmatprep.subr.mxu0 0.0
    %1717 = vmatpush1.msra.mxu0 0.0
    %1718 = vmatprep.subr.mxu0 0.0
    %1719 = vmatpush1.msra.mxu0 0.0
    %1720 = vmatprep.subr.mxu0 0.0
    %1721 = vmatpush1.msra.mxu0 0.0
    %1722 = vmatprep.subr.mxu0 0.0
    %1723 = vmatpush1.msra.mxu0 0.0
    %1724 = vmatprep.subr.mxu0 0.0
    %1725 = vmatpush1.msra.mxu0 0.0
    %1726 = vmatprep.subr.mxu0 0.0
    %1727 = vmatpush1.msra.mxu0 0.0
    %1728 = vmatprep.subr.mxu0 0.0
    %1729 = vmatpush1.msra.mxu0 0.0
    %1730 = vmatprep.subr.mxu0 0.0
    %1731 = vmatpush1.msra.mxu0 0.0
    %1732 = vmatprep.subr.mxu0 0.0
    %1733 = vmatpush1.msra.mxu0 0.0
    %1734 = vmatprep.mubr.f32.mxu0 0.0
    %v1735 = vand.u32 %v1240, 4294901760
    %1736 = vmatmul.mubr.f32.gmra.mrb[0].mxu0 %v1735
    %v1737 = vpop.f32.mrb[0].mxu0
    %v1738 = vadd.f32 %v1659, %v1737
    %v1739 = vpop.f32.mrb[0].mxu0
    %1740 = vmatprep.mubr.f32.mxu0 0.0
    %v1741 = vand.u32 %v1243, 4294901760
    %1742 = vmatmul.mubr.f32.gmra.mrb[0].mxu0 %v1741
    %v1743 = vpop.f32.mrb[0].mxu0
    %v1744 = vadd.f32 %v1665, %v1743
    %v1745 = vpop.f32.mrb[0].mxu0
    %1746 = vdwg.mxu0
    %v1748 = vlaneseq
    %v1749 = vshrl.u32 %v1748, 7
    %v1750 = vsub.s32 0, %v1749
    %v1751 = vrot.slane %v1191, %v1750
    %v1753 = vadd.f32 %v1738, %v1751
    %v1754 = vadd.f32 %v1744, %v1751
    %vm1755 = vcmp.gt.f32.partialorder %v1753, 0.0
    %vm1756 = vcmp.gt.f32.partialorder %v1754, 0.0
    %v1757 = vmin.f32 %v1753, 0.0
    %v1758 = vmin.f32 %v1754, 0.0
    %v1759 = vmul.f32 %v1757, 1.442695
    %v1760 = vpow.pop %v1759
    %v1761 = vmul.f32 %v1758, 1.442695
    %v1762 = vpow.pop %v1761
    %v1763 = vsub.f32 %v1760, 1.0
    %v1764 = vsub.f32 %v1762, 1.0
    %v1765 = vsel %vm1755, %v1753, %v1763
    %v1766 = vsel %vm1756, %v1754, %v1764
    %1767 = vst.msk [vmem:[#allocation10] sm:$0xff] %vm1216, %v1765
    %1768 = vst.msk [vmem:[#allocation10 + $0x8] sm:$0xff] %vm1216, %v1766
    %1769 = vset.pattern.permute.xlu0 65
    %1770 = vperm.xlu0 %1769, %v1180
    %v1771 = vpop.permute.xlu0 %1770
    %1773 = vset.pattern.permute.xlu0 65
    %1774 = vperm.xlu0 %1773, %v1186
    %v1775 = vpop.permute.xlu0 %1774
    %v1777 = vlaneseq
    %v1778 = vshrl.u32 %v1777, 7
    %v1779 = vsub.s32 1, %v1778
    %v1780 = vrot.slane %v641, %v1779
    %v1781 = vadd.f32 %v1771, %v1780
    %v1782 = vadd.f32 %v1775, %v1780
    %vm1783 = vcmp.gt.f32.partialorder %v1781, 0.0
    %vm1784 = vcmp.gt.f32.partialorder %v1782, 0.0
    %v1785 = vmul.f32 %v1781, 0.2
    %v1786 = vmul.f32 %v1782, 0.2
    %v1787 = vsel %vm1783, %v1781, %v1785
    %v1788 = vsel %vm1784, %v1782, %v1786
    %v1789 = vadd.f32 %v1787, %v1189
    %v1790 = vadd.f32 %v1788, %v1190
    %v1791 = vsel %vm1216, %v1789, -inf
    %1792 = vmax.xlane.f32.xlu0 %v1791
    %v1793 = vpop.xlane.xlu0 %1792
    %v1794 = vsel %vm1216, %v1790, -inf
    %1795 = vmax.xlane.f32.xlu0 %v1794
    %v1796 = vpop.xlane.xlu0 %1795
    %v1797 = vsub.f32 %v1789, %v1793
    %v1798 = vsub.f32 %v1790, %v1796
    %v1799 = vmul.f32 %v1797, 1.442695
    %v1800 = vpow.pop %v1799
    %v1801 = vmul.f32 %v1798, 1.442695
    %v1802 = vpow.pop %v1801
    %v1803 = vsel %vm1216, %v1800, 0.0
    %1804 = vadd.xlane.f32.xlu0 %v1803
    %v1805 = vpop.xlane.xlu0 %1804
    %v1806 = vsel %vm1216, %v1802, 0.0
    %1807 = vadd.xlane.f32.xlu0 %v1806
    %v1808 = vpop.xlane.xlu0 %1807
    %v1809 = vrcp.pop %v1805
    %v1810 = vmul.f32 %v1800, %v1809
    %v1811 = vrcp.pop %v1808
    %v1812 = vmul.f32 %v1802, %v1811
    %1813 = vrot.lane.b32.xlu0 %v608, 112
    %v1814 = vpop.permute.xlu0 %1813
    %1815 = vrot.lane.b32.xlu0 %v614, 112
    %v1816 = vpop.permute.xlu0 %1815
    %1819 = vrot.lane.b32.xlu0 %v1180, 112
    %v1820 = vpop.permute.xlu0 %1819
    %1821 = vrot.lane.b32.xlu0 %v1186, 112
    %v1822 = vpop.permute.xlu0 %1821
    %v1826 = vsel %vm1216, %v1810, 0
    %v1829 = vsel %vm1216, %v1812, 0
    %1831 = vmatprep.subr.mxu0 0.0
    %v1832 = vand.u32 %v1814, 4294901760
    %1833 = vmatpush1.msra.mxu0 %v1832
    %1834 = vmatprep.subr.mxu0 0.0
    %v1835 = vand.u32 %v1816, 4294901760
    %1836 = vmatpush1.msra.mxu0 %v1835
    %1837 = vmatprep.subr.mxu0 0.0
    %1838 = vmatpush1.msra.mxu0 0.0
    %1839 = vmatprep.subr.mxu0 0.0
    %1840 = vmatpush1.msra.mxu0 0.0
    %1841 = vmatprep.subr.mxu0 0.0
    %1842 = vmatpush1.msra.mxu0 0.0
    %1843 = vmatprep.subr.mxu0 0.0
    %1844 = vmatpush1.msra.mxu0 0.0
    %1845 = vmatprep.subr.mxu0 0.0
    %1846 = vmatpush1.msra.mxu0 0.0
    %1847 = vmatprep.subr.mxu0 0.0
    %1848 = vmatpush1.msra.mxu0 0.0
    %1849 = vmatprep.subr.mxu0 0.0
    %1850 = vmatpush1.msra.mxu0 0.0
    %1851 = vmatprep.subr.mxu0 0.0
    %1852 = vmatpush1.msra.mxu0 0.0
    %1853 = vmatprep.subr.mxu0 0.0
    %1854 = vmatpush1.msra.mxu0 0.0
    %1855 = vmatprep.subr.mxu0 0.0
    %1856 = vmatpush1.msra.mxu0 0.0
    %1857 = vmatprep.subr.mxu0 0.0
    %1858 = vmatpush1.msra.mxu0 0.0
    %1859 = vmatprep.subr.mxu0 0.0
    %1860 = vmatpush1.msra.mxu0 0.0
    %1861 = vmatprep.subr.mxu0 0.0
    %1862 = vmatpush1.msra.mxu0 0.0
    %1863 = vmatprep.subr.mxu0 0.0
    %1864 = vmatpush1.msra.mxu0 0.0
    %1865 = vmatprep.subr.mxu0 0.0
    %1866 = vmatpush1.msra.mxu0 0.0
    %1867 = vmatprep.subr.mxu0 0.0
    %1868 = vmatpush1.msra.mxu0 0.0
    %1869 = vmatprep.subr.mxu0 0.0
    %1870 = vmatpush1.msra.mxu0 0.0
    %1871 = vmatprep.subr.mxu0 0.0
    %1872 = vmatpush1.msra.mxu0 0.0
    %1873 = vmatprep.subr.mxu0 0.0
    %1874 = vmatpush1.msra.mxu0 0.0
    %1875 = vmatprep.subr.mxu0 0.0
    %1876 = vmatpush1.msra.mxu0 0.0
    %1877 = vmatprep.subr.mxu0 0.0
    %1878 = vmatpush1.msra.mxu0 0.0
    %1879 = vmatprep.subr.mxu0 0.0
    %1880 = vmatpush1.msra.mxu0 0.0
    %1881 = vmatprep.subr.mxu0 0.0
    %1882 = vmatpush1.msra.mxu0 0.0
    %1883 = vmatprep.subr.mxu0 0.0
    %1884 = vmatpush1.msra.mxu0 0.0
    %1885 = vmatprep.subr.mxu0 0.0
    %1886 = vmatpush1.msra.mxu0 0.0
    %1887 = vmatprep.subr.mxu0 0.0
    %1888 = vmatpush1.msra.mxu0 0.0
    %1889 = vmatprep.subr.mxu0 0.0
    %1890 = vmatpush1.msra.mxu0 0.0
    %1891 = vmatprep.subr.mxu0 0.0
    %1892 = vmatpush1.msra.mxu0 0.0
    %1893 = vmatprep.subr.mxu0 0.0
    %1894 = vmatpush1.msra.mxu0 0.0
    %1895 = vmatprep.subr.mxu0 0.0
    %1896 = vmatpush1.msra.mxu0 0.0
    %1897 = vmatprep.mubr.f32.mxu0 0.0
    %v1898 = vand.u32 %v1826, 4294901760
    %v1899 = vsub.f32 %v1826, %v1898
    %v1900 = vand.u32 %v1899, 4294901760
    %v1901 = vsub.f32 %v1899, %v1900
    %v1902 = vand.u32 %v1901, 4294901760
    %1903 = vmatmul.mubr.f32.gmra.mrb[0].mxu0 %v1902
    %v1904 = vpop.f32.mrb[0].mxu0
    %v1905 = vadd.f32 %v1820, %v1904
    %v1906 = vpop.f32.mrb[0].mxu0
    %1907 = vmatprep.mubr.f32.mxu0 0.0
    %v1908 = vand.u32 %v1829, 4294901760
    %v1909 = vsub.f32 %v1829, %v1908
    %v1910 = vand.u32 %v1909, 4294901760
    %v1911 = vsub.f32 %v1909, %v1910
    %v1912 = vand.u32 %v1911, 4294901760
    %1913 = vmatmul.mubr.f32.gmra.mrb[0].mxu0 %v1912
    %v1914 = vpop.f32.mrb[0].mxu0
    %v1915 = vadd.f32 %v1822, %v1914
    %v1916 = vpop.f32.mrb[0].mxu0
    %1917 = vdwg.mxu0
    %1918 = vmatprep.subr.mxu0 0.0
    %v1919 = vand.u32 %v1814, 4294901760
    %v1920 = vsub.f32 %v1814, %v1919
    %v1921 = vand.u32 %v1920, 4294901760
    %v1922 = vsub.f32 %v1920, %v1921
    %v1923 = vand.u32 %v1922, 4294901760
    %1924 = vmatpush1.msra.mxu0 %v1923
    %1925 = vmatprep.subr.mxu0 0.0
    %v1926 = vand.u32 %v1816, 4294901760
    %v1927 = vsub.f32 %v1816, %v1926
    %v1928 = vand.u32 %v1927, 4294901760
    %v1929 = vsub.f32 %v1927, %v1928
    %v1930 = vand.u32 %v1929, 4294901760
    %1931 = vmatpush1.msra.mxu0 %v1930
    %1932 = vmatprep.subr.mxu0 0.0
    %1933 = vmatpush1.msra.mxu0 0.0
    %1934 = vmatprep.subr.mxu0 0.0
    %1935 = vmatpush1.msra.mxu0 0.0
    %1936 = vmatprep.subr.mxu0 0.0
    %1937 = vmatpush1.msra.mxu0 0.0
    %1938 = vmatprep.subr.mxu0 0.0
    %1939 = vmatpush1.msra.mxu0 0.0
    %1940 = vmatprep.subr.mxu0 0.0
    %1941 = vmatpush1.msra.mxu0 0.0
    %1942 = vmatprep.subr.mxu0 0.0
    %1943 = vmatpush1.msra.mxu0 0.0
    %1944 = vmatprep.subr.mxu0 0.0
    %1945 = vmatpush1.msra.mxu0 0.0
    %1946 = vmatprep.subr.mxu0 0.0
    %1947 = vmatpush1.msra.mxu0 0.0
    %1948 = vmatprep.subr.mxu0 0.0
    %1949 = vmatpush1.msra.mxu0 0.0
    %1950 = vmatprep.subr.mxu0 0.0
    %1951 = vmatpush1.msra.mxu0 0.0
    %1952 = vmatprep.subr.mxu0 0.0
    %1953 = vmatpush1.msra.mxu0 0.0
    %1954 = vmatprep.subr.mxu0 0.0
    %1955 = vmatpush1.msra.mxu0 0.0
    %1956 = vmatprep.subr.mxu0 0.0
    %1957 = vmatpush1.msra.mxu0 0.0
    %1958 = vmatprep.subr.mxu0 0.0
    %1959 = vmatpush1.msra.mxu0 0.0
    %1960 = vmatprep.subr.mxu0 0.0
    %1961 = vmatpush1.msra.mxu0 0.0
    %1962 = vmatprep.subr.mxu0 0.0
    %1963 = vmatpush1.msra.mxu0 0.0
    %1964 = vmatprep.subr.mxu0 0.0
    %1965 = vmatpush1.msra.mxu0 0.0
    %1966 = vmatprep.subr.mxu0 0.0
    %1967 = vmatpush1.msra.mxu0 0.0
    %1968 = vmatprep.subr.mxu0 0.0
    %1969 = vmatpush1.msra.mxu0 0.0
    %1970 = vmatprep.subr.mxu0 0.0
    %1971 = vmatpush1.msra.mxu0 0.0
    %1972 = vmatprep.subr.mxu0 0.0
    %1973 = vmatpush1.msra.mxu0 0.0
    %1974 = vmatprep.subr.mxu0 0.0
    %1975 = vmatpush1.msra.mxu0 0.0
    %1976 = vmatprep.subr.mxu0 0.0
    %1977 = vmatpush1.msra.mxu0 0.0
    %1978 = vmatprep.subr.mxu0 0.0
    %1979 = vmatpush1.msra.mxu0 0.0
    %1980 = vmatprep.subr.mxu0 0.0
    %1981 = vmatpush1.msra.mxu0 0.0
    %1982 = vmatprep.subr.mxu0 0.0
    %1983 = vmatpush1.msra.mxu0 0.0
    %1984 = vmatprep.subr.mxu0 0.0
    %1985 = vmatpush1.msra.mxu0 0.0
    %1986 = vmatprep.subr.mxu0 0.0
    %1987 = vmatpush1.msra.mxu0 0.0
    %1988 = vmatprep.subr.mxu0 0.0
    %1989 = vmatpush1.msra.mxu0 0.0
    %1990 = vmatprep.subr.mxu0 0.0
    %1991 = vmatpush1.msra.mxu0 0.0
    %1992 = vmatprep.mubr.f32.mxu0 0.0
    %v1993 = vand.u32 %v1826, 4294901760
    %1994 = vmatmul.mubr.f32.gmra.mrb[0].mxu0 %v1993
    %v1995 = vpop.f32.mrb[0].mxu0
    %v1996 = vadd.f32 %v1905, %v1995
    %v1997 = vpop.f32.mrb[0].mxu0
    %1998 = vmatprep.mubr.f32.mxu0 0.0
    %v1999 = vand.u32 %v1829, 4294901760
    %2000 = vmatmul.mubr.f32.gmra.mrb[0].mxu0 %v1999
    %v2001 = vpop.f32.mrb[0].mxu0
    %v2002 = vadd.f32 %v1915, %v2001
    %v2003 = vpop.f32.mrb[0].mxu0
    %2004 = vdwg.mxu0
    %2005 = vmatprep.subr.mxu0 0.0
    %v2006 = vand.u32 %v1814, 4294901760
    %v2007 = vsub.f32 %v1814, %v2006
    %2008 = vmatpush1.msra.mxu0 %v2007
    %2009 = vmatprep.subr.mxu0 0.0
    %v2010 = vand.u32 %v1816, 4294901760
    %v2011 = vsub.f32 %v1816, %v2010
    %2012 = vmatpush1.msra.mxu0 %v2011
    %2013 = vmatprep.subr.mxu0 0.0
    %2014 = vmatpush1.msra.mxu0 0.0
    %2015 = vmatprep.subr.mxu0 0.0
    %2016 = vmatpush1.msra.mxu0 0.0
    %2017 = vmatprep.subr.mxu0 0.0
    %2018 = vmatpush1.msra.mxu0 0.0
    %2019 = vmatprep.subr.mxu0 0.0
    %2020 = vmatpush1.msra.mxu0 0.0
    %2021 = vmatprep.subr.mxu0 0.0
    %2022 = vmatpush1.msra.mxu0 0.0
    %2023 = vmatprep.subr.mxu0 0.0
    %2024 = vmatpush1.msra.mxu0 0.0
    %2025 = vmatprep.subr.mxu0 0.0
    %2026 = vmatpush1.msra.mxu0 0.0
    %2027 = vmatprep.subr.mxu0 0.0
    %2028 = vmatpush1.msra.mxu0 0.0
    %2029 = vmatprep.subr.mxu0 0.0
    %2030 = vmatpush1.msra.mxu0 0.0
    %2031 = vmatprep.subr.mxu0 0.0
    %2032 = vmatpush1.msra.mxu0 0.0
    %2033 = vmatprep.subr.mxu0 0.0
    %2034 = vmatpush1.msra.mxu0 0.0
    %2035 = vmatprep.subr.mxu0 0.0
    %2036 = vmatpush1.msra.mxu0 0.0
    %2037 = vmatprep.subr.mxu0 0.0
    %2038 = vmatpush1.msra.mxu0 0.0
    %2039 = vmatprep.subr.mxu0 0.0
    %2040 = vmatpush1.msra.mxu0 0.0
    %2041 = vmatprep.subr.mxu0 0.0
    %2042 = vmatpush1.msra.mxu0 0.0
    %2043 = vmatprep.subr.mxu0 0.0
    %2044 = vmatpush1.msra.mxu0 0.0
    %2045 = vmatprep.subr.mxu0 0.0
    %2046 = vmatpush1.msra.mxu0 0.0
    %2047 = vmatprep.subr.mxu0 0.0
    %2048 = vmatpush1.msra.mxu0 0.0
    %2049 = vmatprep.subr.mxu0 0.0
    %2050 = vmatpush1.msra.mxu0 0.0
    %2051 = vmatprep.subr.mxu0 0.0
    %2052 = vmatpush1.msra.mxu0 0.0
    %2053 = vmatprep.subr.mxu0 0.0
    %2054 = vmatpush1.msra.mxu0 0.0
    %2055 = vmatprep.subr.mxu0 0.0
    %2056 = vmatpush1.msra.mxu0 0.0
    %2057 = vmatprep.subr.mxu0 0.0
    %2058 = vmatpush1.msra.mxu0 0.0
    %2059 = vmatprep.subr.mxu0 0.0
    %2060 = vmatpush1.msra.mxu0 0.0
    %2061 = vmatprep.subr.mxu0 0.0
    %2062 = vmatpush1.msra.mxu0 0.0
    %2063 = vmatprep.subr.mxu0 0.0
    %2064 = vmatpush1.msra.mxu0 0.0
    %2065 = vmatprep.subr.mxu0 0.0
    %2066 = vmatpush1.msra.mxu0 0.0
    %2067 = vmatprep.subr.mxu0 0.0
    %2068 = vmatpush1.msra.mxu0 0.0
    %2069 = vmatprep.subr.mxu0 0.0
    %2070 = vmatpush1.msra.mxu0 0.0
    %2071 = vmatprep.subr.mxu0 0.0
    %2072 = vmatpush1.msra.mxu0 0.0
    %2073 = vmatprep.mubr.f32.mxu0 0.0
    %v2074 = vand.u32 %v1826, 4294901760
    %v2075 = vsub.f32 %v1826, %v2074
    %2076 = vmatmul.mubr.f32.gmra.mrb[0].mxu0 %v2075
    %v2077 = vpop.f32.mrb[0].mxu0
    %v2078 = vadd.f32 %v1996, %v2077
    %v2079 = vpop.f32.mrb[0].mxu0
    %2080 = vmatprep.mubr.f32.mxu0 0.0
    %v2081 = vand.u32 %v1829, 4294901760
    %v2082 = vsub.f32 %v1829, %v2081
    %2083 = vmatmul.mubr.f32.gmra.mrb[0].mxu0 %v2082
    %v2084 = vpop.f32.mrb[0].mxu0
    %v2085 = vadd.f32 %v2002, %v2084
    %v2086 = vpop.f32.mrb[0].mxu0
    %2087 = vdwg.mxu0
    %2088 = vmatprep.subr.mxu0 0.0
    %v2089 = vand.u32 %v1814, 4294901760
    %2090 = vmatpush1.msra.mxu0 %v2089
    %2091 = vmatprep.subr.mxu0 0.0
    %v2092 = vand.u32 %v1816, 4294901760
    %2093 = vmatpush1.msra.mxu0 %v2092
    %2094 = vmatprep.subr.mxu0 0.0
    %2095 = vmatpush1.msra.mxu0 0.0
    %2096 = vmatprep.subr.mxu0 0.0
    %2097 = vmatpush1.msra.mxu0 0.0
    %2098 = vmatprep.subr.mxu0 0.0
    %2099 = vmatpush1.msra.mxu0 0.0
    %2100 = vmatprep.subr.mxu0 0.0
    %2101 = vmatpush1.msra.mxu0 0.0
    %2102 = vmatprep.subr.mxu0 0.0
    %2103 = vmatpush1.msra.mxu0 0.0
    %2104 = vmatprep.subr.mxu0 0.0
    %2105 = vmatpush1.msra.mxu0 0.0
    %2106 = vmatprep.subr.mxu0 0.0
    %2107 = vmatpush1.msra.mxu0 0.0
    %2108 = vmatprep.subr.mxu0 0.0
    %2109 = vmatpush1.msra.mxu0 0.0
    %2110 = vmatprep.subr.mxu0 0.0
    %2111 = vmatpush1.msra.mxu0 0.0
    %2112 = vmatprep.subr.mxu0 0.0
    %2113 = vmatpush1.msra.mxu0 0.0
    %2114 = vmatprep.subr.mxu0 0.0
    %2115 = vmatpush1.msra.mxu0 0.0
    %2116 = vmatprep.subr.mxu0 0.0
    %2117 = vmatpush1.msra.mxu0 0.0
    %2118 = vmatprep.subr.mxu0 0.0
    %2119 = vmatpush1.msra.mxu0 0.0
    %2120 = vmatprep.subr.mxu0 0.0
    %2121 = vmatpush1.msra.mxu0 0.0
    %2122 = vmatprep.subr.mxu0 0.0
    %2123 = vmatpush1.msra.mxu0 0.0
    %2124 = vmatprep.subr.mxu0 0.0
    %2125 = vmatpush1.msra.mxu0 0.0
    %2126 = vmatprep.subr.mxu0 0.0
    %2127 = vmatpush1.msra.mxu0 0.0
    %2128 = vmatprep.subr.mxu0 0.0
    %2129 = vmatpush1.msra.mxu0 0.0
    %2130 = vmatprep.subr.mxu0 0.0
    %2131 = vmatpush1.msra.mxu0 0.0
    %2132 = vmatprep.subr.mxu0 0.0
    %2133 = vmatpush1.msra.mxu0 0.0
    %2134 = vmatprep.subr.mxu0 0.0
    %2135 = vmatpush1.msra.mxu0 0.0
    %2136 = vmatprep.subr.mxu0 0.0
    %2137 = vmatpush1.msra.mxu0 0.0
    %2138 = vmatprep.subr.mxu0 0.0
    %2139 = vmatpush1.msra.mxu0 0.0
    %2140 = vmatprep.subr.mxu0 0.0
    %2141 = vmatpush1.msra.mxu0 0.0
    %2142 = vmatprep.subr.mxu0 0.0
    %2143 = vmatpush1.msra.mxu0 0.0
    %2144 = vmatprep.subr.mxu0 0.0
    %2145 = vmatpush1.msra.mxu0 0.0
    %2146 = vmatprep.subr.mxu0 0.0
    %2147 = vmatpush1.msra.mxu0 0.0
    %2148 = vmatprep.subr.mxu0 0.0
    %2149 = vmatpush1.msra.mxu0 0.0
    %2150 = vmatprep.subr.mxu0 0.0
    %2151 = vmatpush1.msra.mxu0 0.0
    %2152 = vmatprep.subr.mxu0 0.0
    %2153 = vmatpush1.msra.mxu0 0.0
    %2154 = vmatprep.mubr.f32.mxu0 0.0
    %v2155 = vand.u32 %v1826, 4294901760
    %v2156 = vsub.f32 %v1826, %v2155
    %v2157 = vand.u32 %v2156, 4294901760
    %2158 = vmatmul.mubr.f32.gmra.mrb[0].mxu0 %v2157
    %v2159 = vpop.f32.mrb[0].mxu0
    %v2160 = vadd.f32 %v2078, %v2159
    %v2161 = vpop.f32.mrb[0].mxu0
    %2162 = vmatprep.mubr.f32.mxu0 0.0
    %v2163 = vand.u32 %v1829, 4294901760
    %v2164 = vsub.f32 %v1829, %v2163
    %v2165 = vand.u32 %v2164, 4294901760
    %2166 = vmatmul.mubr.f32.gmra.mrb[0].mxu0 %v2165
    %v2167 = vpop.f32.mrb[0].mxu0
    %v2168 = vadd.f32 %v2085, %v2167
    %v2169 = vpop.f32.mrb[0].mxu0
    %2170 = vdwg.mxu0
    %2171 = vmatprep.subr.mxu0 0.0
    %v2172 = vand.u32 %v1814, 4294901760
    %v2173 = vsub.f32 %v1814, %v2172
    %v2174 = vand.u32 %v2173, 4294901760
    %2175 = vmatpush1.msra.mxu0 %v2174
    %2176 = vmatprep.subr.mxu0 0.0
    %v2177 = vand.u32 %v1816, 4294901760
    %v2178 = vsub.f32 %v1816, %v2177
    %v2179 = vand.u32 %v2178, 4294901760
    %2180 = vmatpush1.msra.mxu0 %v2179
    %2181 = vmatprep.subr.mxu0 0.0
    %2182 = vmatpush1.msra.mxu0 0.0
    %2183 = vmatprep.subr.mxu0 0.0
    %2184 = vmatpush1.msra.mxu0 0.0
    %2185 = vmatprep.subr.mxu0 0.0
    %2186 = vmatpush1.msra.mxu0 0.0
    %2187 = vmatprep.subr.mxu0 0.0
    %2188 = vmatpush1.msra.mxu0 0.0
    %2189 = vmatprep.subr.mxu0 0.0
    %2190 = vmatpush1.msra.mxu0 0.0
    %2191 = vmatprep.subr.mxu0 0.0
    %2192 = vmatpush1.msra.mxu0 0.0
    %2193 = vmatprep.subr.mxu0 0.0
    %2194 = vmatpush1.msra.mxu0 0.0
    %2195 = vmatprep.subr.mxu0 0.0
    %2196 = vmatpush1.msra.mxu0 0.0
    %2197 = vmatprep.subr.mxu0 0.0
    %2198 = vmatpush1.msra.mxu0 0.0
    %2199 = vmatprep.subr.mxu0 0.0
    %2200 = vmatpush1.msra.mxu0 0.0
    %2201 = vmatprep.subr.mxu0 0.0
    %2202 = vmatpush1.msra.mxu0 0.0
    %2203 = vmatprep.subr.mxu0 0.0
    %2204 = vmatpush1.msra.mxu0 0.0
    %2205 = vmatprep.subr.mxu0 0.0
    %2206 = vmatpush1.msra.mxu0 0.0
    %2207 = vmatprep.subr.mxu0 0.0
    %2208 = vmatpush1.msra.mxu0 0.0
    %2209 = vmatprep.subr.mxu0 0.0
    %2210 = vmatpush1.msra.mxu0 0.0
    %2211 = vmatprep.subr.mxu0 0.0
    %2212 = vmatpush1.msra.mxu0 0.0
    %2213 = vmatprep.subr.mxu0 0.0
    %2214 = vmatpush1.msra.mxu0 0.0
    %2215 = vmatprep.subr.mxu0 0.0
    %2216 = vmatpush1.msra.mxu0 0.0
    %2217 = vmatprep.subr.mxu0 0.0
    %2218 = vmatpush1.msra.mxu0 0.0
    %2219 = vmatprep.subr.mxu0 0.0
    %2220 = vmatpush1.msra.mxu0 0.0
    %2221 = vmatprep.subr.mxu0 0.0
    %2222 = vmatpush1.msra.mxu0 0.0
    %2223 = vmatprep.subr.mxu0 0.0
    %2224 = vmatpush1.msra.mxu0 0.0
    %2225 = vmatprep.subr.mxu0 0.0
    %2226 = vmatpush1.msra.mxu0 0.0
    %2227 = vmatprep.subr.mxu0 0.0
    %2228 = vmatpush1.msra.mxu0 0.0
    %2229 = vmatprep.subr.mxu0 0.0
    %2230 = vmatpush1.msra.mxu0 0.0
    %2231 = vmatprep.subr.mxu0 0.0
    %2232 = vmatpush1.msra.mxu0 0.0
    %2233 = vmatprep.subr.mxu0 0.0
    %2234 = vmatpush1.msra.mxu0 0.0
    %2235 = vmatprep.subr.mxu0 0.0
    %2236 = vmatpush1.msra.mxu0 0.0
    %2237 = vmatprep.subr.mxu0 0.0
    %2238 = vmatpush1.msra.mxu0 0.0
    %2239 = vmatprep.subr.mxu0 0.0
    %2240 = vmatpush1.msra.mxu0 0.0
    %2241 = vmatprep.mubr.f32.mxu0 0.0
    %v2242 = vand.u32 %v1826, 4294901760
    %2243 = vmatmul.mubr.f32.gmra.mrb[0].mxu0 %v2242
    %v2244 = vpop.f32.mrb[0].mxu0
    %v2245 = vadd.f32 %v2160, %v2244
    %v2246 = vpop.f32.mrb[0].mxu0
    %2247 = vmatprep.mubr.f32.mxu0 0.0
    %v2248 = vand.u32 %v1829, 4294901760
    %2249 = vmatmul.mubr.f32.gmra.mrb[0].mxu0 %v2248
    %v2250 = vpop.f32.mrb[0].mxu0
    %v2251 = vadd.f32 %v2168, %v2250
    %v2252 = vpop.f32.mrb[0].mxu0
    %2253 = vdwg.mxu0
    %2254 = vmatprep.subr.mxu0 0.0
    %v2255 = vand.u32 %v1814, 4294901760
    %2256 = vmatpush1.msra.mxu0 %v2255
    %2257 = vmatprep.subr.mxu0 0.0
    %v2258 = vand.u32 %v1816, 4294901760
    %2259 = vmatpush1.msra.mxu0 %v2258
    %2260 = vmatprep.subr.mxu0 0.0
    %2261 = vmatpush1.msra.mxu0 0.0
    %2262 = vmatprep.subr.mxu0 0.0
    %2263 = vmatpush1.msra.mxu0 0.0
    %2264 = vmatprep.subr.mxu0 0.0
    %2265 = vmatpush1.msra.mxu0 0.0
    %2266 = vmatprep.subr.mxu0 0.0
    %2267 = vmatpush1.msra.mxu0 0.0
    %2268 = vmatprep.subr.mxu0 0.0
    %2269 = vmatpush1.msra.mxu0 0.0
    %2270 = vmatprep.subr.mxu0 0.0
    %2271 = vmatpush1.msra.mxu0 0.0
    %2272 = vmatprep.subr.mxu0 0.0
    %2273 = vmatpush1.msra.mxu0 0.0
    %2274 = vmatprep.subr.mxu0 0.0
    %2275 = vmatpush1.msra.mxu0 0.0
    %2276 = vmatprep.subr.mxu0 0.0
    %2277 = vmatpush1.msra.mxu0 0.0
    %2278 = vmatprep.subr.mxu0 0.0
    %2279 = vmatpush1.msra.mxu0 0.0
    %2280 = vmatprep.subr.mxu0 0.0
    %2281 = vmatpush1.msra.mxu0 0.0
    %2282 = vmatprep.subr.mxu0 0.0
    %2283 = vmatpush1.msra.mxu0 0.0
    %2284 = vmatprep.subr.mxu0 0.0
    %2285 = vmatpush1.msra.mxu0 0.0
    %2286 = vmatprep.subr.mxu0 0.0
    %2287 = vmatpush1.msra.mxu0 0.0
    %2288 = vmatprep.subr.mxu0 0.0
    %2289 = vmatpush1.msra.mxu0 0.0
    %2290 = vmatprep.subr.mxu0 0.0
    %2291 = vmatpush1.msra.mxu0 0.0
    %2292 = vmatprep.subr.mxu0 0.0
    %2293 = vmatpush1.msra.mxu0 0.0
    %2294 = vmatprep.subr.mxu0 0.0
    %2295 = vmatpush1.msra.mxu0 0.0
    %2296 = vmatprep.subr.mxu0 0.0
    %2297 = vmatpush1.msra.mxu0 0.0
    %2298 = vmatprep.subr.mxu0 0.0
    %2299 = vmatpush1.msra.mxu0 0.0
    %2300 = vmatprep.subr.mxu0 0.0
    %2301 = vmatpush1.msra.mxu0 0.0
    %2302 = vmatprep.subr.mxu0 0.0
    %2303 = vmatpush1.msra.mxu0 0.0
    %2304 = vmatprep.subr.mxu0 0.0
    %2305 = vmatpush1.msra.mxu0 0.0
    %2306 = vmatprep.subr.mxu0 0.0
    %2307 = vmatpush1.msra.mxu0 0.0
    %2308 = vmatprep.subr.mxu0 0.0
    %2309 = vmatpush1.msra.mxu0 0.0
    %2310 = vmatprep.subr.mxu0 0.0
    %2311 = vmatpush1.msra.mxu0 0.0
    %2312 = vmatprep.subr.mxu0 0.0
    %2313 = vmatpush1.msra.mxu0 0.0
    %2314 = vmatprep.subr.mxu0 0.0
    %2315 = vmatpush1.msra.mxu0 0.0
    %2316 = vmatprep.subr.mxu0 0.0
    %2317 = vmatpush1.msra.mxu0 0.0
    %2318 = vmatprep.subr.mxu0 0.0
    %2319 = vmatpush1.msra.mxu0 0.0
    %2320 = vmatprep.mubr.f32.mxu0 0.0
    %v2321 = vand.u32 %v1826, 4294901760
    %2322 = vmatmul.mubr.f32.gmra.mrb[0].mxu0 %v2321
    %v2323 = vpop.f32.mrb[0].mxu0
    %v2324 = vadd.f32 %v2245, %v2323
    %v2325 = vpop.f32.mrb[0].mxu0
    %2326 = vmatprep.mubr.f32.mxu0 0.0
    %v2327 = vand.u32 %v1829, 4294901760
    %2328 = vmatmul.mubr.f32.gmra.mrb[0].mxu0 %v2327
    %v2329 = vpop.f32.mrb[0].mxu0
    %v2330 = vadd.f32 %v2251, %v2329
    %v2331 = vpop.f32.mrb[0].mxu0
    %2332 = vdwg.mxu0
    %2333 = vrot.lane.b32.xlu0 %v1751, 112
    %v2334 = vpop.permute.xlu0 %2333
    %v2336 = vadd.f32 %v2324, %v2334
    %v2337 = vadd.f32 %v2330, %v2334
    %vm2338 = vcmp.gt.f32.partialorder %v2336, 0.0
    %vm2339 = vcmp.gt.f32.partialorder %v2337, 0.0
    %v2340 = vmin.f32 %v2336, 0.0
    %v2341 = vmin.f32 %v2337, 0.0
    %v2342 = vmul.f32 %v2340, 1.442695
    %v2343 = vpow.pop %v2342
    %v2344 = vmul.f32 %v2341, 1.442695
    %v2345 = vpow.pop %v2344
    %v2346 = vsub.f32 %v2343, 1.0
    %v2347 = vsub.f32 %v2345, 1.0
    %v2348 = vsel %vm2338, %v2336, %v2346
    %v2349 = vsel %vm2339, %v2337, %v2347
    %2352 = vrot.lane.b32.xlu0 %v2348, 16
    %v2353 = vpop.permute.xlu0 %2352
    %2354 = vrot.lane.b32.xlu0 %v2349, 16
    %v2355 = vpop.permute.xlu0 %2354
    %vm2358 = vcmask 261248
    %2359 = vst.msk [vmem:[#allocation10] sm:$0xff] %vm2358, %v2353
    %2360 = vst.msk [vmem:[#allocation10 + $0x8] sm:$0xff] %vm2358, %v2355
    %2361 = vset.pattern.permute.xlu0 66
    %2362 = vperm.xlu0 %2361, %v1180
    %v2363 = vpop.permute.xlu0 %2362
    %2365 = vset.pattern.permute.xlu0 66
    %2366 = vperm.xlu0 %2365, %v1186
    %v2367 = vpop.permute.xlu0 %2366
    %v2369 = vlaneseq
    %v2370 = vshrl.u32 %v2369, 7
    %v2371 = vsub.s32 2, %v2370
    %v2372 = vrot.slane %v641, %v2371
    %v2373 = vadd.f32 %v2363, %v2372
    %v2374 = vadd.f32 %v2367, %v2372
    %vm2375 = vcmp.gt.f32.partialorder %v2373, 0.0
    %vm2376 = vcmp.gt.f32.partialorder %v2374, 0.0
    %v2377 = vmul.f32 %v2373, 0.2
    %v2378 = vmul.f32 %v2374, 0.2
    %v2379 = vsel %vm2375, %v2373, %v2377
    %v2380 = vsel %vm2376, %v2374, %v2378
    %v2381 = vadd.f32 %v2379, %v1189
    %v2382 = vadd.f32 %v2380, %v1190
    %v2383 = vsel %vm1216, %v2381, -inf
    %2384 = vmax.xlane.f32.xlu0 %v2383
    %v2385 = vpop.xlane.xlu0 %2384
    %v2386 = vsel %vm1216, %v2382, -inf
    %2387 = vmax.xlane.f32.xlu0 %v2386
    %v2388 = vpop.xlane.xlu0 %2387
    %v2389 = vsub.f32 %v2381, %v2385
    %v2390 = vsub.f32 %v2382, %v2388
    %v2391 = vmul.f32 %v2389, 1.442695
    %v2392 = vpow.pop %v2391
    %v2393 = vmul.f32 %v2390, 1.442695
    %v2394 = vpow.pop %v2393
    %v2395 = vsel %vm1216, %v2392, 0.0
    %2396 = vadd.xlane.f32.xlu0 %v2395
    %v2397 = vpop.xlane.xlu0 %2396
    %v2398 = vsel %vm1216, %v2394, 0.0
    %2399 = vadd.xlane.f32.xlu0 %v2398
    %v2400 = vpop.xlane.xlu0 %2399
    %v2401 = vrcp.pop %v2397
    %v2402 = vmul.f32 %v2392, %v2401
    %v2403 = vrcp.pop %v2400
    %v2404 = vmul.f32 %v2394, %v2403
    %2405 = vrot.lane.b32.xlu0 %v608, 96
    %v2406 = vpop.permute.xlu0 %2405
    %2407 = vrot.lane.b32.xlu0 %v614, 96
    %v2408 = vpop.permute.xlu0 %2407
    %2411 = vrot.lane.b32.xlu0 %v1180, 96
    %v2412 = vpop.permute.xlu0 %2411
    %2413 = vrot.lane.b32.xlu0 %v1186, 96
    %v2414 = vpop.permute.xlu0 %2413
    %v2418 = vsel %vm1216, %v2402, 0
    %v2421 = vsel %vm1216, %v2404, 0
    %2423 = vmatprep.subr.mxu0 0.0
    %v2424 = vand.u32 %v2406, 4294901760
    %2425 = vmatpush1.msra.mxu0 %v2424
    %2426 = vmatprep.subr.mxu0 0.0
    %v2427 = vand.u32 %v2408, 4294901760
    %2428 = vmatpush1.msra.mxu0 %v2427
    %2429 = vmatprep.subr.mxu0 0.0
    %2430 = vmatpush1.msra.mxu0 0.0
    %2431 = vmatprep.subr.mxu0 0.0
    %2432 = vmatpush1.msra.mxu0 0.0
    %2433 = vmatprep.subr.mxu0 0.0
    %2434 = vmatpush1.msra.mxu0 0.0
    %2435 = vmatprep.subr.mxu0 0.0
    %2436 = vmatpush1.msra.mxu0 0.0
    %2437 = vmatprep.subr.mxu0 0.0
    %2438 = vmatpush1.msra.mxu0 0.0
    %2439 = vmatprep.subr.mxu0 0.0
    %2440 = vmatpush1.msra.mxu0 0.0
    %2441 = vmatprep.subr.mxu0 0.0
    %2442 = vmatpush1.msra.mxu0 0.0
    %2443 = vmatprep.subr.mxu0 0.0
    %2444 = vmatpush1.msra.mxu0 0.0
    %2445 = vmatprep.subr.mxu0 0.0
    %2446 = vmatpush1.msra.mxu0 0.0
    %2447 = vmatprep.subr.mxu0 0.0
    %2448 = vmatpush1.msra.mxu0 0.0
    %2449 = vmatprep.subr.mxu0 0.0
    %2450 = vmatpush1.msra.mxu0 0.0
    %2451 = vmatprep.subr.mxu0 0.0
    %2452 = vmatpush1.msra.mxu0 0.0
    %2453 = vmatprep.subr.mxu0 0.0
    %2454 = vmatpush1.msra.mxu0 0.0
    %2455 = vmatprep.subr.mxu0 0.0
    %2456 = vmatpush1.msra.mxu0 0.0
    %2457 = vmatprep.subr.mxu0 0.0
    %2458 = vmatpush1.msra.mxu0 0.0
    %2459 = vmatprep.subr.mxu0 0.0
    %2460 = vmatpush1.msra.mxu0 0.0
    %2461 = vmatprep.subr.mxu0 0.0
    %2462 = vmatpush1.msra.mxu0 0.0
    %2463 = vmatprep.subr.mxu0 0.0
    %2464 = vmatpush1.msra.mxu0 0.0
    %2465 = vmatprep.subr.mxu0 0.0
    %2466 = vmatpush1.msra.mxu0 0.0
    %2467 = vmatprep.subr.mxu0 0.0
    %2468 = vmatpush1.msra.mxu0 0.0
    %2469 = vmatprep.subr.mxu0 0.0
    %2470 = vmatpush1.msra.mxu0 0.0
    %2471 = vmatprep.subr.mxu0 0.0
    %2472 = vmatpush1.msra.mxu0 0.0
    %2473 = vmatprep.subr.mxu0 0.0
    %2474 = vmatpush1.msra.mxu0 0.0
    %2475 = vmatprep.subr.mxu0 0.0
    %2476 = vmatpush1.msra.mxu0 0.0
    %2477 = vmatprep.subr.mxu0 0.0
    %2478 = vmatpush1.msra.mxu0 0.0
    %2479 = vmatprep.subr.mxu0 0.0
    %2480 = vmatpush1.msra.mxu0 0.0
    %2481 = vmatprep.subr.mxu0 0.0
    %2482 = vmatpush1.msra.mxu0 0.0
    %2483 = vmatprep.subr.mxu0 0.0
    %2484 = vmatpush1.msra.mxu0 0.0
    %2485 = vmatprep.subr.mxu0 0.0
    %2486 = vmatpush1.msra.mxu0 0.0
    %2487 = vmatprep.subr.mxu0 0.0
    %2488 = vmatpush1.msra.mxu0 0.0
    %2489 = vmatprep.mubr.f32.mxu0 0.0
    %v2490 = vand.u32 %v2418, 4294901760
    %v2491 = vsub.f32 %v2418, %v2490
    %v2492 = vand.u32 %v2491, 4294901760
    %v2493 = vsub.f32 %v2491, %v2492
    %v2494 = vand.u32 %v2493, 4294901760
    %2495 = vmatmul.mubr.f32.gmra.mrb[0].mxu0 %v2494
    %v2496 = vpop.f32.mrb[0].mxu0
    %v2497 = vadd.f32 %v2412, %v2496
    %v2498 = vpop.f32.mrb[0].mxu0
    %2499 = vmatprep.mubr.f32.mxu0 0.0
    %v2500 = vand.u32 %v2421, 4294901760
    %v2501 = vsub.f32 %v2421, %v2500
    %v2502 = vand.u32 %v2501, 4294901760
    %v2503 = vsub.f32 %v2501, %v2502
    %v2504 = vand.u32 %v2503, 4294901760
    %2505 = vmatmul.mubr.f32.gmra.mrb[0].mxu0 %v2504
    %v2506 = vpop.f32.mrb[0].mxu0
    %v2507 = vadd.f32 %v2414, %v2506
    %v2508 = vpop.f32.mrb[0].mxu0
    %2509 = vdwg.mxu0
    %2510 = vmatprep.subr.mxu0 0.0
    %v2511 = vand.u32 %v2406, 4294901760
    %v2512 = vsub.f32 %v2406, %v2511
    %v2513 = vand.u32 %v2512, 4294901760
    %v2514 = vsub.f32 %v2512, %v2513
    %v2515 = vand.u32 %v2514, 4294901760
    %2516 = vmatpush1.msra.mxu0 %v2515
    %2517 = vmatprep.subr.mxu0 0.0
    %v2518 = vand.u32 %v2408, 4294901760
    %v2519 = vsub.f32 %v2408, %v2518
    %v2520 = vand.u32 %v2519, 4294901760
    %v2521 = vsub.f32 %v2519, %v2520
    %v2522 = vand.u32 %v2521, 4294901760
    %2523 = vmatpush1.msra.mxu0 %v2522
    %2524 = vmatprep.subr.mxu0 0.0
    %2525 = vmatpush1.msra.mxu0 0.0
    %2526 = vmatprep.subr.mxu0 0.0
    %2527 = vmatpush1.msra.mxu0 0.0
    %2528 = vmatprep.subr.mxu0 0.0
    %2529 = vmatpush1.msra.mxu0 0.0
    %2530 = vmatprep.subr.mxu0 0.0
    %2531 = vmatpush1.msra.mxu0 0.0
    %2532 = vmatprep.subr.mxu0 0.0
    %2533 = vmatpush1.msra.mxu0 0.0
    %2534 = vmatprep.subr.mxu0 0.0
    %2535 = vmatpush1.msra.mxu0 0.0
    %2536 = vmatprep.subr.mxu0 0.0
    %2537 = vmatpush1.msra.mxu0 0.0
    %2538 = vmatprep.subr.mxu0 0.0
    %2539 = vmatpush1.msra.mxu0 0.0
    %2540 = vmatprep.subr.mxu0 0.0
    %2541 = vmatpush1.msra.mxu0 0.0
    %2542 = vmatprep.subr.mxu0 0.0
    %2543 = vmatpush1.msra.mxu0 0.0
    %2544 = vmatprep.subr.mxu0 0.0
    %2545 = vmatpush1.msra.mxu0 0.0
    %2546 = vmatprep.subr.mxu0 0.0
    %2547 = vmatpush1.msra.mxu0 0.0
    %2548 = vmatprep.subr.mxu0 0.0
    %2549 = vmatpush1.msra.mxu0 0.0
    %2550 = vmatprep.subr.mxu0 0.0
    %2551 = vmatpush1.msra.mxu0 0.0
    %2552 = vmatprep.subr.mxu0 0.0
    %2553 = vmatpush1.msra.mxu0 0.0
    %2554 = vmatprep.subr.mxu0 0.0
    %2555 = vmatpush1.msra.mxu0 0.0
    %2556 = vmatprep.subr.mxu0 0.0
    %2557 = vmatpush1.msra.mxu0 0.0
    %2558 = vmatprep.subr.mxu0 0.0
    %2559 = vmatpush1.msra.mxu0 0.0
    %2560 = vmatprep.subr.mxu0 0.0
    %2561 = vmatpush1.msra.mxu0 0.0
    %2562 = vmatprep.subr.mxu0 0.0
    %2563 = vmatpush1.msra.mxu0 0.0
    %2564 = vmatprep.subr.mxu0 0.0
    %2565 = vmatpush1.msra.mxu0 0.0
    %2566 = vmatprep.subr.mxu0 0.0
    %2567 = vmatpush1.msra.mxu0 0.0
    %2568 = vmatprep.subr.mxu0 0.0
    %2569 = vmatpush1.msra.mxu0 0.0
    %2570 = vmatprep.subr.mxu0 0.0
    %2571 = vmatpush1.msra.mxu0 0.0
    %2572 = vmatprep.subr.mxu0 0.0
    %2573 = vmatpush1.msra.mxu0 0.0
    %2574 = vmatprep.subr.mxu0 0.0
    %2575 = vmatpush1.msra.mxu0 0.0
    %2576 = vmatprep.subr.mxu0 0.0
    %2577 = vmatpush1.msra.mxu0 0.0
    %2578 = vmatprep.subr.mxu0 0.0
    %2579 = vmatpush1.msra.mxu0 0.0
    %2580 = vmatprep.subr.mxu0 0.0
    %2581 = vmatpush1.msra.mxu0 0.0
    %2582 = vmatprep.subr.mxu0 0.0
    %2583 = vmatpush1.msra.mxu0 0.0
    %2584 = vmatprep.mubr.f32.mxu0 0.0
    %v2585 = vand.u32 %v2418, 4294901760
    %2586 = vmatmul.mubr.f32.gmra.mrb[0].mxu0 %v2585
    %v2587 = vpop.f32.mrb[0].mxu0
    %v2588 = vadd.f32 %v2497, %v2587
    %v2589 = vpop.f32.mrb[0].mxu0
    %2590 = vmatprep.mubr.f32.mxu0 0.0
    %v2591 = vand.u32 %v2421, 4294901760
    %2592 = vmatmul.mubr.f32.gmra.mrb[0].mxu0 %v2591
    %v2593 = vpop.f32.mrb[0].mxu0
    %v2594 = vadd.f32 %v2507, %v2593
    %v2595 = vpop.f32.mrb[0].mxu0
    %2596 = vdwg.mxu0
    %2597 = vmatprep.subr.mxu0 0.0
    %v2598 = vand.u32 %v2406, 4294901760
    %v2599 = vsub.f32 %v2406, %v2598
    %2600 = vmatpush1.msra.mxu0 %v2599
    %2601 = vmatprep.subr.mxu0 0.0
    %v2602 = vand.u32 %v2408, 4294901760
    %v2603 = vsub.f32 %v2408, %v2602
    %2604 = vmatpush1.msra.mxu0 %v2603
    %2605 = vmatprep.subr.mxu0 0.0
    %2606 = vmatpush1.msra.mxu0 0.0
    %2607 = vmatprep.subr.mxu0 0.0
    %2608 = vmatpush1.msra.mxu0 0.0
    %2609 = vmatprep.subr.mxu0 0.0
    %2610 = vmatpush1.msra.mxu0 0.0
    %2611 = vmatprep.subr.mxu0 0.0
    %2612 = vmatpush1.msra.mxu0 0.0
    %2613 = vmatprep.subr.mxu0 0.0
    %2614 = vmatpush1.msra.mxu0 0.0
    %2615 = vmatprep.subr.mxu0 0.0
    %2616 = vmatpush1.msra.mxu0 0.0
    %2617 = vmatprep.subr.mxu0 0.0
    %2618 = vmatpush1.msra.mxu0 0.0
    %2619 = vmatprep.subr.mxu0 0.0
    %2620 = vmatpush1.msra.mxu0 0.0
    %2621 = vmatprep.subr.mxu0 0.0
    %2622 = vmatpush1.msra.mxu0 0.0
    %2623 = vmatprep.subr.mxu0 0.0
    %2624 = vmatpush1.msra.mxu0 0.0
    %2625 = vmatprep.subr.mxu0 0.0
    %2626 = vmatpush1.msra.mxu0 0.0
    %2627 = vmatprep.subr.mxu0 0.0
    %2628 = vmatpush1.msra.mxu0 0.0
    %2629 = vmatprep.subr.mxu0 0.0
    %2630 = vmatpush1.msra.mxu0 0.0
    %2631 = vmatprep.subr.mxu0 0.0
    %2632 = vmatpush1.msra.mxu0 0.0
    %2633 = vmatprep.subr.mxu0 0.0
    %2634 = vmatpush1.msra.mxu0 0.0
    %2635 = vmatprep.subr.mxu0 0.0
    %2636 = vmatpush1.msra.mxu0 0.0
    %2637 = vmatprep.subr.mxu0 0.0
    %2638 = vmatpush1.msra.mxu0 0.0
    %2639 = vmatprep.subr.mxu0 0.0
    %2640 = vmatpush1.msra.mxu0 0.0
    %2641 = vmatprep.subr.mxu0 0.0
    %2642 = vmatpush1.msra.mxu0 0.0
    %2643 = vmatprep.subr.mxu0 0.0
    %2644 = vmatpush1.msra.mxu0 0.0
    %2645 = vmatprep.subr.mxu0 0.0
    %2646 = vmatpush1.msra.mxu0 0.0
    %2647 = vmatprep.subr.mxu0 0.0
    %2648 = vmatpush1.msra.mxu0 0.0
    %2649 = vmatprep.subr.mxu0 0.0
    %2650 = vmatpush1.msra.mxu0 0.0
    %2651 = vmatprep.subr.mxu0 0.0
    %2652 = vmatpush1.msra.mxu0 0.0
    %2653 = vmatprep.subr.mxu0 0.0
    %2654 = vmatpush1.msra.mxu0 0.0
    %2655 = vmatprep.subr.mxu0 0.0
    %2656 = vmatpush1.msra.mxu0 0.0
    %2657 = vmatprep.subr.mxu0 0.0
    %2658 = vmatpush1.msra.mxu0 0.0
    %2659 = vmatprep.subr.mxu0 0.0
    %2660 = vmatpush1.msra.mxu0 0.0
    %2661 = vmatprep.subr.mxu0 0.0
    %2662 = vmatpush1.msra.mxu0 0.0
    %2663 = vmatprep.subr.mxu0 0.0
    %2664 = vmatpush1.msra.mxu0 0.0
    %2665 = vmatprep.mubr.f32.mxu0 0.0
    %v2666 = vand.u32 %v2418, 4294901760
    %v2667 = vsub.f32 %v2418, %v2666
    %2668 = vmatmul.mubr.f32.gmra.mrb[0].mxu0 %v2667
    %v2669 = vpop.f32.mrb[0].mxu0
    %v2670 = vadd.f32 %v2588, %v2669
    %v2671 = vpop.f32.mrb[0].mxu0
    %2672 = vmatprep.mubr.f32.mxu0 0.0
    %v2673 = vand.u32 %v2421, 4294901760
    %v2674 = vsub.f32 %v2421, %v2673
    %2675 = vmatmul.mubr.f32.gmra.mrb[0].mxu0 %v2674
    %v2676 = vpop.f32.mrb[0].mxu0
    %v2677 = vadd.f32 %v2594, %v2676
    %v2678 = vpop.f32.mrb[0].mxu0
    %2679 = vdwg.mxu0
    %2680 = vmatprep.subr.mxu0 0.0
    %v2681 = vand.u32 %v2406, 4294901760
    %2682 = vmatpush1.msra.mxu0 %v2681
    %2683 = vmatprep.subr.mxu0 0.0
    %v2684 = vand.u32 %v2408, 4294901760
    %2685 = vmatpush1.msra.mxu0 %v2684
    %2686 = vmatprep.subr.mxu0 0.0
    %2687 = vmatpush1.msra.mxu0 0.0
    %2688 = vmatprep.subr.mxu0 0.0
    %2689 = vmatpush1.msra.mxu0 0.0
    %2690 = vmatprep.subr.mxu0 0.0
    %2691 = vmatpush1.msra.mxu0 0.0
    %2692 = vmatprep.subr.mxu0 0.0
    %2693 = vmatpush1.msra.mxu0 0.0
    %2694 = vmatprep.subr.mxu0 0.0
    %2695 = vmatpush1.msra.mxu0 0.0
    %2696 = vmatprep.subr.mxu0 0.0
    %2697 = vmatpush1.msra.mxu0 0.0
    %2698 = vmatprep.subr.mxu0 0.0
    %2699 = vmatpush1.msra.mxu0 0.0
    %2700 = vmatprep.subr.mxu0 0.0
    %2701 = vmatpush1.msra.mxu0 0.0
    %2702 = vmatprep.subr.mxu0 0.0
    %2703 = vmatpush1.msra.mxu0 0.0
    %2704 = vmatprep.subr.mxu0 0.0
    %2705 = vmatpush1.msra.mxu0 0.0
    %2706 = vmatprep.subr.mxu0 0.0
    %2707 = vmatpush1.msra.mxu0 0.0
    %2708 = vmatprep.subr.mxu0 0.0
    %2709 = vmatpush1.msra.mxu0 0.0
    %2710 = vmatprep.subr.mxu0 0.0
    %2711 = vmatpush1.msra.mxu0 0.0
    %2712 = vmatprep.subr.mxu0 0.0
    %2713 = vmatpush1.msra.mxu0 0.0
    %2714 = vmatprep.subr.mxu0 0.0
    %2715 = vmatpush1.msra.mxu0 0.0
    %2716 = vmatprep.subr.mxu0 0.0
    %2717 = vmatpush1.msra.mxu0 0.0
    %2718 = vmatprep.subr.mxu0 0.0
    %2719 = vmatpush1.msra.mxu0 0.0
    %2720 = vmatprep.subr.mxu0 0.0
    %2721 = vmatpush1.msra.mxu0 0.0
    %2722 = vmatprep.subr.mxu0 0.0
    %2723 = vmatpush1.msra.mxu0 0.0
    %2724 = vmatprep.subr.mxu0 0.0
    %2725 = vmatpush1.msra.mxu0 0.0
    %2726 = vmatprep.subr.mxu0 0.0
    %2727 = vmatpush1.msra.mxu0 0.0
    %2728 = vmatprep.subr.mxu0 0.0
    %2729 = vmatpush1.msra.mxu0 0.0
    %2730 = vmatprep.subr.mxu0 0.0
    %2731 = vmatpush1.msra.mxu0 0.0
    %2732 = vmatprep.subr.mxu0 0.0
    %2733 = vmatpush1.msra.mxu0 0.0
    %2734 = vmatprep.subr.mxu0 0.0
    %2735 = vmatpush1.msra.mxu0 0.0
    %2736 = vmatprep.subr.mxu0 0.0
    %2737 = vmatpush1.msra.mxu0 0.0
    %2738 = vmatprep.subr.mxu0 0.0
    %2739 = vmatpush1.msra.mxu0 0.0
    %2740 = vmatprep.subr.mxu0 0.0
    %2741 = vmatpush1.msra.mxu0 0.0
    %2742 = vmatprep.subr.mxu0 0.0
    %2743 = vmatpush1.msra.mxu0 0.0
    %2744 = vmatprep.subr.mxu0 0.0
    %2745 = vmatpush1.msra.mxu0 0.0
    %2746 = vmatprep.mubr.f32.mxu0 0.0
    %v2747 = vand.u32 %v2418, 4294901760
    %v2748 = vsub.f32 %v2418, %v2747
    %v2749 = vand.u32 %v2748, 4294901760
    %2750 = vmatmul.mubr.f32.gmra.mrb[0].mxu0 %v2749
    %v2751 = vpop.f32.mrb[0].mxu0
    %v2752 = vadd.f32 %v2670, %v2751
    %v2753 = vpop.f32.mrb[0].mxu0
    %2754 = vmatprep.mubr.f32.mxu0 0.0
    %v2755 = vand.u32 %v2421, 4294901760
    %v2756 = vsub.f32 %v2421, %v2755
    %v2757 = vand.u32 %v2756, 4294901760
    %2758 = vmatmul.mubr.f32.gmra.mrb[0].mxu0 %v2757
    %v2759 = vpop.f32.mrb[0].mxu0
    %v2760 = vadd.f32 %v2677, %v2759
    %v2761 = vpop.f32.mrb[0].mxu0
    %2762 = vdwg.mxu0
    %2763 = vmatprep.subr.mxu0 0.0
    %v2764 = vand.u32 %v2406, 4294901760
    %v2765 = vsub.f32 %v2406, %v2764
    %v2766 = vand.u32 %v2765, 4294901760
    %2767 = vmatpush1.msra.mxu0 %v2766
    %2768 = vmatprep.subr.mxu0 0.0
    %v2769 = vand.u32 %v2408, 4294901760
    %v2770 = vsub.f32 %v2408, %v2769
    %v2771 = vand.u32 %v2770, 4294901760
    %2772 = vmatpush1.msra.mxu0 %v2771
    %2773 = vmatprep.subr.mxu0 0.0
    %2774 = vmatpush1.msra.mxu0 0.0
    %2775 = vmatprep.subr.mxu0 0.0
    %2776 = vmatpush1.msra.mxu0 0.0
    %2777 = vmatprep.subr.mxu0 0.0
    %2778 = vmatpush1.msra.mxu0 0.0
    %2779 = vmatprep.subr.mxu0 0.0
    %2780 = vmatpush1.msra.mxu0 0.0
    %2781 = vmatprep.subr.mxu0 0.0
    %2782 = vmatpush1.msra.mxu0 0.0
    %2783 = vmatprep.subr.mxu0 0.0
    %2784 = vmatpush1.msra.mxu0 0.0
    %2785 = vmatprep.subr.mxu0 0.0
    %2786 = vmatpush1.msra.mxu0 0.0
    %2787 = vmatprep.subr.mxu0 0.0
    %2788 = vmatpush1.msra.mxu0 0.0
    %2789 = vmatprep.subr.mxu0 0.0
    %2790 = vmatpush1.msra.mxu0 0.0
    %2791 = vmatprep.subr.mxu0 0.0
    %2792 = vmatpush1.msra.mxu0 0.0
    %2793 = vmatprep.subr.mxu0 0.0
    %2794 = vmatpush1.msra.mxu0 0.0
    %2795 = vmatprep.subr.mxu0 0.0
    %2796 = vmatpush1.msra.mxu0 0.0
    %2797 = vmatprep.subr.mxu0 0.0
    %2798 = vmatpush1.msra.mxu0 0.0
    %2799 = vmatprep.subr.mxu0 0.0
    %2800 = vmatpush1.msra.mxu0 0.0
    %2801 = vmatprep.subr.mxu0 0.0
    %2802 = vmatpush1.msra.mxu0 0.0
    %2803 = vmatprep.subr.mxu0 0.0
    %2804 = vmatpush1.msra.mxu0 0.0
    %2805 = vmatprep.subr.mxu0 0.0
    %2806 = vmatpush1.msra.mxu0 0.0
    %2807 = vmatprep.subr.mxu0 0.0
    %2808 = vmatpush1.msra.mxu0 0.0
    %2809 = vmatprep.subr.mxu0 0.0
    %2810 = vmatpush1.msra.mxu0 0.0
    %2811 = vmatprep.subr.mxu0 0.0
    %2812 = vmatpush1.msra.mxu0 0.0
    %2813 = vmatprep.subr.mxu0 0.0
    %2814 = vmatpush1.msra.mxu0 0.0
    %2815 = vmatprep.subr.mxu0 0.0
    %2816 = vmatpush1.msra.mxu0 0.0
    %2817 = vmatprep.subr.mxu0 0.0
    %2818 = vmatpush1.msra.mxu0 0.0
    %2819 = vmatprep.subr.mxu0 0.0
    %2820 = vmatpush1.msra.mxu0 0.0
    %2821 = vmatprep.subr.mxu0 0.0
    %2822 = vmatpush1.msra.mxu0 0.0
    %2823 = vmatprep.subr.mxu0 0.0
    %2824 = vmatpush1.msra.mxu0 0.0
    %2825 = vmatprep.subr.mxu0 0.0
    %2826 = vmatpush1.msra.mxu0 0.0
    %2827 = vmatprep.subr.mxu0 0.0
    %2828 = vmatpush1.msra.mxu0 0.0
    %2829 = vmatprep.subr.mxu0 0.0
    %2830 = vmatpush1.msra.mxu0 0.0
    %2831 = vmatprep.subr.mxu0 0.0
    %2832 = vmatpush1.msra.mxu0 0.0
    %2833 = vmatprep.mubr.f32.mxu0 0.0
    %v2834 = vand.u32 %v2418, 4294901760
    %2835 = vmatmul.mubr.f32.gmra.mrb[0].mxu0 %v2834
    %v2836 = vpop.f32.mrb[0].mxu0
    %v2837 = vadd.f32 %v2752, %v2836
    %v2838 = vpop.f32.mrb[0].mxu0
    %2839 = vmatprep.mubr.f32.mxu0 0.0
    %v2840 = vand.u32 %v2421, 4294901760
    %2841 = vmatmul.mubr.f32.gmra.mrb[0].mxu0 %v2840
    %v2842 = vpop.f32.mrb[0].mxu0
    %v2843 = vadd.f32 %v2760, %v2842
    %v2844 = vpop.f32.mrb[0].mxu0
    %2845 = vdwg.mxu0
    %2846 = vmatprep.subr.mxu0 0.0
    %v2847 = vand.u32 %v2406, 4294901760
    %2848 = vmatpush1.msra.mxu0 %v2847
    %2849 = vmatprep.subr.mxu0 0.0
    %v2850 = vand.u32 %v2408, 4294901760
    %2851 = vmatpush1.msra.mxu0 %v2850
    %2852 = vmatprep.subr.mxu0 0.0
    %2853 = vmatpush1.msra.mxu0 0.0
    %2854 = vmatprep.subr.mxu0 0.0
    %2855 = vmatpush1.msra.mxu0 0.0
    %2856 = vmatprep.subr.mxu0 0.0
    %2857 = vmatpush1.msra.mxu0 0.0
    %2858 = vmatprep.subr.mxu0 0.0
    %2859 = vmatpush1.msra.mxu0 0.0
    %2860 = vmatprep.subr.mxu0 0.0
    %2861 = vmatpush1.msra.mxu0 0.0
    %2862 = vmatprep.subr.mxu0 0.0
    %2863 = vmatpush1.msra.mxu0 0.0
    %2864 = vmatprep.subr.mxu0 0.0
    %2865 = vmatpush1.msra.mxu0 0.0
    %2866 = vmatprep.subr.mxu0 0.0
    %2867 = vmatpush1.msra.mxu0 0.0
    %2868 = vmatprep.subr.mxu0 0.0
    %2869 = vmatpush1.msra.mxu0 0.0
    %2870 = vmatprep.subr.mxu0 0.0
    %2871 = vmatpush1.msra.mxu0 0.0
    %2872 = vmatprep.subr.mxu0 0.0
    %2873 = vmatpush1.msra.mxu0 0.0
    %2874 = vmatprep.subr.mxu0 0.0
    %2875 = vmatpush1.msra.mxu0 0.0
    %2876 = vmatprep.subr.mxu0 0.0
    %2877 = vmatpush1.msra.mxu0 0.0
    %2878 = vmatprep.subr.mxu0 0.0
    %2879 = vmatpush1.msra.mxu0 0.0
    %2880 = vmatprep.subr.mxu0 0.0
    %2881 = vmatpush1.msra.mxu0 0.0
    %2882 = vmatprep.subr.mxu0 0.0
    %2883 = vmatpush1.msra.mxu0 0.0
    %2884 = vmatprep.subr.mxu0 0.0
    %2885 = vmatpush1.msra.mxu0 0.0
    %2886 = vmatprep.subr.mxu0 0.0
    %2887 = vmatpush1.msra.mxu0 0.0
    %2888 = vmatprep.subr.mxu0 0.0
    %2889 = vmatpush1.msra.mxu0 0.0
    %2890 = vmatprep.subr.mxu0 0.0
    %2891 = vmatpush1.msra.mxu0 0.0
    %2892 = vmatprep.subr.mxu0 0.0
    %2893 = vmatpush1.msra.mxu0 0.0
    %2894 = vmatprep.subr.mxu0 0.0
    %2895 = vmatpush1.msra.mxu0 0.0
    %2896 = vmatprep.subr.mxu0 0.0
    %2897 = vmatpush1.msra.mxu0 0.0
    %2898 = vmatprep.subr.mxu0 0.0
    %2899 = vmatpush1.msra.mxu0 0.0
    %2900 = vmatprep.subr.mxu0 0.0
    %2901 = vmatpush1.msra.mxu0 0.0
    %2902 = vmatprep.subr.mxu0 0.0
    %2903 = vmatpush1.msra.mxu0 0.0
    %2904 = vmatprep.subr.mxu0 0.0
    %2905 = vmatpush1.msra.mxu0 0.0
    %2906 = vmatprep.subr.mxu0 0.0
    %2907 = vmatpush1.msra.mxu0 0.0
    %2908 = vmatprep.subr.mxu0 0.0
    %2909 = vmatpush1.msra.mxu0 0.0
    %2910 = vmatprep.subr.mxu0 0.0
    %2911 = vmatpush1.msra.mxu0 0.0
    %2912 = vmatprep.mubr.f32.mxu0 0.0
    %v2913 = vand.u32 %v2418, 4294901760
    %2914 = vmatmul.mubr.f32.gmra.mrb[0].mxu0 %v2913
    %v2915 = vpop.f32.mrb[0].mxu0
    %v2916 = vadd.f32 %v2837, %v2915
    %v2917 = vpop.f32.mrb[0].mxu0
    %2918 = vmatprep.mubr.f32.mxu0 0.0
    %v2919 = vand.u32 %v2421, 4294901760
    %2920 = vmatmul.mubr.f32.gmra.mrb[0].mxu0 %v2919
    %v2921 = vpop.f32.mrb[0].mxu0
    %v2922 = vadd.f32 %v2843, %v2921
    %v2923 = vpop.f32.mrb[0].mxu0
    %2924 = vdwg.mxu0
    %2925 = vrot.lane.b32.xlu0 %v1751, 96
    %v2926 = vpop.permute.xlu0 %2925
    %v2928 = vadd.f32 %v2916, %v2926
    %v2929 = vadd.f32 %v2922, %v2926
    %vm2930 = vcmp.gt.f32.partialorder %v2928, 0.0
    %vm2931 = vcmp.gt.f32.partialorder %v2929, 0.0
    %v2932 = vmin.f32 %v2928, 0.0
    %v2933 = vmin.f32 %v2929, 0.0
    %v2934 = vmul.f32 %v2932, 1.442695
    %v2935 = vpow.pop %v2934
    %v2936 = vmul.f32 %v2933, 1.442695
    %v2937 = vpow.pop %v2936
    %v2938 = vsub.f32 %v2935, 1.0
    %v2939 = vsub.f32 %v2937, 1.0
    %v2940 = vsel %vm2930, %v2928, %v2938
    %v2941 = vsel %vm2931, %v2929, %v2939
    %2944 = vrot.lane.b32.xlu0 %v2940, 32
    %v2945 = vpop.permute.xlu0 %2944
    %2946 = vrot.lane.b32.xlu0 %v2941, 32
    %v2947 = vpop.permute.xlu0 %2946
    %vm2950 = vcmask 392448
    %2951 = vst.msk [vmem:[#allocation10] sm:$0xff] %vm2950, %v2945
    %2952 = vst.msk [vmem:[#allocation10 + $0x8] sm:$0xff] %vm2950, %v2947
    %2953 = vset.pattern.permute.xlu0 67
    %2954 = vperm.xlu0 %2953, %v1180
    %v2955 = vpop.permute.xlu0 %2954
    %2957 = vset.pattern.permute.xlu0 67
    %2958 = vperm.xlu0 %2957, %v1186
    %v2959 = vpop.permute.xlu0 %2958
    %v2961 = vlaneseq
    %v2962 = vshrl.u32 %v2961, 7
    %v2963 = vsub.s32 3, %v2962
    %v2964 = vrot.slane %v641, %v2963
    %v2965 = vadd.f32 %v2955, %v2964
    %v2966 = vadd.f32 %v2959, %v2964
    %vm2967 = vcmp.gt.f32.partialorder %v2965, 0.0
    %vm2968 = vcmp.gt.f32.partialorder %v2966, 0.0
    %v2969 = vmul.f32 %v2965, 0.2
    %v2970 = vmul.f32 %v2966, 0.2
    %v2971 = vsel %vm2967, %v2965, %v2969
    %v2972 = vsel %vm2968, %v2966, %v2970
    %v2973 = vadd.f32 %v2971, %v1189
    %v2974 = vadd.f32 %v2972, %v1190
    %v2975 = vsel %vm1216, %v2973, -inf
    %2976 = vmax.xlane.f32.xlu0 %v2975
    %v2977 = vpop.xlane.xlu0 %2976
    %v2978 = vsel %vm1216, %v2974, -inf
    %2979 = vmax.xlane.f32.xlu0 %v2978
    %v2980 = vpop.xlane.xlu0 %2979
    %v2981 = vsub.f32 %v2973, %v2977
    %v2982 = vsub.f32 %v2974, %v2980
    %v2983 = vmul.f32 %v2981, 1.442695
    %v2984 = vpow.pop %v2983
    %v2985 = vmul.f32 %v2982, 1.442695
    %v2986 = vpow.pop %v2985
    %v2987 = vsel %vm1216, %v2984, 0.0
    %2988 = vadd.xlane.f32.xlu0 %v2987
    %v2989 = vpop.xlane.xlu0 %2988
    %v2990 = vsel %vm1216, %v2986, 0.0
    %2991 = vadd.xlane.f32.xlu0 %v2990
    %v2992 = vpop.xlane.xlu0 %2991
    %v2993 = vrcp.pop %v2989
    %v2994 = vmul.f32 %v2984, %v2993
    %v2995 = vrcp.pop %v2992
    %v2996 = vmul.f32 %v2986, %v2995
    %2997 = vrot.lane.b32.xlu0 %v608, 80
    %v2998 = vpop.permute.xlu0 %2997
    %2999 = vrot.lane.b32.xlu0 %v614, 80
    %v3000 = vpop.permute.xlu0 %2999
    %3003 = vrot.lane.b32.xlu0 %v1180, 80
    %v3004 = vpop.permute.xlu0 %3003
    %3005 = vrot.lane.b32.xlu0 %v1186, 80
    %v3006 = vpop.permute.xlu0 %3005
    %v3010 = vsel %vm1216, %v2994, 0
    %v3013 = vsel %vm1216, %v2996, 0
    %3015 = vmatprep.subr.mxu0 0.0
    %v3016 = vand.u32 %v2998, 4294901760
    %3017 = vmatpush1.msra.mxu0 %v3016
    %3018 = vmatprep.subr.mxu0 0.0
    %v3019 = vand.u32 %v3000, 4294901760
    %3020 = vmatpush1.msra.mxu0 %v3019
    %3021 = vmatprep.subr.mxu0 0.0
    %3022 = vmatpush1.msra.mxu0 0.0
    %3023 = vmatprep.subr.mxu0 0.0
    %3024 = vmatpush1.msra.mxu0 0.0
    %3025 = vmatprep.subr.mxu0 0.0
    %3026 = vmatpush1.msra.mxu0 0.0
    %3027 = vmatprep.subr.mxu0 0.0
    %3028 = vmatpush1.msra.mxu0 0.0
    %3029 = vmatprep.subr.mxu0 0.0
    %3030 = vmatpush1.msra.mxu0 0.0
    %3031 = vmatprep.subr.mxu0 0.0
    %3032 = vmatpush1.msra.mxu0 0.0
    %3033 = vmatprep.subr.mxu0 0.0
    %3034 = vmatpush1.msra.mxu0 0.0
    %3035 = vmatprep.subr.mxu0 0.0
    %3036 = vmatpush1.msra.mxu0 0.0
    %3037 = vmatprep.subr.mxu0 0.0
    %3038 = vmatpush1.msra.mxu0 0.0
    %3039 = vmatprep.subr.mxu0 0.0
    %3040 = vmatpush1.msra.mxu0 0.0
    %3041 = vmatprep.subr.mxu0 0.0
    %3042 = vmatpush1.msra.mxu0 0.0
    %3043 = vmatprep.subr.mxu0 0.0
    %3044 = vmatpush1.msra.mxu0 0.0
    %3045 = vmatprep.subr.mxu0 0.0
    %3046 = vmatpush1.msra.mxu0 0.0
    %3047 = vmatprep.subr.mxu0 0.0
    %3048 = vmatpush1.msra.mxu0 0.0
    %3049 = vmatprep.subr.mxu0 0.0
    %3050 = vmatpush1.msra.mxu0 0.0
    %3051 = vmatprep.subr.mxu0 0.0
    %3052 = vmatpush1.msra.mxu0 0.0
    %3053 = vmatprep.subr.mxu0 0.0
    %3054 = vmatpush1.msra.mxu0 0.0
    %3055 = vmatprep.subr.mxu0 0.0
    %3056 = vmatpush1.msra.mxu0 0.0
    %3057 = vmatprep.subr.mxu0 0.0
    %3058 = vmatpush1.msra.mxu0 0.0
    %3059 = vmatprep.subr.mxu0 0.0
    %3060 = vmatpush1.msra.mxu0 0.0
    %3061 = vmatprep.subr.mxu0 0.0
    %3062 = vmatpush1.msra.mxu0 0.0
    %3063 = vmatprep.subr.mxu0 0.0
    %3064 = vmatpush1.msra.mxu0 0.0
    %3065 = vmatprep.subr.mxu0 0.0
    %3066 = vmatpush1.msra.mxu0 0.0
    %3067 = vmatprep.subr.mxu0 0.0
    %3068 = vmatpush1.msra.mxu0 0.0
    %3069 = vmatprep.subr.mxu0 0.0
    %3070 = vmatpush1.msra.mxu0 0.0
    %3071 = vmatprep.subr.mxu0 0.0
    %3072 = vmatpush1.msra.mxu0 0.0
    %3073 = vmatprep.subr.mxu0 0.0
    %3074 = vmatpush1.msra.mxu0 0.0
    %3075 = vmatprep.subr.mxu0 0.0
    %3076 = vmatpush1.msra.mxu0 0.0
    %3077 = vmatprep.subr.mxu0 0.0
    %3078 = vmatpush1.msra.mxu0 0.0
    %3079 = vmatprep.subr.mxu0 0.0
    %3080 = vmatpush1.msra.mxu0 0.0
    %3081 = vmatprep.mubr.f32.mxu0 0.0
    %v3082 = vand.u32 %v3010, 4294901760
    %v3083 = vsub.f32 %v3010, %v3082
    %v3084 = vand.u32 %v3083, 4294901760
    %v3085 = vsub.f32 %v3083, %v3084
    %v3086 = vand.u32 %v3085, 4294901760
    %3087 = vmatmul.mubr.f32.gmra.mrb[0].mxu0 %v3086
    %v3088 = vpop.f32.mrb[0].mxu0
    %v3089 = vadd.f32 %v3004, %v3088
    %v3090 = vpop.f32.mrb[0].mxu0
    %3091 = vmatprep.mubr.f32.mxu0 0.0
    %v3092 = vand.u32 %v3013, 4294901760
    %v3093 = vsub.f32 %v3013, %v3092
    %v3094 = vand.u32 %v3093, 4294901760
    %v3095 = vsub.f32 %v3093, %v3094
    %v3096 = vand.u32 %v3095, 4294901760
    %3097 = vmatmul.mubr.f32.gmra.mrb[0].mxu0 %v3096
    %v3098 = vpop.f32.mrb[0].mxu0
    %v3099 = vadd.f32 %v3006, %v3098
    %v3100 = vpop.f32.mrb[0].mxu0
    %3101 = vdwg.mxu0
    %3102 = vmatprep.subr.mxu0 0.0
    %v3103 = vand.u32 %v2998, 4294901760
    %v3104 = vsub.f32 %v2998, %v3103
    %v3105 = vand.u32 %v3104, 4294901760
    %v3106 = vsub.f32 %v3104, %v3105
    %v3107 = vand.u32 %v3106, 4294901760
    %3108 = vmatpush1.msra.mxu0 %v3107
    %3109 = vmatprep.subr.mxu0 0.0
    %v3110 = vand.u32 %v3000, 4294901760
    %v3111 = vsub.f32 %v3000, %v3110
    %v3112 = vand.u32 %v3111, 4294901760
    %v3113 = vsub.f32 %v3111, %v3112
    %v3114 = vand.u32 %v3113, 4294901760
    %3115 = vmatpush1.msra.mxu0 %v3114
    %3116 = vmatprep.subr.mxu0 0.0
    %3117 = vmatpush1.msra.mxu0 0.0
    %3118 = vmatprep.subr.mxu0 0.0
    %3119 = vmatpush1.msra.mxu0 0.0
    %3120 = vmatprep.subr.mxu0 0.0
    %3121 = vmatpush1.msra.mxu0 0.0
    %3122 = vmatprep.subr.mxu0 0.0
    %3123 = vmatpush1.msra.mxu0 0.0
    %3124 = vmatprep.subr.mxu0 0.0
    %3125 = vmatpush1.msra.mxu0 0.0
    %3126 = vmatprep.subr.mxu0 0.0
    %3127 = vmatpush1.msra.mxu0 0.0
    %3128 = vmatprep.subr.mxu0 0.0
    %3129 = vmatpush1.msra.mxu0 0.0
    %3130 = vmatprep.subr.mxu0 0.0
    %3131 = vmatpush1.msra.mxu0 0.0
    %3132 = vmatprep.subr.mxu0 0.0
    %3133 = vmatpush1.msra.mxu0 0.0
    %3134 = vmatprep.subr.mxu0 0.0
    %3135 = vmatpush1.msra.mxu0 0.0
    %3136 = vmatprep.subr.mxu0 0.0
    %3137 = vmatpush1.msra.mxu0 0.0
    %3138 = vmatprep.subr.mxu0 0.0
    %3139 = vmatpush1.msra.mxu0 0.0
    %3140 = vmatprep.subr.mxu0 0.0
    %3141 = vmatpush1.msra.mxu0 0.0
    %3142 = vmatprep.subr.mxu0 0.0
    %3143 = vmatpush1.msra.mxu0 0.0
    %3144 = vmatprep.subr.mxu0 0.0
    %3145 = vmatpush1.msra.mxu0 0.0
    %3146 = vmatprep.subr.mxu0 0.0
    %3147 = vmatpush1.msra.mxu0 0.0
    %3148 = vmatprep.subr.mxu0 0.0
    %3149 = vmatpush1.msra.mxu0 0.0
    %3150 = vmatprep.subr.mxu0 0.0
    %3151 = vmatpush1.msra.mxu0 0.0
    %3152 = vmatprep.subr.mxu0 0.0
    %3153 = vmatpush1.msra.mxu0 0.0
    %3154 = vmatprep.subr.mxu0 0.0
    %3155 = vmatpush1.msra.mxu0 0.0
    %3156 = vmatprep.subr.mxu0 0.0
    %3157 = vmatpush1.msra.mxu0 0.0
    %3158 = vmatprep.subr.mxu0 0.0
    %3159 = vmatpush1.msra.mxu0 0.0
    %3160 = vmatprep.subr.mxu0 0.0
    %3161 = vmatpush1.msra.mxu0 0.0
    %3162 = vmatprep.subr.mxu0 0.0
    %3163 = vmatpush1.msra.mxu0 0.0
    %3164 = vmatprep.subr.mxu0 0.0
    %3165 = vmatpush1.msra.mxu0 0.0
    %3166 = vmatprep.subr.mxu0 0.0
    %3167 = vmatpush1.msra.mxu0 0.0
    %3168 = vmatprep.subr.mxu0 0.0
    %3169 = vmatpush1.msra.mxu0 0.0
    %3170 = vmatprep.subr.mxu0 0.0
    %3171 = vmatpush1.msra.mxu0 0.0
    %3172 = vmatprep.subr.mxu0 0.0
    %3173 = vmatpush1.msra.mxu0 0.0
    %3174 = vmatprep.subr.mxu0 0.0
    %3175 = vmatpush1.msra.mxu0 0.0
    %3176 = vmatprep.mubr.f32.mxu0 0.0
    %v3177 = vand.u32 %v3010, 4294901760
    %3178 = vmatmul.mubr.f32.gmra.mrb[0].mxu0 %v3177
    %v3179 = vpop.f32.mrb[0].mxu0
    %v3180 = vadd.f32 %v3089, %v3179
    %v3181 = vpop.f32.mrb[0].mxu0
    %3182 = vmatprep.mubr.f32.mxu0 0.0
    %v3183 = vand.u32 %v3013, 4294901760
    %3184 = vmatmul.mubr.f32.gmra.mrb[0].mxu0 %v3183
    %v3185 = vpop.f32.mrb[0].mxu0
    %v3186 = vadd.f32 %v3099, %v3185
    %v3187 = vpop.f32.mrb[0].mxu0
    %3188 = vdwg.mxu0
    %3189 = vmatprep.subr.mxu0 0.0
    %v3190 = vand.u32 %v2998, 4294901760
    %v3191 = vsub.f32 %v2998, %v3190
    %3192 = vmatpush1.msra.mxu0 %v3191
    %3193 = vmatprep.subr.mxu0 0.0
    %v3194 = vand.u32 %v3000, 4294901760
    %v3195 = vsub.f32 %v3000, %v3194
    %3196 = vmatpush1.msra.mxu0 %v3195
    %3197 = vmatprep.subr.mxu0 0.0
    %3198 = vmatpush1.msra.mxu0 0.0
    %3199 = vmatprep.subr.mxu0 0.0
    %3200 = vmatpush1.msra.mxu0 0.0
    %3201 = vmatprep.subr.mxu0 0.0
    %3202 = vmatpush1.msra.mxu0 0.0
    %3203 = vmatprep.subr.mxu0 0.0
    %3204 = vmatpush1.msra.mxu0 0.0
    %3205 = vmatprep.subr.mxu0 0.0
    %3206 = vmatpush1.msra.mxu0 0.0
    %3207 = vmatprep.subr.mxu0 0.0
    %3208 = vmatpush1.msra.mxu0 0.0
    %3209 = vmatprep.subr.mxu0 0.0
    %3210 = vmatpush1.msra.mxu0 0.0
    %3211 = vmatprep.subr.mxu0 0.0
    %3212 = vmatpush1.msra.mxu0 0.0
    %3213 = vmatprep.subr.mxu0 0.0
    %3214 = vmatpush1.msra.mxu0 0.0
    %3215 = vmatprep.subr.mxu0 0.0
    %3216 = vmatpush1.msra.mxu0 0.0
    %3217 = vmatprep.subr.mxu0 0.0
    %3218 = vmatpush1.msra.mxu0 0.0
    %3219 = vmatprep.subr.mxu0 0.0
    %3220 = vmatpush1.msra.mxu0 0.0
    %3221 = vmatprep.subr.mxu0 0.0
    %3222 = vmatpush1.msra.mxu0 0.0
    %3223 = vmatprep.subr.mxu0 0.0
    %3224 = vmatpush1.msra.mxu0 0.0
    %3225 = vmatprep.subr.mxu0 0.0
    %3226 = vmatpush1.msra.mxu0 0.0
    %3227 = vmatprep.subr.mxu0 0.0
    %3228 = vmatpush1.msra.mxu0 0.0
    %3229 = vmatprep.subr.mxu0 0.0
    %3230 = vmatpush1.msra.mxu0 0.0
    %3231 = vmatprep.subr.mxu0 0.0
    %3232 = vmatpush1.msra.mxu0 0.0
    %3233 = vmatprep.subr.mxu0 0.0
    %3234 = vmatpush1.msra.mxu0 0.0
    %3235 = vmatprep.subr.mxu0 0.0
    %3236 = vmatpush1.msra.mxu0 0.0
    %3237 = vmatprep.subr.mxu0 0.0
    %3238 = vmatpush1.msra.mxu0 0.0
    %3239 = vmatprep.subr.mxu0 0.0
    %3240 = vmatpush1.msra.mxu0 0.0
    %3241 = vmatprep.subr.mxu0 0.0
    %3242 = vmatpush1.msra.mxu0 0.0
    %3243 = vmatprep.subr.mxu0 0.0
    %3244 = vmatpush1.msra.mxu0 0.0
    %3245 = vmatprep.subr.mxu0 0.0
    %3246 = vmatpush1.msra.mxu0 0.0
    %3247 = vmatprep.subr.mxu0 0.0
    %3248 = vmatpush1.msra.mxu0 0.0
    %3249 = vmatprep.subr.mxu0 0.0
    %3250 = vmatpush1.msra.mxu0 0.0
    %3251 = vmatprep.subr.mxu0 0.0
    %3252 = vmatpush1.msra.mxu0 0.0
    %3253 = vmatprep.subr.mxu0 0.0
    %3254 = vmatpush1.msra.mxu0 0.0
    %3255 = vmatprep.subr.mxu0 0.0
    %3256 = vmatpush1.msra.mxu0 0.0
    %3257 = vmatprep.mubr.f32.mxu0 0.0
    %v3258 = vand.u32 %v3010, 4294901760
    %v3259 = vsub.f32 %v3010, %v3258
    %3260 = vmatmul.mubr.f32.gmra.mrb[0].mxu0 %v3259
    %v3261 = vpop.f32.mrb[0].mxu0
    %v3262 = vadd.f32 %v3180, %v3261
    %v3263 = vpop.f32.mrb[0].mxu0
    %3264 = vmatprep.mubr.f32.mxu0 0.0
    %v3265 = vand.u32 %v3013, 4294901760
    %v3266 = vsub.f32 %v3013, %v3265
    %3267 = vmatmul.mubr.f32.gmra.mrb[0].mxu0 %v3266
    %v3268 = vpop.f32.mrb[0].mxu0
    %v3269 = vadd.f32 %v3186, %v3268
    %v3270 = vpop.f32.mrb[0].mxu0
    %3271 = vdwg.mxu0
    %3272 = vmatprep.subr.mxu0 0.0
    %v3273 = vand.u32 %v2998, 4294901760
    %3274 = vmatpush1.msra.mxu0 %v3273
    %3275 = vmatprep.subr.mxu0 0.0
    %v3276 = vand.u32 %v3000, 4294901760
    %3277 = vmatpush1.msra.mxu0 %v3276
    %3278 = vmatprep.subr.mxu0 0.0
    %3279 = vmatpush1.msra.mxu0 0.0
    %3280 = vmatprep.subr.mxu0 0.0
    %3281 = vmatpush1.msra.mxu0 0.0
    %3282 = vmatprep.subr.mxu0 0.0
    %3283 = vmatpush1.msra.mxu0 0.0
    %3284 = vmatprep.subr.mxu0 0.0
    %3285 = vmatpush1.msra.mxu0 0.0
    %3286 = vmatprep.subr.mxu0 0.0
    %3287 = vmatpush1.msra.mxu0 0.0
    %3288 = vmatprep.subr.mxu0 0.0
    %3289 = vmatpush1.msra.mxu0 0.0
    %3290 = vmatprep.subr.mxu0 0.0
    %3291 = vmatpush1.msra.mxu0 0.0
    %3292 = vmatprep.subr.mxu0 0.0
    %3293 = vmatpush1.msra.mxu0 0.0
    %3294 = vmatprep.subr.mxu0 0.0
    %3295 = vmatpush1.msra.mxu0 0.0
    %3296 = vmatprep.subr.mxu0 0.0
    %3297 = vmatpush1.msra.mxu0 0.0
    %3298 = vmatprep.subr.mxu0 0.0
    %3299 = vmatpush1.msra.mxu0 0.0
    %3300 = vmatprep.subr.mxu0 0.0
    %3301 = vmatpush1.msra.mxu0 0.0
    %3302 = vmatprep.subr.mxu0 0.0
    %3303 = vmatpush1.msra.mxu0 0.0
    %3304 = vmatprep.subr.mxu0 0.0
    %3305 = vmatpush1.msra.mxu0 0.0
    %3306 = vmatprep.subr.mxu0 0.0
    %3307 = vmatpush1.msra.mxu0 0.0
    %3308 = vmatprep.subr.mxu0 0.0
    %3309 = vmatpush1.msra.mxu0 0.0
    %3310 = vmatprep.subr.mxu0 0.0
    %3311 = vmatpush1.msra.mxu0 0.0
    %3312 = vmatprep.subr.mxu0 0.0
    %3313 = vmatpush1.msra.mxu0 0.0
    %3314 = vmatprep.subr.mxu0 0.0
    %3315 = vmatpush1.msra.mxu0 0.0
    %3316 = vmatprep.subr.mxu0 0.0
    %3317 = vmatpush1.msra.mxu0 0.0
    %3318 = vmatprep.subr.mxu0 0.0
    %3319 = vmatpush1.msra.mxu0 0.0
    %3320 = vmatprep.subr.mxu0 0.0
    %3321 = vmatpush1.msra.mxu0 0.0
    %3322 = vmatprep.subr.mxu0 0.0
    %3323 = vmatpush1.msra.mxu0 0.0
    %3324 = vmatprep.subr.mxu0 0.0
    %3325 = vmatpush1.msra.mxu0 0.0
    %3326 = vmatprep.subr.mxu0 0.0
    %3327 = vmatpush1.msra.mxu0 0.0
    %3328 = vmatprep.subr.mxu0 0.0
    %3329 = vmatpush1.msra.mxu0 0.0
    %3330 = vmatprep.subr.mxu0 0.0
    %3331 = vmatpush1.msra.mxu0 0.0
    %3332 = vmatprep.subr.mxu0 0.0
    %3333 = vmatpush1.msra.mxu0 0.0
    %3334 = vmatprep.subr.mxu0 0.0
    %3335 = vmatpush1.msra.mxu0 0.0
    %3336 = vmatprep.subr.mxu0 0.0
    %3337 = vmatpush1.msra.mxu0 0.0
    %3338 = vmatprep.mubr.f32.mxu0 0.0
    %v3339 = vand.u32 %v3010, 4294901760
    %v3340 = vsub.f32 %v3010, %v3339
    %v3341 = vand.u32 %v3340, 4294901760
    %3342 = vmatmul.mubr.f32.gmra.mrb[0].mxu0 %v3341
    %v3343 = vpop.f32.mrb[0].mxu0
    %v3344 = vadd.f32 %v3262, %v3343
    %v3345 = vpop.f32.mrb[0].mxu0
    %3346 = vmatprep.mubr.f32.mxu0 0.0
    %v3347 = vand.u32 %v3013, 4294901760
    %v3348 = vsub.f32 %v3013, %v3347
    %v3349 = vand.u32 %v3348, 4294901760
    %3350 = vmatmul.mubr.f32.gmra.mrb[0].mxu0 %v3349
    %v3351 = vpop.f32.mrb[0].mxu0
    %v3352 = vadd.f32 %v3269, %v3351
    %v3353 = vpop.f32.mrb[0].mxu0
    %3354 = vdwg.mxu0
    %3355 = vmatprep.subr.mxu0 0.0
    %v3356 = vand.u32 %v2998, 4294901760
    %v3357 = vsub.f32 %v2998, %v3356
    %v3358 = vand.u32 %v3357, 4294901760
    %3359 = vmatpush1.msra.mxu0 %v3358
    %3360 = vmatprep.subr.mxu0 0.0
    %v3361 = vand.u32 %v3000, 4294901760
    %v3362 = vsub.f32 %v3000, %v3361
    %v3363 = vand.u32 %v3362, 4294901760
    %3364 = vmatpush1.msra.mxu0 %v3363
    %3365 = vmatprep.subr.mxu0 0.0
    %3366 = vmatpush1.msra.mxu0 0.0
    %3367 = vmatprep.subr.mxu0 0.0
    %3368 = vmatpush1.msra.mxu0 0.0
    %3369 = vmatprep.subr.mxu0 0.0
    %3370 = vmatpush1.msra.mxu0 0.0
    %3371 = vmatprep.subr.mxu0 0.0
    %3372 = vmatpush1.msra.mxu0 0.0
    %3373 = vmatprep.subr.mxu0 0.0
    %3374 = vmatpush1.msra.mxu0 0.0
    %3375 = vmatprep.subr.mxu0 0.0
    %3376 = vmatpush1.msra.mxu0 0.0
    %3377 = vmatprep.subr.mxu0 0.0
    %3378 = vmatpush1.msra.mxu0 0.0
    %3379 = vmatprep.subr.mxu0 0.0
    %3380 = vmatpush1.msra.mxu0 0.0
    %3381 = vmatprep.subr.mxu0 0.0
    %3382 = vmatpush1.msra.mxu0 0.0
    %3383 = vmatprep.subr.mxu0 0.0
    %3384 = vmatpush1.msra.mxu0 0.0
    %3385 = vmatprep.subr.mxu0 0.0
    %3386 = vmatpush1.msra.mxu0 0.0
    %3387 = vmatprep.subr.mxu0 0.0
    %3388 = vmatpush1.msra.mxu0 0.0
    %3389 = vmatprep.subr.mxu0 0.0
    %3390 = vmatpush1.msra.mxu0 0.0
    %3391 = vmatprep.subr.mxu0 0.0
    %3392 = vmatpush1.msra.mxu0 0.0
    %3393 = vmatprep.subr.mxu0 0.0
    %3394 = vmatpush1.msra.mxu0 0.0
    %3395 = vmatprep.subr.mxu0 0.0
    %3396 = vmatpush1.msra.mxu0 0.0
    %3397 = vmatprep.subr.mxu0 0.0
    %3398 = vmatpush1.msra.mxu0 0.0
    %3399 = vmatprep.subr.mxu0 0.0
    %3400 = vmatpush1.msra.mxu0 0.0
    %3401 = vmatprep.subr.mxu0 0.0
    %3402 = vmatpush1.msra.mxu0 0.0
    %3403 = vmatprep.subr.mxu0 0.0
    %3404 = vmatpush1.msra.mxu0 0.0
    %3405 = vmatprep.subr.mxu0 0.0
    %3406 = vmatpush1.msra.mxu0 0.0
    %3407 = vmatprep.subr.mxu0 0.0
    %3408 = vmatpush1.msra.mxu0 0.0
    %3409 = vmatprep.subr.mxu0 0.0
    %3410 = vmatpush1.msra.mxu0 0.0
    %3411 = vmatprep.subr.mxu0 0.0
    %3412 = vmatpush1.msra.mxu0 0.0
    %3413 = vmatprep.subr.mxu0 0.0
    %3414 = vmatpush1.msra.mxu0 0.0
    %3415 = vmatprep.subr.mxu0 0.0
    %3416 = vmatpush1.msra.mxu0 0.0
    %3417 = vmatprep.subr.mxu0 0.0
    %3418 = vmatpush1.msra.mxu0 0.0
    %3419 = vmatprep.subr.mxu0 0.0
    %3420 = vmatpush1.msra.mxu0 0.0
    %3421 = vmatprep.subr.mxu0 0.0
    %3422 = vmatpush1.msra.mxu0 0.0
    %3423 = vmatprep.subr.mxu0 0.0
    %3424 = vmatpush1.msra.mxu0 0.0
    %3425 = vmatprep.mubr.f32.mxu0 0.0
    %v3426 = vand.u32 %v3010, 4294901760
    %3427 = vmatmul.mubr.f32.gmra.mrb[0].mxu0 %v3426
    %v3428 = vpop.f32.mrb[0].mxu0
    %v3429 = vadd.f32 %v3344, %v3428
    %v3430 = vpop.f32.mrb[0].mxu0
    %3431 = vmatprep.mubr.f32.mxu0 0.0
    %v3432 = vand.u32 %v3013, 4294901760
    %3433 = vmatmul.mubr.f32.gmra.mrb[0].mxu0 %v3432
    %v3434 = vpop.f32.mrb[0].mxu0
    %v3435 = vadd.f32 %v3352, %v3434
    %v3436 = vpop.f32.mrb[0].mxu0
    %3437 = vdwg.mxu0
    %3438 = vmatprep.subr.mxu0 0.0
    %v3439 = vand.u32 %v2998, 4294901760
    %3440 = vmatpush1.msra.mxu0 %v3439
    %3441 = vmatprep.subr.mxu0 0.0
    %v3442 = vand.u32 %v3000, 4294901760
    %3443 = vmatpush1.msra.mxu0 %v3442
    %3444 = vmatprep.subr.mxu0 0.0
    %3445 = vmatpush1.msra.mxu0 0.0
    %3446 = vmatprep.subr.mxu0 0.0
    %3447 = vmatpush1.msra.mxu0 0.0
    %3448 = vmatprep.subr.mxu0 0.0
    %3449 = vmatpush1.msra.mxu0 0.0
    %3450 = vmatprep.subr.mxu0 0.0
    %3451 = vmatpush1.msra.mxu0 0.0
    %3452 = vmatprep.subr.mxu0 0.0
    %3453 = vmatpush1.msra.mxu0 0.0
    %3454 = vmatprep.subr.mxu0 0.0
    %3455 = vmatpush1.msra.mxu0 0.0
    %3456 = vmatprep.subr.mxu0 0.0
    %3457 = vmatpush1.msra.mxu0 0.0
    %3458 = vmatprep.subr.mxu0 0.0
    %3459 = vmatpush1.msra.mxu0 0.0
    %3460 = vmatprep.subr.mxu0 0.0
    %3461 = vmatpush1.msra.mxu0 0.0
    %3462 = vmatprep.subr.mxu0 0.0
    %3463 = vmatpush1.msra.mxu0 0.0
    %3464 = vmatprep.subr.mxu0 0.0
    %3465 = vmatpush1.msra.mxu0 0.0
    %3466 = vmatprep.subr.mxu0 0.0
    %3467 = vmatpush1.msra.mxu0 0.0
    %3468 = vmatprep.subr.mxu0 0.0
    %3469 = vmatpush1.msra.mxu0 0.0
    %3470 = vmatprep.subr.mxu0 0.0
    %3471 = vmatpush1.msra.mxu0 0.0
    %3472 = vmatprep.subr.mxu0 0.0
    %3473 = vmatpush1.msra.mxu0 0.0
    %3474 = vmatprep.subr.mxu0 0.0
    %3475 = vmatpush1.msra.mxu0 0.0
    %3476 = vmatprep.subr.mxu0 0.0
    %3477 = vmatpush1.msra.mxu0 0.0
    %3478 = vmatprep.subr.mxu0 0.0
    %3479 = vmatpush1.msra.mxu0 0.0
    %3480 = vmatprep.subr.mxu0 0.0
    %3481 = vmatpush1.msra.mxu0 0.0
    %3482 = vmatprep.subr.mxu0 0.0
    %3483 = vmatpush1.msra.mxu0 0.0
    %3484 = vmatprep.subr.mxu0 0.0
    %3485 = vmatpush1.msra.mxu0 0.0
    %3486 = vmatprep.subr.mxu0 0.0
    %3487 = vmatpush1.msra.mxu0 0.0
    %3488 = vmatprep.subr.mxu0 0.0
    %3489 = vmatpush1.msra.mxu0 0.0
    %3490 = vmatprep.subr.mxu0 0.0
    %3491 = vmatpush1.msra.mxu0 0.0
    %3492 = vmatprep.subr.mxu0 0.0
    %3493 = vmatpush1.msra.mxu0 0.0
    %3494 = vmatprep.subr.mxu0 0.0
    %3495 = vmatpush1.msra.mxu0 0.0
    %3496 = vmatprep.subr.mxu0 0.0
    %3497 = vmatpush1.msra.mxu0 0.0
    %3498 = vmatprep.subr.mxu0 0.0
    %3499 = vmatpush1.msra.mxu0 0.0
    %3500 = vmatprep.subr.mxu0 0.0
    %3501 = vmatpush1.msra.mxu0 0.0
    %3502 = vmatprep.subr.mxu0 0.0
    %3503 = vmatpush1.msra.mxu0 0.0
    %3504 = vmatprep.mubr.f32.mxu0 0.0
    %v3505 = vand.u32 %v3010, 4294901760
    %3506 = vmatmul.mubr.f32.gmra.mrb[0].mxu0 %v3505
    %v3507 = vpop.f32.mrb[0].mxu0
    %v3508 = vadd.f32 %v3429, %v3507
    %v3509 = vpop.f32.mrb[0].mxu0
    %3510 = vmatprep.mubr.f32.mxu0 0.0
    %v3511 = vand.u32 %v3013, 4294901760
    %3512 = vmatmul.mubr.f32.gmra.mrb[0].mxu0 %v3511
    %v3513 = vpop.f32.mrb[0].mxu0
    %v3514 = vadd.f32 %v3435, %v3513
    %v3515 = vpop.f32.mrb[0].mxu0
    %3516 = vdwg.mxu0
    %3517 = vrot.lane.b32.xlu0 %v1751, 80
    %v3518 = vpop.permute.xlu0 %3517
    %v3520 = vadd.f32 %v3508, %v3518
    %v3521 = vadd.f32 %v3514, %v3518
    %vm3522 = vcmp.gt.f32.partialorder %v3520, 0.0
    %vm3523 = vcmp.gt.f32.partialorder %v3521, 0.0
    %v3524 = vmin.f32 %v3520, 0.0
    %v3525 = vmin.f32 %v3521, 0.0
    %v3526 = vmul.f32 %v3524, 1.442695
    %v3527 = vpow.pop %v3526
    %v3528 = vmul.f32 %v3525, 1.442695
    %v3529 = vpow.pop %v3528
    %v3530 = vsub.f32 %v3527, 1.0
    %v3531 = vsub.f32 %v3529, 1.0
    %v3532 = vsel %vm3522, %v3520, %v3530
    %v3533 = vsel %vm3523, %v3521, %v3531
    %3536 = vrot.lane.b32.xlu0 %v3532, 48
    %v3537 = vpop.permute.xlu0 %3536
    %3538 = vrot.lane.b32.xlu0 %v3533, 48
    %v3539 = vpop.permute.xlu0 %3538
    %vm3542 = vcmask 523648
    %3543 = vst.msk [vmem:[#allocation10] sm:$0xff] %vm3542, %v3537
    %3544 = vst.msk [vmem:[#allocation10 + $0x8] sm:$0xff] %vm3542, %v3539
    // Predicated region
    $region38: #{tpu_custom_call.1} parent=1 // pred_check
      _
    $region39: #{tpu_custom_call.1} parent=1 // pred_check_branch
      %3546 = sbr.rel (0) target = $region41
    $region40: #{tpu_custom_call.1} parent=1 // pred_region
      %s3548 = ssub.s32 256, 256
      %3549 = vsyncadd [#allocation4], %s3548
      %s3550 = sshll.u32 [#allocation10], 4
      %s3551 = int_to_ptr.vmem [resolvable:$true] %s3550
      %3556 = dma.vmem_to_hbm [thread:$0]  %s3551, 256, %s5, [#allocation4], 128, 128, 8
    $region41: #{tpu_custom_call.1} parent=1 // pred_fallthru
      _
    // Predicated region
    $region42: #{tpu_custom_call.1} parent=1 // pred_check
      _
    $region43: #{tpu_custom_call.1} parent=1 // pred_check_branch
      %3558 = sbr.rel (0) target = $region45
    $region44: #{tpu_custom_call.1} parent=1 // pred_region
      %3559 = dma.done [#allocation4], 256
    $region45: #{tpu_custom_call.1} parent=1 // pred_fallthru
      _
    %3560 = vsyncpa [#allocation3], 1
    %3561 = vsyncpa [#allocation6], 1
    %3562 = vsyncpa [#allocation9], 1
    %3563 = vsyncpa [#allocation4], 1

</llo_original>
